<compile_context>
chip_gen: v7x
topology: tpu7x:2x2x1
jax: 0.10.0
libtpu: 0.0.40
codegen_flags: <defaults>
</compile_context>

<pallas_src>
import math

import jax
import jax.numpy as jnp
from jax.experimental import pallas as pl
from jax.experimental.pallas import tpu as pltpu

# ----------------- small, TPU-friendly configuration -----------------
B = 2            # batch
H = 4            # heads
DH = 128         # dim_head  (lane-aligned head slices)
E = H * DH       # inner_dim = 512
OUT = 256        # query_dim (output channels of to_out)
NQ = 128         # query tokens
NK = 256         # context (key/value) tokens


# ----------------- fused cross-attention kernel -----------------
def _make_kernel(heads, dim_head, scale):
    def kernel(q_ref, k_ref, v_ref, w_ref, b_ref, out_ref):
        f32 = jnp.float32
        q = q_ref[...].astype(f32) * scale     # (NQ, E)  scale hoisted out of head loop
        k = k_ref[...].astype(f32)             # (NK, E)
        v = v_ref[...].astype(f32)             # (NK, E)

        head_outs = []
        for h in range(heads):                 # static unroll; 128-lane aligned slices
            sl = slice(h * dim_head, (h + 1) * dim_head)
            qh = q[:, sl]                      # (NQ, DH)
            kh = k[:, sl]                      # (NK, DH)
            vh = v[:, sl]                      # (NK, DH)
            # q_h @ k_h^T without materializing a transpose
            s = jax.lax.dot_general(qh, kh, (((1,), (1,)), ((), ())),
                                    preferred_element_type=f32)        # (NQ, NK)
            s = s - jnp.max(s, axis=-1, keepdims=True)
            e = jnp.exp(s)
            p = e * pl.reciprocal(jnp.sum(e, axis=-1, keepdims=True), approx=True)
            head_outs.append(jnp.dot(p, vh, preferred_element_type=f32))  # (NQ, DH)

        o = jnp.concatenate(head_outs, axis=-1)                          # (NQ, E)
        out_ref[...] = (jnp.dot(o, w_ref[...], preferred_element_type=f32)
                        + b_ref[...]).astype(out_ref.dtype)
    return kernel


def cross_attention_forward(q, k, v, w_out, b_out, *, heads, dim_head, scale):
    bsz, nq, e = q.shape
    nk = k.shape[1]
    out_c = w_out.shape[1]
    kernel = _make_kernel(heads, dim_head, scale)
    return pl.pallas_call(
        kernel,
        out_shape=jax.ShapeDtypeStruct((bsz, nq, out_c), q.dtype),
        grid=(bsz,),
        in_specs=[
            pl.BlockSpec((None, nq, e), lambda i: (i, 0, 0)),   # q  (per batch)
            pl.BlockSpec((None, nk, e), lambda i: (i, 0, 0)),   # k
            pl.BlockSpec((None, nk, e), lambda i: (i, 0, 0)),   # v
            pl.BlockSpec((e, out_c), lambda i: (0, 0)),         # to_out weight (resident)
            pl.BlockSpec((1, out_c), lambda i: (0, 0)),         # to_out bias
        ],
        out_specs=pl.BlockSpec((None, nq, out_c), lambda i: (i, 0, 0)),
        compiler_params=pltpu.CompilerParams(
            dimension_semantics=("parallel",)),                 # megacore split on v7x
    )(q, k, v, w_out, b_out)


# ----------------- module wrapper -----------------
class CrossAttentionPallas:
    def __init__(self, key, query_dim, context_dim=None, heads=8, dim_head=64, dropout=0.0):
        inner_dim = heads * dim_head
        self.heads = heads
        self.dim_head = dim_head
        self.scale = dim_head ** (-0.5)
        # nn.Linear(inner_dim, query_dim) default init
        lim = 1.0 / math.sqrt(inner_dim)
        kw, kb = jax.random.split(key)
        self.w_out = jax.random.uniform(kw, (inner_dim, query_dim), jnp.float32, -lim, lim)
        self.b_out = jax.random.uniform(kb, (1, query_dim), jnp.float32, -lim, lim)
        # TODO(synk): nn.Dropout(p=0.0) is an identity at inference; no dropout RNG implemented.

    def __call__(self, q, k, v):
        return cross_attention_forward(q, k, v, self.w_out, self.b_out,
                                       heads=self.heads, dim_head=self.dim_head,
                                       scale=self.scale)


# ----------------- pure-JAX reference (sanity check) -----------------
def reference_forward(q, k, v, model):
    hp = jax.lax.Precision.HIGHEST
    bsz, nq, e = q.shape
    nk = k.shape[1]
    h, d = model.heads, model.dim_head
    qh = q.reshape(bsz, nq, h, d).transpose(0, 2, 1, 3)
    kh = k.reshape(bsz, nk, h, d).transpose(0, 2, 1, 3)
    vh = v.reshape(bsz, nk, h, d).transpose(0, 2, 1, 3)
    s = jnp.einsum("bhnd,bhmd->bhnm", qh, kh, precision=hp) * model.scale
    p = jax.nn.softmax(s, axis=-1)
    o = jnp.einsum("bhnm,bhmd->bhnd", p, vh, precision=hp)
    o = o.transpose(0, 2, 1, 3).reshape(bsz, nq, e)
    return jnp.einsum("bne,eo->bno", o, model.w_out, precision=hp) + model.b_out


# ----------------- main -----------------
if __name__ == "__main__":
    key = jax.random.PRNGKey(0)
    kq, kk, kv, kp = jax.random.split(key, 4)

    q = jax.random.normal(kq, (B, NQ, E), jnp.float32)
    k = jax.random.normal(kk, (B, NK, E), jnp.float32)
    v = jax.random.normal(kv, (B, NK, E), jnp.float32)

    model = CrossAttentionPallas(kp, query_dim=OUT, context_dim=E, heads=H, dim_head=DH)

    out = model(q, k, v)
    out = jax.block_until_ready(out)

    assert out.shape == (B, NQ, OUT)
    assert bool(jnp.all(jnp.isfinite(out)))

    ref = reference_forward(q, k, v, model)
    assert bool(jnp.allclose(out, ref, atol=2e-2, rtol=2e-2)), \
        float(jnp.max(jnp.abs(out - ref)))

    print("KERNEL_OK")
</pallas_src>

<mosaic_0001>
module attributes {stable_mosaic.version = 11 : i64} {
  func.func @kernel(%arg0: i32, %arg1: memref<1x128x512xf32, #tpu.memory_space<vmem>>, %arg2: memref<1x256x512xf32, #tpu.memory_space<vmem>>, %arg3: memref<1x256x512xf32, #tpu.memory_space<vmem>>, %arg4: memref<512x256xf32, #tpu.memory_space<vmem>>, %arg5: memref<1x256xf32, #tpu.memory_space<vmem>>, %arg6: memref<1x128x256xf32, #tpu.memory_space<vmem>>) attributes {dimension_semantics = [#tpu.dimension_semantics<parallel>], iteration_bounds = array<i64: 2>, scalar_prefetch = 0 : i64, scratch_operands = 0 : i64, tpu.core_type = #tpu.core_type<tc>, window_params = [{transform_indices = @transform_0, window_bounds = array<i64: 1, 128, 512>}, {transform_indices = @transform_1, window_bounds = array<i64: 1, 256, 512>}, {transform_indices = @transform_2, window_bounds = array<i64: 1, 256, 512>}, {pipeline_mode = #tpu.pipeline_mode<synchronous>, transform_indices = @transform_3, window_bounds = array<i64: 512, 256>}, {pipeline_mode = #tpu.pipeline_mode<synchronous>, transform_indices = @transform_4, window_bounds = array<i64: 1, 256>}, {transform_indices = @transform_5, window_bounds = array<i64: 1, 128, 256>}]} {
    %c0 = arith.constant 0 : index
    %c0_0 = arith.constant 0 : index
    %c0_1 = arith.constant 0 : index
    %0 = vector.load %arg1[%c0, %c0_0, %c0_1] : memref<1x128x512xf32, #tpu.memory_space<vmem>>, vector<1x128x512xf32>
    %1 = vector.shape_cast %0 : vector<1x128x512xf32> to vector<128x512xf32>
    %cst = arith.constant 0.0883883461 : f32
    %2 = vector.broadcast %cst : f32 to vector<128x512xf32>
    %3 = arith.mulf %1, %2 : vector<128x512xf32>
    %c0_2 = arith.constant 0 : index
    %c0_3 = arith.constant 0 : index
    %c0_4 = arith.constant 0 : index
    %4 = vector.load %arg2[%c0_2, %c0_3, %c0_4] : memref<1x256x512xf32, #tpu.memory_space<vmem>>, vector<1x256x512xf32>
    %5 = vector.shape_cast %4 : vector<1x256x512xf32> to vector<256x512xf32>
    %c0_5 = arith.constant 0 : index
    %c0_6 = arith.constant 0 : index
    %c0_7 = arith.constant 0 : index
    %6 = vector.load %arg3[%c0_5, %c0_6, %c0_7] : memref<1x256x512xf32, #tpu.memory_space<vmem>>, vector<1x256x512xf32>
    %7 = vector.shape_cast %6 : vector<1x256x512xf32> to vector<256x512xf32>
    %8 = vector.extract_strided_slice %3 {offsets = [0, 0], sizes = [128, 128], strides = [1, 1]} : vector<128x512xf32> to vector<128x128xf32>
    %9 = vector.extract_strided_slice %5 {offsets = [0, 0], sizes = [256, 128], strides = [1, 1]} : vector<256x512xf32> to vector<256x128xf32>
    %10 = vector.extract_strided_slice %7 {offsets = [0, 0], sizes = [256, 128], strides = [1, 1]} : vector<256x512xf32> to vector<256x128xf32>
    %cst_8 = arith.constant dense<0.000000e+00> : vector<128x256xf32>
    %11 = tpu.matmul %8, %9, %cst_8 {dimension_numbers = #tpu.dot_dimension_numbers<[1], [1], [0], [0], [0, 0, 1, 0], [], []>} : vector<128x128xf32>, vector<256x128xf32>, vector<128x256xf32> -> vector<128x256xf32>
    %cst_9 = arith.constant dense<0xFF800000> : vector<128xf32>
    %12 = vector.multi_reduction <maximumf>, %11, %cst_9 [1] : vector<128x256xf32> to vector<128xf32>
    %13 = vector.shape_cast %12 : vector<128xf32> to vector<128x1xf32>
    %14 = vector.broadcast %13 : vector<128x1xf32> to vector<128x256xf32>
    %15 = arith.subf %11, %14 : vector<128x256xf32>
    %16 = math.exp %15 : vector<128x256xf32>
    %cst_10 = arith.constant dense<0.000000e+00> : vector<128xf32>
    %17 = vector.multi_reduction <add>, %16, %cst_10 [1] : vector<128x256xf32> to vector<128xf32>
    %18 = vector.shape_cast %17 : vector<128xf32> to vector<128x1xf32>
    %19 = tpu.reciprocal %18 {approx = true} : vector<128x1xf32> -> vector<128x1xf32>
    %20 = vector.broadcast %19 : vector<128x1xf32> to vector<128x256xf32>
    %21 = arith.mulf %16, %20 : vector<128x256xf32>
    %cst_11 = arith.constant dense<0.000000e+00> : vector<128x128xf32>
    %22 = tpu.matmul %21, %10, %cst_11 {dimension_numbers = #tpu.dot_dimension_numbers<[1], [0], [0], [1], [0, 0, 1, 1], [], []>} : vector<128x256xf32>, vector<256x128xf32>, vector<128x128xf32> -> vector<128x128xf32>
    %23 = vector.extract_strided_slice %3 {offsets = [0, 128], sizes = [128, 128], strides = [1, 1]} : vector<128x512xf32> to vector<128x128xf32>
    %24 = vector.extract_strided_slice %5 {offsets = [0, 128], sizes = [256, 128], strides = [1, 1]} : vector<256x512xf32> to vector<256x128xf32>
    %25 = vector.extract_strided_slice %7 {offsets = [0, 128], sizes = [256, 128], strides = [1, 1]} : vector<256x512xf32> to vector<256x128xf32>
    %cst_12 = arith.constant dense<0.000000e+00> : vector<128x256xf32>
    %26 = tpu.matmul %23, %24, %cst_12 {dimension_numbers = #tpu.dot_dimension_numbers<[1], [1], [0], [0], [0, 0, 1, 0], [], []>} : vector<128x128xf32>, vector<256x128xf32>, vector<128x256xf32> -> vector<128x256xf32>
    %cst_13 = arith.constant dense<0xFF800000> : vector<128xf32>
    %27 = vector.multi_reduction <maximumf>, %26, %cst_13 [1] : vector<128x256xf32> to vector<128xf32>
    %28 = vector.shape_cast %27 : vector<128xf32> to vector<128x1xf32>
    %29 = vector.broadcast %28 : vector<128x1xf32> to vector<128x256xf32>
    %30 = arith.subf %26, %29 : vector<128x256xf32>
    %31 = math.exp %30 : vector<128x256xf32>
    %cst_14 = arith.constant dense<0.000000e+00> : vector<128xf32>
    %32 = vector.multi_reduction <add>, %31, %cst_14 [1] : vector<128x256xf32> to vector<128xf32>
    %33 = vector.shape_cast %32 : vector<128xf32> to vector<128x1xf32>
    %34 = tpu.reciprocal %33 {approx = true} : vector<128x1xf32> -> vector<128x1xf32>
    %35 = vector.broadcast %34 : vector<128x1xf32> to vector<128x256xf32>
    %36 = arith.mulf %31, %35 : vector<128x256xf32>
    %cst_15 = arith.constant dense<0.000000e+00> : vector<128x128xf32>
    %37 = tpu.matmul %36, %25, %cst_15 {dimension_numbers = #tpu.dot_dimension_numbers<[1], [0], [0], [1], [0, 0, 1, 1], [], []>} : vector<128x256xf32>, vector<256x128xf32>, vector<128x128xf32> -> vector<128x128xf32>
    %38 = vector.extract_strided_slice %3 {offsets = [0, 256], sizes = [128, 128], strides = [1, 1]} : vector<128x512xf32> to vector<128x128xf32>
    %39 = vector.extract_strided_slice %5 {offsets = [0, 256], sizes = [256, 128], strides = [1, 1]} : vector<256x512xf32> to vector<256x128xf32>
    %40 = vector.extract_strided_slice %7 {offsets = [0, 256], sizes = [256, 128], strides = [1, 1]} : vector<256x512xf32> to vector<256x128xf32>
    %cst_16 = arith.constant dense<0.000000e+00> : vector<128x256xf32>
    %41 = tpu.matmul %38, %39, %cst_16 {dimension_numbers = #tpu.dot_dimension_numbers<[1], [1], [0], [0], [0, 0, 1, 0], [], []>} : vector<128x128xf32>, vector<256x128xf32>, vector<128x256xf32> -> vector<128x256xf32>
    %cst_17 = arith.constant dense<0xFF800000> : vector<128xf32>
    %42 = vector.multi_reduction <maximumf>, %41, %cst_17 [1] : vector<128x256xf32> to vector<128xf32>
    %43 = vector.shape_cast %42 : vector<128xf32> to vector<128x1xf32>
    %44 = vector.broadcast %43 : vector<128x1xf32> to vector<128x256xf32>
    %45 = arith.subf %41, %44 : vector<128x256xf32>
    %46 = math.exp %45 : vector<128x256xf32>
    %cst_18 = arith.constant dense<0.000000e+00> : vector<128xf32>
    %47 = vector.multi_reduction <add>, %46, %cst_18 [1] : vector<128x256xf32> to vector<128xf32>
    %48 = vector.shape_cast %47 : vector<128xf32> to vector<128x1xf32>
    %49 = tpu.reciprocal %48 {approx = true} : vector<128x1xf32> -> vector<128x1xf32>
    %50 = vector.broadcast %49 : vector<128x1xf32> to vector<128x256xf32>
    %51 = arith.mulf %46, %50 : vector<128x256xf32>
    %cst_19 = arith.constant dense<0.000000e+00> : vector<128x128xf32>
    %52 = tpu.matmul %51, %40, %cst_19 {dimension_numbers = #tpu.dot_dimension_numbers<[1], [0], [0], [1], [0, 0, 1, 1], [], []>} : vector<128x256xf32>, vector<256x128xf32>, vector<128x128xf32> -> vector<128x128xf32>
    %53 = vector.extract_strided_slice %3 {offsets = [0, 384], sizes = [128, 128], strides = [1, 1]} : vector<128x512xf32> to vector<128x128xf32>
    %54 = vector.extract_strided_slice %5 {offsets = [0, 384], sizes = [256, 128], strides = [1, 1]} : vector<256x512xf32> to vector<256x128xf32>
    %55 = vector.extract_strided_slice %7 {offsets = [0, 384], sizes = [256, 128], strides = [1, 1]} : vector<256x512xf32> to vector<256x128xf32>
    %cst_20 = arith.constant dense<0.000000e+00> : vector<128x256xf32>
    %56 = tpu.matmul %53, %54, %cst_20 {dimension_numbers = #tpu.dot_dimension_numbers<[1], [1], [0], [0], [0, 0, 1, 0], [], []>} : vector<128x128xf32>, vector<256x128xf32>, vector<128x256xf32> -> vector<128x256xf32>
    %cst_21 = arith.constant dense<0xFF800000> : vector<128xf32>
    %57 = vector.multi_reduction <maximumf>, %56, %cst_21 [1] : vector<128x256xf32> to vector<128xf32>
    %58 = vector.shape_cast %57 : vector<128xf32> to vector<128x1xf32>
    %59 = vector.broadcast %58 : vector<128x1xf32> to vector<128x256xf32>
    %60 = arith.subf %56, %59 : vector<128x256xf32>
    %61 = math.exp %60 : vector<128x256xf32>
    %cst_22 = arith.constant dense<0.000000e+00> : vector<128xf32>
    %62 = vector.multi_reduction <add>, %61, %cst_22 [1] : vector<128x256xf32> to vector<128xf32>
    %63 = vector.shape_cast %62 : vector<128xf32> to vector<128x1xf32>
    %64 = tpu.reciprocal %63 {approx = true} : vector<128x1xf32> -> vector<128x1xf32>
    %65 = vector.broadcast %64 : vector<128x1xf32> to vector<128x256xf32>
    %66 = arith.mulf %61, %65 : vector<128x256xf32>
    %cst_23 = arith.constant dense<0.000000e+00> : vector<128x128xf32>
    %67 = tpu.matmul %66, %55, %cst_23 {dimension_numbers = #tpu.dot_dimension_numbers<[1], [0], [0], [1], [0, 0, 1, 1], [], []>} : vector<128x256xf32>, vector<256x128xf32>, vector<128x128xf32> -> vector<128x128xf32>
    %68 = tpu.concatenate %22, %37, %52, %67 in 1 : vector<128x128xf32>, vector<128x128xf32>, vector<128x128xf32>, vector<128x128xf32> -> vector<128x512xf32>
    %c0_24 = arith.constant 0 : index
    %c0_25 = arith.constant 0 : index
    %69 = vector.load %arg4[%c0_24, %c0_25] : memref<512x256xf32, #tpu.memory_space<vmem>>, vector<512x256xf32>
    %cst_26 = arith.constant dense<0.000000e+00> : vector<128x256xf32>
    %70 = tpu.matmul %68, %69, %cst_26 {dimension_numbers = #tpu.dot_dimension_numbers<[1], [0], [0], [1], [0, 0, 1, 1], [], []>} : vector<128x512xf32>, vector<512x256xf32>, vector<128x256xf32> -> vector<128x256xf32>
    %c0_27 = arith.constant 0 : index
    %c0_28 = arith.constant 0 : index
    %71 = vector.load %arg5[%c0_27, %c0_28] : memref<1x256xf32, #tpu.memory_space<vmem>>, vector<1x256xf32>
    %72 = vector.broadcast %71 : vector<1x256xf32> to vector<128x256xf32>
    %73 = arith.addf %70, %72 : vector<128x256xf32>
    %c0_29 = arith.constant 0 : index
    %c0_30 = arith.constant 0 : index
    %c0_31 = arith.constant 0 : index
    %74 = vector.load %arg6[%c0_29, %c0_30, %c0_31] : memref<1x128x256xf32, #tpu.memory_space<vmem>>, vector<1x128x256xf32>
    %75 = vector.shape_cast %74 : vector<1x128x256xf32> to vector<128x256xf32>
    %76 = vector.shape_cast %73 : vector<128x256xf32> to vector<1x128x256xf32>
    tpu.vector_store %arg6[%c0_29, %c0_30, %c0_31], %76 {strides = array<i32>} : memref<1x128x256xf32, #tpu.memory_space<vmem>>, vector<1x128x256xf32>,
    return
  }
  func.func @transform_0(%arg0: i32) -> (i32, i32, i32) {
    %c0_i32 = arith.constant 0 : i32
    %c0_i32_0 = arith.constant 0 : i32
    %c0_i32_1 = arith.constant 0 : i32
    return %arg0, %c0_i32, %c0_i32_0 : i32, i32, i32
  }
  func.func @transform_1(%arg0: i32) -> (i32, i32, i32) {
    %c0_i32 = arith.constant 0 : i32
    %c0_i32_0 = arith.constant 0 : i32
    %c0_i32_1 = arith.constant 0 : i32
    return %arg0, %c0_i32, %c0_i32_0 : i32, i32, i32
  }
  func.func @transform_2(%arg0: i32) -> (i32, i32, i32) {
    %c0_i32 = arith.constant 0 : i32
    %c0_i32_0 = arith.constant 0 : i32
    %c0_i32_1 = arith.constant 0 : i32
    return %arg0, %c0_i32, %c0_i32_0 : i32, i32, i32
  }
  func.func @transform_3(%arg0: i32) -> (i32, i32) {
    %c0_i32 = arith.constant 0 : i32
    %c0_i32_0 = arith.constant 0 : i32
    %c0_i32_1 = arith.constant 0 : i32
    return %c0_i32, %c0_i32_0 : i32, i32
  }
  func.func @transform_4(%arg0: i32) -> (i32, i32) {
    %c0_i32 = arith.constant 0 : i32
    %c0_i32_0 = arith.constant 0 : i32
    %c0_i32_1 = arith.constant 0 : i32
    return %c0_i32, %c0_i32_0 : i32, i32
  }
  func.func @transform_5(%arg0: i32) -> (i32, i32, i32) {
    %c0_i32 = arith.constant 0 : i32
    %c0_i32_0 = arith.constant 0 : i32
    %c0_i32_1 = arith.constant 0 : i32
    return %arg0, %c0_i32, %c0_i32_0 : i32, i32, i32
  }
}

</mosaic_0001>

<llo_original>
// kernel: tpu_custom_call.1
$region0: #{tpu_custom_call.1}
  #allocation0 [shape = 'u32[]', space=smem, size = 0x4, offset = 0x4, fixed_abs, tag = 'smem constant byte address 0x4 - core index']
  #allocation1 [shape = 'u32[144,128]{1,0:T(1,128)}', space=vmem, size = 0x12000, scoped, tag = 'internal scratch']
  %s0 = inlined_call_operand.hbm [shape: f32[2,128,512], index: 0, kind: input, shape index: {}]
  %s1 = inlined_call_operand.hbm [shape: f32[2,256,512], index: 1, kind: input, shape index: {}]
  %s2 = inlined_call_operand.hbm [shape: f32[2,256,512], index: 2, kind: input, shape index: {}]
  %s3 = inlined_call_operand.hbm [shape: f32[512,256], index: 3, kind: input, shape index: {}]
  %s4 = inlined_call_operand.vmem [shape: f32[1,256], index: 4, kind: input, shape index: {}]
  %s5 = inlined_call_operand.hbm [shape: f32[2,128,256], index: 5, kind: output, shape index: {}]
  %s6 = sld [smem:[#allocation0]]
  $region69: #{tpu_custom_call.1} parent=0
    _
  %s8 = ssub.s32 1, %s6
  %s9 = scalar_select 0, %s8, %s6
  $region1: #{tpu_custom_call.1} parent=0
    #allocation2 [shape = 'u8[524288]{0}', space=vmem, size = 0x80000, scoped, tag = 'input window, operand 0']
    #allocation3 [shape = 's32[2]{0}', space=sflag, size = 0x8, scoped, tag = 'scoped memory for tpu_custom_call.1']
    #allocation4 [shape = 's32[2]{0}', space=sflag, size = 0x8, scoped, tag = 'scoped memory for tpu_custom_call.1']
    #allocation5 [shape = 'u8[1048576]{0}', space=vmem, size = 0x100000, scoped, tag = 'input window, operand 1']
    #allocation6 [shape = 's32[2]{0}', space=sflag, size = 0x8, scoped, tag = 'scoped memory for tpu_custom_call.1']
    #allocation7 [shape = 'u8[1048576]{0}', space=vmem, size = 0x100000, scoped, tag = 'input window, operand 2']
    #allocation8 [shape = 'u8[524288]{0}', space=vmem, size = 0x80000, scoped, tag = 'input window, operand 3, single buffered']
    #allocation9 [shape = 's32[1]{0}', space=sflag, size = 0x4, scoped, tag = 'scoped memory for tpu_custom_call.1']
    #allocation10 [shape = 'u8[262144]{0}', space=vmem, size = 0x40000, scoped, tag = 'output window, operand 0']
    %10 = vsyncpa [#allocation3], 0
    %s11 = scalar_lea.sflag [#allocation3], 1
    %12 = vsyncpa %s11, 0
    %13 = vsyncpa [#allocation6], 0
    %s14 = scalar_lea.sflag [#allocation6], 1
    %15 = vsyncpa %s14, 0
    %16 = vsyncpa [#allocation9], 0
    %17 = vsyncpa [#allocation4], 0
    %s18 = scalar_lea.sflag [#allocation4], 1
    %19 = vsyncpa %s18, 0
    loop: start=0, step=1, limit=4
    $region2: #{tpu_custom_call.1} parent=1 // loop_pre_header
      _
    $region3: #{tpu_custom_call.1} parent=1 // loop_header
      %s21 = sphi 0, %s25
      %p22 = scmp.ge.s32.totalorder %s21, 4
      %s31 = sphi 0, %s33
      %s34 = sphi 0, %s31
      %s35 = sphi 0, %s34
      %s51 = sphi 0, %s35
      %s57 = sphi 0, %s59
      %s60 = sphi 0, %s57
      %s61 = sphi 0, %s60
      %s77 = sphi 0, %s61
      %s83 = sphi 0, %s85
      %s86 = sphi 0, %s83
      %s87 = sphi 0, %s86
      %s103 = sphi 0, %s87
      %s107 = sphi 0, %s107
      %s109 = sphi 0, %s107
      %s110 = sphi 0, %s109
      %s124 = sphi 0, %s110
      %s128 = sphi 0, %s128
      %s130 = sphi 0, %s128
      %s131 = sphi 0, %s130
      %s145 = sphi 0, %s131
      %s151 = sphi 0, %s153
      %s154 = sphi 0, %s151
      %s155 = sphi 0, %s154
      %s171 = sphi 0, %s155
    $region4: #{tpu_custom_call.1} parent=1 // loop_header_branch
      %24 = sbr.rel (%p22) target = $region8
    $region5: #{tpu_custom_call.1} parent=1 // loop_body
      %s26 = ssub.s32 %s21, 1
      %s27 = ssub.s32 %s21, 2
      %s28 = sadd.s32 %s21, 1
      %s29 = ssub.s32 %s21, %s28
      %p30 = scmp.eq.s32.totalorder %s29, 0
      %s32 = sadd.s32 %s31, 1
      %s33 = scalar_select %p30, %s31, %s32
      %p36 = pneg %p30
      %p37 = scmp.eq.s32.totalorder %s21, 1
      %p38 = por %p36, %p37
      %p39 = scmp.ne.s32.totalorder %s31, %s34
      %p40 = scmp.eq.s32.totalorder %s21, 0
      %p41 = por %p39, %p40
      %p42 = scmp.ne.s32.totalorder %s31, %s34
      %p43 = scmp.eq.s32.totalorder %s26, 1
      %p44 = por %p42, %p43
      %p45 = scmp.ne.s32.totalorder %s34, %s35
      %p46 = scmp.eq.s32.totalorder %s26, 0
      %p47 = por %p45, %p46
      %p48 = scmp.ne.s32.totalorder %s34, %s35
      %p49 = scmp.eq.s32.totalorder %s27, 1
      %p50 = por %p48, %p49
      %p52 = scmp.ne.s32.totalorder %s35, %s51
      %p53 = scmp.eq.s32.totalorder %s27, 0
      %p54 = por %p52, %p53
      %s55 = ssub.s32 %s21, %s28
      %p56 = scmp.eq.s32.totalorder %s55, 0
      %s58 = sadd.s32 %s57, 1
      %s59 = scalar_select %p56, %s57, %s58
      %p62 = pneg %p56
      %p63 = scmp.eq.s32.totalorder %s21, 1
      %p64 = por %p62, %p63
      %p65 = scmp.ne.s32.totalorder %s57, %s60
      %p66 = scmp.eq.s32.totalorder %s21, 0
      %p67 = por %p65, %p66
      %p68 = scmp.ne.s32.totalorder %s57, %s60
      %p69 = scmp.eq.s32.totalorder %s26, 1
      %p70 = por %p68, %p69
      %p71 = scmp.ne.s32.totalorder %s60, %s61
      %p72 = scmp.eq.s32.totalorder %s26, 0
      %p73 = por %p71, %p72
      %p74 = scmp.ne.s32.totalorder %s60, %s61
      %p75 = scmp.eq.s32.totalorder %s27, 1
      %p76 = por %p74, %p75
      %p78 = scmp.ne.s32.totalorder %s61, %s77
      %p79 = scmp.eq.s32.totalorder %s27, 0
      %p80 = por %p78, %p79
      %s81 = ssub.s32 %s21, %s28
      %p82 = scmp.eq.s32.totalorder %s81, 0
      %s84 = sadd.s32 %s83, 1
      %s85 = scalar_select %p82, %s83, %s84
      %p88 = pneg %p82
      %p89 = scmp.eq.s32.totalorder %s21, 1
      %p90 = por %p88, %p89
      %p91 = scmp.ne.s32.totalorder %s83, %s86
      %p92 = scmp.eq.s32.totalorder %s21, 0
      %p93 = por %p91, %p92
      %p94 = scmp.ne.s32.totalorder %s83, %s86
      %p95 = scmp.eq.s32.totalorder %s26, 1
      %p96 = por %p94, %p95
      %p97 = scmp.ne.s32.totalorder %s86, %s87
      %p98 = scmp.eq.s32.totalorder %s26, 0
      %p99 = por %p97, %p98
      %p100 = scmp.ne.s32.totalorder %s86, %s87
      %p101 = scmp.eq.s32.totalorder %s27, 1
      %p102 = por %p100, %p101
      %p104 = scmp.ne.s32.totalorder %s87, %s103
      %p105 = scmp.eq.s32.totalorder %s27, 0
      %p106 = por %p104, %p105
      %s108 = sadd.s32 %s107, 1
      %p111 = scmp.eq.s32.totalorder %s21, 1
      %p112 = scmp.ne.s32.totalorder %s107, %s109
      %p113 = scmp.eq.s32.totalorder %s21, 0
      %p114 = por %p112, %p113
      %p115 = scmp.ne.s32.totalorder %s107, %s109
      %p116 = scmp.eq.s32.totalorder %s26, 1
      %p117 = por %p115, %p116
      %p118 = scmp.ne.s32.totalorder %s109, %s110
      %p119 = scmp.eq.s32.totalorder %s26, 0
      %p120 = por %p118, %p119
      %p121 = scmp.ne.s32.totalorder %s109, %s110
      %p122 = scmp.eq.s32.totalorder %s27, 1
      %p123 = por %p121, %p122
      %p125 = scmp.ne.s32.totalorder %s110, %s124
      %p126 = scmp.eq.s32.totalorder %s27, 0
      %p127 = por %p125, %p126
      %s129 = sadd.s32 %s128, 1
      %p132 = scmp.eq.s32.totalorder %s21, 1
      %p133 = scmp.ne.s32.totalorder %s128, %s130
      %p134 = scmp.eq.s32.totalorder %s21, 0
      %p135 = por %p133, %p134
      %p136 = scmp.ne.s32.totalorder %s128, %s130
      %p137 = scmp.eq.s32.totalorder %s26, 1
      %p138 = por %p136, %p137
      %p139 = scmp.ne.s32.totalorder %s130, %s131
      %p140 = scmp.eq.s32.totalorder %s26, 0
      %p141 = por %p139, %p140
      %p142 = scmp.ne.s32.totalorder %s130, %s131
      %p143 = scmp.eq.s32.totalorder %s27, 1
      %p144 = por %p142, %p143
      %p146 = scmp.ne.s32.totalorder %s131, %s145
      %p147 = scmp.eq.s32.totalorder %s27, 0
      %p148 = por %p146, %p147
      %s149 = ssub.s32 %s21, %s28
      %p150 = scmp.eq.s32.totalorder %s149, 0
      %s152 = sadd.s32 %s151, 1
      %s153 = scalar_select %p150, %s151, %s152
      %p156 = pneg %p150
      %p157 = scmp.eq.s32.totalorder %s21, 1
      %p158 = por %p156, %p157
      %p159 = scmp.ne.s32.totalorder %s151, %s154
      %p160 = scmp.eq.s32.totalorder %s21, 0
      %p161 = por %p159, %p160
      %p162 = scmp.ne.s32.totalorder %s151, %s154
      %p163 = scmp.eq.s32.totalorder %s26, 1
      %p164 = por %p162, %p163
      %p165 = scmp.ne.s32.totalorder %s154, %s155
      %p166 = scmp.eq.s32.totalorder %s26, 0
      %p167 = por %p165, %p166
      %p168 = scmp.ne.s32.totalorder %s154, %s155
      %p169 = scmp.eq.s32.totalorder %s27, 1
      %p170 = por %p168, %p169
      %p172 = scmp.ne.s32.totalorder %s155, %s171
      %p173 = scmp.eq.s32.totalorder %s27, 0
      %p174 = por %p172, %p173
      %p175 = scmp.le.s32.totalorder 1, %s21
      %p176 = scmp.lt.s32.totalorder %s21, 3
      %p177 = pnand %p175, %p176
      %p178 = pneg %p177
      // Predicated region
      $region9: #{tpu_custom_call.1} parent=5 // pred_check
        _
      $region10: #{tpu_custom_call.1} parent=5 // pred_check_branch
        %180 = sbr.rel (%p177) target = $region12
      $region11: #{tpu_custom_call.1} parent=5 // pred_region
        %s181 = ssub.s32 %s21, 1
        // Predicated region
        $region13: #{tpu_custom_call.1} parent=11 // pred_check
          %p182 = pneg %p120
        $region14: #{tpu_custom_call.1} parent=11 // pred_check_branch
          %184 = sbr.rel (%p182) target = $region16
        $region15: #{tpu_custom_call.1} parent=11 // pred_region
          %s186 = ssub.s32 16384, 16384
          %187 = vsyncadd [#allocation9], %s186
          %s188 = sshll.u32 [#allocation8], 4
          %s189 = int_to_ptr.vmem [resolvable:$true] %s188
          %194 = dma.hbm_to_vmem [thread:$0]  %s3, 16384, %s189, [#allocation9], 256, 256, 16
        $region16: #{tpu_custom_call.1} parent=11 // pred_fallthru
          _
        // Predicated region
        $region17: #{tpu_custom_call.1} parent=11 // pred_check
          %p195 = pneg %p141
        $region18: #{tpu_custom_call.1} parent=11 // pred_check_branch
          %197 = sbr.rel (%p195) target = $region20
        $region19: #{tpu_custom_call.1} parent=11 // pred_region
          _
        $region20: #{tpu_custom_call.1} parent=11 // pred_fallthru
          _
      $region12: #{tpu_custom_call.1} parent=5 // pred_fallthru
        _
      %p198 = scmp.lt.s32.totalorder %s21, 2
      // Predicated region
      $region21: #{tpu_custom_call.1} parent=5 // pred_check
        %p199 = pneg %p198
      $region22: #{tpu_custom_call.1} parent=5 // pred_check_branch
        %201 = sbr.rel (%p199) target = $region24
      $region23: #{tpu_custom_call.1} parent=5 // pred_region
        // Predicated region
        $region25: #{tpu_custom_call.1} parent=23 // pred_check
          %p202 = pneg %p41
        $region26: #{tpu_custom_call.1} parent=23 // pred_check_branch
          %204 = sbr.rel (%p202) target = $region28
        $region27: #{tpu_custom_call.1} parent=23 // pred_region
          %s205 = sand.u32 %s31, 1
          %s206 = scalar_lea.sflag [#allocation3], %s205
          %s207 = sand.u32 %s31, 1
          %s208 = smul.addr %s207, 512
          %s209 = scalar_lea.vmem [#allocation2], %s208
          %s211 = ssub.s32 8192, 8192
          %212 = vsyncadd %s206, %s211
          %s213 = smul.addr %s21, 64
          %s214 = smul.addr %s213, 128
          %s215 = scalar_lea.hbm %s0, %s214
          %s216 = sshll.u32 %s209, 4
          %s217 = int_to_ptr.vmem [resolvable:$true] %s216
          %222 = dma.hbm_to_vmem [thread:$0]  %s215, 8192, %s217, %s206, 512, 512, 32
        $region28: #{tpu_custom_call.1} parent=23 // pred_fallthru
          _
        // Predicated region
        $region29: #{tpu_custom_call.1} parent=23 // pred_check
          %p223 = pneg %p67
        $region30: #{tpu_custom_call.1} parent=23 // pred_check_branch
          %225 = sbr.rel (%p223) target = $region32
        $region31: #{tpu_custom_call.1} parent=23 // pred_region
          %s226 = sand.u32 %s21, 1
          %s227 = scalar_lea.sflag [#allocation6], %s226
          %s228 = sand.u32 %s57, 1
          %s229 = smul.addr %s228, 1024
          %s230 = scalar_lea.vmem [#allocation5], %s229
          %s232 = ssub.s32 16384, 16384
          %233 = vsyncadd %s227, %s232
          %s234 = smul.addr %s21, 128
          %s235 = smul.addr %s234, 128
          %s236 = scalar_lea.hbm %s1, %s235
          %s237 = sshll.u32 %s230, 4
          %s238 = int_to_ptr.vmem [resolvable:$true] %s237
          %243 = dma.hbm_to_vmem [thread:$0]  %s236, 16384, %s238, %s227, 512, 512, 32
        $region32: #{tpu_custom_call.1} parent=23 // pred_fallthru
          _
        // Predicated region
        $region33: #{tpu_custom_call.1} parent=23 // pred_check
          %p244 = pneg %p93
        $region34: #{tpu_custom_call.1} parent=23 // pred_check_branch
          %246 = sbr.rel (%p244) target = $region36
        $region35: #{tpu_custom_call.1} parent=23 // pred_region
          %s247 = sand.u32 %s21, 1
          %s248 = scalar_lea.sflag [#allocation6], %s247
          %s249 = sand.u32 %s83, 1
          %s250 = smul.addr %s249, 1024
          %s251 = scalar_lea.vmem [#allocation7], %s250
          %s253 = ssub.s32 16384, 16384
          %254 = vsyncadd %s248, %s253
          %s255 = smul.addr %s21, 128
          %s256 = smul.addr %s255, 128
          %s257 = scalar_lea.hbm %s2, %s256
          %s258 = sshll.u32 %s251, 4
          %s259 = int_to_ptr.vmem [resolvable:$true] %s258
          %264 = dma.hbm_to_vmem [thread:$0]  %s257, 16384, %s259, %s248, 512, 512, 32
        $region36: #{tpu_custom_call.1} parent=23 // pred_fallthru
          _
      $region24: #{tpu_custom_call.1} parent=5 // pred_fallthru
        _
      %p265 = scmp.le.s32.totalorder 1, %s21
      %p266 = scmp.lt.s32.totalorder %s21, 3
      %p267 = pnand %p265, %p266
      %p268 = pneg %p267
      // Predicated region
      $region37: #{tpu_custom_call.1} parent=5 // pred_check
        _
      $region38: #{tpu_custom_call.1} parent=5 // pred_check_branch
        %270 = sbr.rel (%p267) target = $region40
      $region39: #{tpu_custom_call.1} parent=5 // pred_region
        %s271 = ssub.s32 %s21, 1
        %s272 = sand.u32 %s34, 1
        %s273 = scalar_lea.sflag [#allocation3], %s272
        %s274 = sand.u32 %s34, 1
        %s275 = smul.addr %s274, 512
        %s276 = scalar_lea.vmem [#allocation2], %s275
        // Predicated region
        $region41: #{tpu_custom_call.1} parent=39 // pred_check
          %p277 = pneg %p47
        $region42: #{tpu_custom_call.1} parent=39 // pred_check_branch
          %279 = sbr.rel (%p277) target = $region44
        $region43: #{tpu_custom_call.1} parent=39 // pred_region
          %280 = dma.done %s273, 8192
        $region44: #{tpu_custom_call.1} parent=39 // pred_fallthru
          _
        %s281 = sand.u32 %s26, 1
        %s282 = scalar_lea.sflag [#allocation6], %s281
        %s283 = sand.u32 %s60, 1
        %s284 = smul.addr %s283, 1024
        %s285 = scalar_lea.vmem [#allocation5], %s284
        // Predicated region
        $region45: #{tpu_custom_call.1} parent=39 // pred_check
          %p286 = pneg %p73
        $region46: #{tpu_custom_call.1} parent=39 // pred_check_branch
          %288 = sbr.rel (%p286) target = $region48
        $region47: #{tpu_custom_call.1} parent=39 // pred_region
          %289 = dma.done %s282, 16384
        $region48: #{tpu_custom_call.1} parent=39 // pred_fallthru
          _
        %s290 = sand.u32 %s26, 1
        %s291 = scalar_lea.sflag [#allocation6], %s290
        %s292 = sand.u32 %s86, 1
        %s293 = smul.addr %s292, 1024
        %s294 = scalar_lea.vmem [#allocation7], %s293
        // Predicated region
        $region49: #{tpu_custom_call.1} parent=39 // pred_check
          %p295 = pneg %p99
        $region50: #{tpu_custom_call.1} parent=39 // pred_check_branch
          %297 = sbr.rel (%p295) target = $region52
        $region51: #{tpu_custom_call.1} parent=39 // pred_region
          %298 = dma.done %s291, 16384
        $region52: #{tpu_custom_call.1} parent=39 // pred_fallthru
          _
        // Predicated region
        $region53: #{tpu_custom_call.1} parent=39 // pred_check
          %p299 = pneg %p120
        $region54: #{tpu_custom_call.1} parent=39 // pred_check_branch
          %301 = sbr.rel (%p299) target = $region56
        $region55: #{tpu_custom_call.1} parent=39 // pred_region
          %302 = dma.done [#allocation9], 16384
        $region56: #{tpu_custom_call.1} parent=39 // pred_fallthru
          _
        %s303 = sand.u32 %s34, 1
        %s304 = scalar_lea.sflag [#allocation3], %s303
        %s305 = sand.u32 %s34, 1
        %s306 = smul.addr %s305, 512
        %s307 = scalar_lea.vmem [#allocation2], %s306
        %p308 = pneg %p47
        %p309 = pneg %p44
        %s310 = sand.u32 %s26, 1
        %s311 = scalar_lea.sflag [#allocation6], %s310
        %s312 = sand.u32 %s60, 1
        %s313 = smul.addr %s312, 1024
        %s314 = scalar_lea.vmem [#allocation5], %s313
        %p315 = pneg %p73
        %p316 = pneg %p70
        %s317 = sand.u32 %s26, 1
        %s318 = scalar_lea.sflag [#allocation6], %s317
        %s319 = sand.u32 %s86, 1
        %s320 = smul.addr %s319, 1024
        %s321 = scalar_lea.vmem [#allocation7], %s320
        %p322 = pneg %p99
        %p323 = pneg %p96
        %p324 = pneg %p120
        %p325 = pneg %p117
        %p326 = pneg %p141
        %p327 = pneg %p138
        %p328 = pneg %p167
        %p329 = pneg %p164
        %s330 = sand.u32 %s154, 1
        %s331 = scalar_lea.sflag [#allocation4], %s330
        %s332 = sand.u32 %s154, 1
        %s333 = smul.addr %s332, 256
        %s334 = scalar_lea.vmem [#allocation10], %s333
        %v335 = vld [vmem:[%s276] sm:$0xff]
        %v336 = vld [vmem:[%s276 + $0x8] sm:$0xff]
        %v337 = vld [vmem:[%s276 + $0x10] sm:$0xff]
        %v338 = vld [vmem:[%s276 + $0x18] sm:$0xff]
        %v339 = vld [vmem:[%s276 + $0x20] sm:$0xff]
        %v340 = vld [vmem:[%s276 + $0x28] sm:$0xff]
        %v341 = vld [vmem:[%s276 + $0x30] sm:$0xff]
        %v342 = vld [vmem:[%s276 + $0x38] sm:$0xff]
        %v343 = vld [vmem:[%s276 + $0x40] sm:$0xff]
        %v344 = vld [vmem:[%s276 + $0x48] sm:$0xff]
        %v345 = vld [vmem:[%s276 + $0x50] sm:$0xff]
        %v346 = vld [vmem:[%s276 + $0x58] sm:$0xff]
        %v347 = vld [vmem:[%s276 + $0x60] sm:$0xff]
        %v348 = vld [vmem:[%s276 + $0x68] sm:$0xff]
        %v349 = vld [vmem:[%s276 + $0x70] sm:$0xff]
        %v350 = vld [vmem:[%s276 + $0x78] sm:$0xff]
        %v351 = vld [vmem:[%s276 + $0x80] sm:$0xff]
        %v352 = vld [vmem:[%s276 + $0x88] sm:$0xff]
        %v353 = vld [vmem:[%s276 + $0x90] sm:$0xff]
        %v354 = vld [vmem:[%s276 + $0x98] sm:$0xff]
        %v355 = vld [vmem:[%s276 + $0xa0] sm:$0xff]
        %v356 = vld [vmem:[%s276 + $0xa8] sm:$0xff]
        %v357 = vld [vmem:[%s276 + $0xb0] sm:$0xff]
        %v358 = vld [vmem:[%s276 + $0xb8] sm:$0xff]
        %v359 = vld [vmem:[%s276 + $0xc0] sm:$0xff]
        %v360 = vld [vmem:[%s276 + $0xc8] sm:$0xff]
        %v361 = vld [vmem:[%s276 + $0xd0] sm:$0xff]
        %v362 = vld [vmem:[%s276 + $0xd8] sm:$0xff]
        %v363 = vld [vmem:[%s276 + $0xe0] sm:$0xff]
        %v364 = vld [vmem:[%s276 + $0xe8] sm:$0xff]
        %v365 = vld [vmem:[%s276 + $0xf0] sm:$0xff]
        %v366 = vld [vmem:[%s276 + $0xf8] sm:$0xff]
        %v367 = vld [vmem:[%s276 + $0x100] sm:$0xff]
        %v368 = vld [vmem:[%s276 + $0x108] sm:$0xff]
        %v369 = vld [vmem:[%s276 + $0x110] sm:$0xff]
        %v370 = vld [vmem:[%s276 + $0x118] sm:$0xff]
        %v371 = vld [vmem:[%s276 + $0x120] sm:$0xff]
        %v372 = vld [vmem:[%s276 + $0x128] sm:$0xff]
        %v373 = vld [vmem:[%s276 + $0x130] sm:$0xff]
        %v374 = vld [vmem:[%s276 + $0x138] sm:$0xff]
        %v375 = vld [vmem:[%s276 + $0x140] sm:$0xff]
        %v376 = vld [vmem:[%s276 + $0x148] sm:$0xff]
        %v377 = vld [vmem:[%s276 + $0x150] sm:$0xff]
        %v378 = vld [vmem:[%s276 + $0x158] sm:$0xff]
        %v379 = vld [vmem:[%s276 + $0x160] sm:$0xff]
        %v380 = vld [vmem:[%s276 + $0x168] sm:$0xff]
        %v381 = vld [vmem:[%s276 + $0x170] sm:$0xff]
        %v382 = vld [vmem:[%s276 + $0x178] sm:$0xff]
        %v383 = vld [vmem:[%s276 + $0x180] sm:$0xff]
        %v384 = vld [vmem:[%s276 + $0x188] sm:$0xff]
        %v385 = vld [vmem:[%s276 + $0x190] sm:$0xff]
        %v386 = vld [vmem:[%s276 + $0x198] sm:$0xff]
        %v387 = vld [vmem:[%s276 + $0x1a0] sm:$0xff]
        %v388 = vld [vmem:[%s276 + $0x1a8] sm:$0xff]
        %v389 = vld [vmem:[%s276 + $0x1b0] sm:$0xff]
        %v390 = vld [vmem:[%s276 + $0x1b8] sm:$0xff]
        %v391 = vld [vmem:[%s276 + $0x1c0] sm:$0xff]
        %v392 = vld [vmem:[%s276 + $0x1c8] sm:$0xff]
        %v393 = vld [vmem:[%s276 + $0x1d0] sm:$0xff]
        %v394 = vld [vmem:[%s276 + $0x1d8] sm:$0xff]
        %v395 = vld [vmem:[%s276 + $0x1e0] sm:$0xff]
        %v396 = vld [vmem:[%s276 + $0x1e8] sm:$0xff]
        %v397 = vld [vmem:[%s276 + $0x1f0] sm:$0xff]
        %v398 = vld [vmem:[%s276 + $0x1f8] sm:$0xff]
        %v399 = vmul.f32 %v335, 0.088388346
        %v400 = vmul.f32 %v336, 0.088388346
        %v401 = vmul.f32 %v337, 0.088388346
        %v402 = vmul.f32 %v338, 0.088388346
        %v403 = vmul.f32 %v339, 0.088388346
        %v404 = vmul.f32 %v340, 0.088388346
        %v405 = vmul.f32 %v341, 0.088388346
        %v406 = vmul.f32 %v342, 0.088388346
        %v407 = vmul.f32 %v343, 0.088388346
        %v408 = vmul.f32 %v344, 0.088388346
        %v409 = vmul.f32 %v345, 0.088388346
        %v410 = vmul.f32 %v346, 0.088388346
        %v411 = vmul.f32 %v347, 0.088388346
        %v412 = vmul.f32 %v348, 0.088388346
        %v413 = vmul.f32 %v349, 0.088388346
        %v414 = vmul.f32 %v350, 0.088388346
        %v415 = vmul.f32 %v351, 0.088388346
        %v416 = vmul.f32 %v352, 0.088388346
        %v417 = vmul.f32 %v353, 0.088388346
        %v418 = vmul.f32 %v354, 0.088388346
        %v419 = vmul.f32 %v355, 0.088388346
        %v420 = vmul.f32 %v356, 0.088388346
        %v421 = vmul.f32 %v357, 0.088388346
        %v422 = vmul.f32 %v358, 0.088388346
        %v423 = vmul.f32 %v359, 0.088388346
        %v424 = vmul.f32 %v360, 0.088388346
        %v425 = vmul.f32 %v361, 0.088388346
        %v426 = vmul.f32 %v362, 0.088388346
        %v427 = vmul.f32 %v363, 0.088388346
        %v428 = vmul.f32 %v364, 0.088388346
        %v429 = vmul.f32 %v365, 0.088388346
        %v430 = vmul.f32 %v366, 0.088388346
        %v431 = vmul.f32 %v367, 0.088388346
        %v432 = vmul.f32 %v368, 0.088388346
        %v433 = vmul.f32 %v369, 0.088388346
        %v434 = vmul.f32 %v370, 0.088388346
        %v435 = vmul.f32 %v371, 0.088388346
        %v436 = vmul.f32 %v372, 0.088388346
        %v437 = vmul.f32 %v373, 0.088388346
        %v438 = vmul.f32 %v374, 0.088388346
        %v439 = vmul.f32 %v375, 0.088388346
        %v440 = vmul.f32 %v376, 0.088388346
        %v441 = vmul.f32 %v377, 0.088388346
        %v442 = vmul.f32 %v378, 0.088388346
        %v443 = vmul.f32 %v379, 0.088388346
        %v444 = vmul.f32 %v380, 0.088388346
        %v445 = vmul.f32 %v381, 0.088388346
        %v446 = vmul.f32 %v382, 0.088388346
        %v447 = vmul.f32 %v383, 0.088388346
        %v448 = vmul.f32 %v384, 0.088388346
        %v449 = vmul.f32 %v385, 0.088388346
        %v450 = vmul.f32 %v386, 0.088388346
        %v451 = vmul.f32 %v387, 0.088388346
        %v452 = vmul.f32 %v388, 0.088388346
        %v453 = vmul.f32 %v389, 0.088388346
        %v454 = vmul.f32 %v390, 0.088388346
        %v455 = vmul.f32 %v391, 0.088388346
        %v456 = vmul.f32 %v392, 0.088388346
        %v457 = vmul.f32 %v393, 0.088388346
        %v458 = vmul.f32 %v394, 0.088388346
        %v459 = vmul.f32 %v395, 0.088388346
        %v460 = vmul.f32 %v396, 0.088388346
        %v461 = vmul.f32 %v397, 0.088388346
        %v462 = vmul.f32 %v398, 0.088388346
        %v463 = vld [vmem:[%s285] sm:$0xff]
        %v464 = vld [vmem:[%s285 + $0x8] sm:$0xff]
        %v465 = vld [vmem:[%s285 + $0x10] sm:$0xff]
        %v466 = vld [vmem:[%s285 + $0x18] sm:$0xff]
        %v467 = vld [vmem:[%s285 + $0x20] sm:$0xff]
        %v468 = vld [vmem:[%s285 + $0x28] sm:$0xff]
        %v469 = vld [vmem:[%s285 + $0x30] sm:$0xff]
        %v470 = vld [vmem:[%s285 + $0x38] sm:$0xff]
        %v471 = vld [vmem:[%s285 + $0x40] sm:$0xff]
        %v472 = vld [vmem:[%s285 + $0x48] sm:$0xff]
        %v473 = vld [vmem:[%s285 + $0x50] sm:$0xff]
        %v474 = vld [vmem:[%s285 + $0x58] sm:$0xff]
        %v475 = vld [vmem:[%s285 + $0x60] sm:$0xff]
        %v476 = vld [vmem:[%s285 + $0x68] sm:$0xff]
        %v477 = vld [vmem:[%s285 + $0x70] sm:$0xff]
        %v478 = vld [vmem:[%s285 + $0x78] sm:$0xff]
        %v479 = vld [vmem:[%s285 + $0x80] sm:$0xff]
        %v480 = vld [vmem:[%s285 + $0x88] sm:$0xff]
        %v481 = vld [vmem:[%s285 + $0x90] sm:$0xff]
        %v482 = vld [vmem:[%s285 + $0x98] sm:$0xff]
        %v483 = vld [vmem:[%s285 + $0xa0] sm:$0xff]
        %v484 = vld [vmem:[%s285 + $0xa8] sm:$0xff]
        %v485 = vld [vmem:[%s285 + $0xb0] sm:$0xff]
        %v486 = vld [vmem:[%s285 + $0xb8] sm:$0xff]
        %v487 = vld [vmem:[%s285 + $0xc0] sm:$0xff]
        %v488 = vld [vmem:[%s285 + $0xc8] sm:$0xff]
        %v489 = vld [vmem:[%s285 + $0xd0] sm:$0xff]
        %v490 = vld [vmem:[%s285 + $0xd8] sm:$0xff]
        %v491 = vld [vmem:[%s285 + $0xe0] sm:$0xff]
        %v492 = vld [vmem:[%s285 + $0xe8] sm:$0xff]
        %v493 = vld [vmem:[%s285 + $0xf0] sm:$0xff]
        %v494 = vld [vmem:[%s285 + $0xf8] sm:$0xff]
        %v495 = vld [vmem:[%s285 + $0x100] sm:$0xff]
        %v496 = vld [vmem:[%s285 + $0x108] sm:$0xff]
        %v497 = vld [vmem:[%s285 + $0x110] sm:$0xff]
        %v498 = vld [vmem:[%s285 + $0x118] sm:$0xff]
        %v499 = vld [vmem:[%s285 + $0x120] sm:$0xff]
        %v500 = vld [vmem:[%s285 + $0x128] sm:$0xff]
        %v501 = vld [vmem:[%s285 + $0x130] sm:$0xff]
        %v502 = vld [vmem:[%s285 + $0x138] sm:$0xff]
        %v503 = vld [vmem:[%s285 + $0x140] sm:$0xff]
        %v504 = vld [vmem:[%s285 + $0x148] sm:$0xff]
        %v505 = vld [vmem:[%s285 + $0x150] sm:$0xff]
        %v506 = vld [vmem:[%s285 + $0x158] sm:$0xff]
        %v507 = vld [vmem:[%s285 + $0x160] sm:$0xff]
        %v508 = vld [vmem:[%s285 + $0x168] sm:$0xff]
        %v509 = vld [vmem:[%s285 + $0x170] sm:$0xff]
        %v510 = vld [vmem:[%s285 + $0x178] sm:$0xff]
        %v511 = vld [vmem:[%s285 + $0x180] sm:$0xff]
        %v512 = vld [vmem:[%s285 + $0x188] sm:$0xff]
        %v513 = vld [vmem:[%s285 + $0x190] sm:$0xff]
        %v514 = vld [vmem:[%s285 + $0x198] sm:$0xff]
        %v515 = vld [vmem:[%s285 + $0x1a0] sm:$0xff]
        %v516 = vld [vmem:[%s285 + $0x1a8] sm:$0xff]
        %v517 = vld [vmem:[%s285 + $0x1b0] sm:$0xff]
        %v518 = vld [vmem:[%s285 + $0x1b8] sm:$0xff]
        %v519 = vld [vmem:[%s285 + $0x1c0] sm:$0xff]
        %v520 = vld [vmem:[%s285 + $0x1c8] sm:$0xff]
        %v521 = vld [vmem:[%s285 + $0x1d0] sm:$0xff]
        %v522 = vld [vmem:[%s285 + $0x1d8] sm:$0xff]
        %v523 = vld [vmem:[%s285 + $0x1e0] sm:$0xff]
        %v524 = vld [vmem:[%s285 + $0x1e8] sm:$0xff]
        %v525 = vld [vmem:[%s285 + $0x1f0] sm:$0xff]
        %v526 = vld [vmem:[%s285 + $0x1f8] sm:$0xff]
        %v527 = vld [vmem:[%s285 + $0x200] sm:$0xff]
        %v528 = vld [vmem:[%s285 + $0x208] sm:$0xff]
        %v529 = vld [vmem:[%s285 + $0x210] sm:$0xff]
        %v530 = vld [vmem:[%s285 + $0x218] sm:$0xff]
        %v531 = vld [vmem:[%s285 + $0x220] sm:$0xff]
        %v532 = vld [vmem:[%s285 + $0x228] sm:$0xff]
        %v533 = vld [vmem:[%s285 + $0x230] sm:$0xff]
        %v534 = vld [vmem:[%s285 + $0x238] sm:$0xff]
        %v535 = vld [vmem:[%s285 + $0x240] sm:$0xff]
        %v536 = vld [vmem:[%s285 + $0x248] sm:$0xff]
        %v537 = vld [vmem:[%s285 + $0x250] sm:$0xff]
        %v538 = vld [vmem:[%s285 + $0x258] sm:$0xff]
        %v539 = vld [vmem:[%s285 + $0x260] sm:$0xff]
        %v540 = vld [vmem:[%s285 + $0x268] sm:$0xff]
        %v541 = vld [vmem:[%s285 + $0x270] sm:$0xff]
        %v542 = vld [vmem:[%s285 + $0x278] sm:$0xff]
        %v543 = vld [vmem:[%s285 + $0x280] sm:$0xff]
        %v544 = vld [vmem:[%s285 + $0x288] sm:$0xff]
        %v545 = vld [vmem:[%s285 + $0x290] sm:$0xff]
        %v546 = vld [vmem:[%s285 + $0x298] sm:$0xff]
        %v547 = vld [vmem:[%s285 + $0x2a0] sm:$0xff]
        %v548 = vld [vmem:[%s285 + $0x2a8] sm:$0xff]
        %v549 = vld [vmem:[%s285 + $0x2b0] sm:$0xff]
        %v550 = vld [vmem:[%s285 + $0x2b8] sm:$0xff]
        %v551 = vld [vmem:[%s285 + $0x2c0] sm:$0xff]
        %v552 = vld [vmem:[%s285 + $0x2c8] sm:$0xff]
        %v553 = vld [vmem:[%s285 + $0x2d0] sm:$0xff]
        %v554 = vld [vmem:[%s285 + $0x2d8] sm:$0xff]
        %v555 = vld [vmem:[%s285 + $0x2e0] sm:$0xff]
        %v556 = vld [vmem:[%s285 + $0x2e8] sm:$0xff]
        %v557 = vld [vmem:[%s285 + $0x2f0] sm:$0xff]
        %v558 = vld [vmem:[%s285 + $0x2f8] sm:$0xff]
        %v559 = vld [vmem:[%s285 + $0x300] sm:$0xff]
        %v560 = vld [vmem:[%s285 + $0x308] sm:$0xff]
        %v561 = vld [vmem:[%s285 + $0x310] sm:$0xff]
        %v562 = vld [vmem:[%s285 + $0x318] sm:$0xff]
        %v563 = vld [vmem:[%s285 + $0x320] sm:$0xff]
        %v564 = vld [vmem:[%s285 + $0x328] sm:$0xff]
        %v565 = vld [vmem:[%s285 + $0x330] sm:$0xff]
        %v566 = vld [vmem:[%s285 + $0x338] sm:$0xff]
        %v567 = vld [vmem:[%s285 + $0x340] sm:$0xff]
        %v568 = vld [vmem:[%s285 + $0x348] sm:$0xff]
        %v569 = vld [vmem:[%s285 + $0x350] sm:$0xff]
        %v570 = vld [vmem:[%s285 + $0x358] sm:$0xff]
        %v571 = vld [vmem:[%s285 + $0x360] sm:$0xff]
        %v572 = vld [vmem:[%s285 + $0x368] sm:$0xff]
        %v573 = vld [vmem:[%s285 + $0x370] sm:$0xff]
        %v574 = vld [vmem:[%s285 + $0x378] sm:$0xff]
        %v575 = vld [vmem:[%s285 + $0x380] sm:$0xff]
        %v576 = vld [vmem:[%s285 + $0x388] sm:$0xff]
        %v577 = vld [vmem:[%s285 + $0x390] sm:$0xff]
        %v578 = vld [vmem:[%s285 + $0x398] sm:$0xff]
        %v579 = vld [vmem:[%s285 + $0x3a0] sm:$0xff]
        %v580 = vld [vmem:[%s285 + $0x3a8] sm:$0xff]
        %v581 = vld [vmem:[%s285 + $0x3b0] sm:$0xff]
        %v582 = vld [vmem:[%s285 + $0x3b8] sm:$0xff]
        %v583 = vld [vmem:[%s285 + $0x3c0] sm:$0xff]
        %v584 = vld [vmem:[%s285 + $0x3c8] sm:$0xff]
        %v585 = vld [vmem:[%s285 + $0x3d0] sm:$0xff]
        %v586 = vld [vmem:[%s285 + $0x3d8] sm:$0xff]
        %v587 = vld [vmem:[%s285 + $0x3e0] sm:$0xff]
        %v588 = vld [vmem:[%s285 + $0x3e8] sm:$0xff]
        %v589 = vld [vmem:[%s285 + $0x3f0] sm:$0xff]
        %v590 = vld [vmem:[%s285 + $0x3f8] sm:$0xff]
        %v591 = vld [vmem:[%s294] sm:$0xff]
        %v592 = vld [vmem:[%s294 + $0x8] sm:$0xff]
        %v593 = vld [vmem:[%s294 + $0x10] sm:$0xff]
        %v594 = vld [vmem:[%s294 + $0x18] sm:$0xff]
        %v595 = vld [vmem:[%s294 + $0x20] sm:$0xff]
        %v596 = vld [vmem:[%s294 + $0x28] sm:$0xff]
        %v597 = vld [vmem:[%s294 + $0x30] sm:$0xff]
        %v598 = vld [vmem:[%s294 + $0x38] sm:$0xff]
        %v599 = vld [vmem:[%s294 + $0x40] sm:$0xff]
        %v600 = vld [vmem:[%s294 + $0x48] sm:$0xff]
        %v601 = vld [vmem:[%s294 + $0x50] sm:$0xff]
        %v602 = vld [vmem:[%s294 + $0x58] sm:$0xff]
        %v603 = vld [vmem:[%s294 + $0x60] sm:$0xff]
        %v604 = vld [vmem:[%s294 + $0x68] sm:$0xff]
        %v605 = vld [vmem:[%s294 + $0x70] sm:$0xff]
        %v606 = vld [vmem:[%s294 + $0x78] sm:$0xff]
        %v607 = vld [vmem:[%s294 + $0x80] sm:$0xff]
        %v608 = vld [vmem:[%s294 + $0x88] sm:$0xff]
        %v609 = vld [vmem:[%s294 + $0x90] sm:$0xff]
        %v610 = vld [vmem:[%s294 + $0x98] sm:$0xff]
        %v611 = vld [vmem:[%s294 + $0xa0] sm:$0xff]
        %v612 = vld [vmem:[%s294 + $0xa8] sm:$0xff]
        %v613 = vld [vmem:[%s294 + $0xb0] sm:$0xff]
        %v614 = vld [vmem:[%s294 + $0xb8] sm:$0xff]
        %v615 = vld [vmem:[%s294 + $0xc0] sm:$0xff]
        %v616 = vld [vmem:[%s294 + $0xc8] sm:$0xff]
        %v617 = vld [vmem:[%s294 + $0xd0] sm:$0xff]
        %v618 = vld [vmem:[%s294 + $0xd8] sm:$0xff]
        %v619 = vld [vmem:[%s294 + $0xe0] sm:$0xff]
        %v620 = vld [vmem:[%s294 + $0xe8] sm:$0xff]
        %v621 = vld [vmem:[%s294 + $0xf0] sm:$0xff]
        %v622 = vld [vmem:[%s294 + $0xf8] sm:$0xff]
        %v623 = vld [vmem:[%s294 + $0x100] sm:$0xff]
        %v624 = vld [vmem:[%s294 + $0x108] sm:$0xff]
        %v625 = vld [vmem:[%s294 + $0x110] sm:$0xff]
        %v626 = vld [vmem:[%s294 + $0x118] sm:$0xff]
        %v627 = vld [vmem:[%s294 + $0x120] sm:$0xff]
        %v628 = vld [vmem:[%s294 + $0x128] sm:$0xff]
        %v629 = vld [vmem:[%s294 + $0x130] sm:$0xff]
        %v630 = vld [vmem:[%s294 + $0x138] sm:$0xff]
        %v631 = vld [vmem:[%s294 + $0x140] sm:$0xff]
        %v632 = vld [vmem:[%s294 + $0x148] sm:$0xff]
        %v633 = vld [vmem:[%s294 + $0x150] sm:$0xff]
        %v634 = vld [vmem:[%s294 + $0x158] sm:$0xff]
        %v635 = vld [vmem:[%s294 + $0x160] sm:$0xff]
        %v636 = vld [vmem:[%s294 + $0x168] sm:$0xff]
        %v637 = vld [vmem:[%s294 + $0x170] sm:$0xff]
        %v638 = vld [vmem:[%s294 + $0x178] sm:$0xff]
        %v639 = vld [vmem:[%s294 + $0x180] sm:$0xff]
        %v640 = vld [vmem:[%s294 + $0x188] sm:$0xff]
        %v641 = vld [vmem:[%s294 + $0x190] sm:$0xff]
        %v642 = vld [vmem:[%s294 + $0x198] sm:$0xff]
        %v643 = vld [vmem:[%s294 + $0x1a0] sm:$0xff]
        %v644 = vld [vmem:[%s294 + $0x1a8] sm:$0xff]
        %v645 = vld [vmem:[%s294 + $0x1b0] sm:$0xff]
        %v646 = vld [vmem:[%s294 + $0x1b8] sm:$0xff]
        %v647 = vld [vmem:[%s294 + $0x1c0] sm:$0xff]
        %v648 = vld [vmem:[%s294 + $0x1c8] sm:$0xff]
        %v649 = vld [vmem:[%s294 + $0x1d0] sm:$0xff]
        %v650 = vld [vmem:[%s294 + $0x1d8] sm:$0xff]
        %v651 = vld [vmem:[%s294 + $0x1e0] sm:$0xff]
        %v652 = vld [vmem:[%s294 + $0x1e8] sm:$0xff]
        %v653 = vld [vmem:[%s294 + $0x1f0] sm:$0xff]
        %v654 = vld [vmem:[%s294 + $0x1f8] sm:$0xff]
        %v655 = vld [vmem:[%s294 + $0x200] sm:$0xff]
        %v656 = vld [vmem:[%s294 + $0x208] sm:$0xff]
        %v657 = vld [vmem:[%s294 + $0x210] sm:$0xff]
        %v658 = vld [vmem:[%s294 + $0x218] sm:$0xff]
        %v659 = vld [vmem:[%s294 + $0x220] sm:$0xff]
        %v660 = vld [vmem:[%s294 + $0x228] sm:$0xff]
        %v661 = vld [vmem:[%s294 + $0x230] sm:$0xff]
        %v662 = vld [vmem:[%s294 + $0x238] sm:$0xff]
        %v663 = vld [vmem:[%s294 + $0x240] sm:$0xff]
        %v664 = vld [vmem:[%s294 + $0x248] sm:$0xff]
        %v665 = vld [vmem:[%s294 + $0x250] sm:$0xff]
        %v666 = vld [vmem:[%s294 + $0x258] sm:$0xff]
        %v667 = vld [vmem:[%s294 + $0x260] sm:$0xff]
        %v668 = vld [vmem:[%s294 + $0x268] sm:$0xff]
        %v669 = vld [vmem:[%s294 + $0x270] sm:$0xff]
        %v670 = vld [vmem:[%s294 + $0x278] sm:$0xff]
        %v671 = vld [vmem:[%s294 + $0x280] sm:$0xff]
        %v672 = vld [vmem:[%s294 + $0x288] sm:$0xff]
        %v673 = vld [vmem:[%s294 + $0x290] sm:$0xff]
        %v674 = vld [vmem:[%s294 + $0x298] sm:$0xff]
        %v675 = vld [vmem:[%s294 + $0x2a0] sm:$0xff]
        %v676 = vld [vmem:[%s294 + $0x2a8] sm:$0xff]
        %v677 = vld [vmem:[%s294 + $0x2b0] sm:$0xff]
        %v678 = vld [vmem:[%s294 + $0x2b8] sm:$0xff]
        %v679 = vld [vmem:[%s294 + $0x2c0] sm:$0xff]
        %v680 = vld [vmem:[%s294 + $0x2c8] sm:$0xff]
        %v681 = vld [vmem:[%s294 + $0x2d0] sm:$0xff]
        %v682 = vld [vmem:[%s294 + $0x2d8] sm:$0xff]
        %v683 = vld [vmem:[%s294 + $0x2e0] sm:$0xff]
        %v684 = vld [vmem:[%s294 + $0x2e8] sm:$0xff]
        %v685 = vld [vmem:[%s294 + $0x2f0] sm:$0xff]
        %v686 = vld [vmem:[%s294 + $0x2f8] sm:$0xff]
        %v687 = vld [vmem:[%s294 + $0x300] sm:$0xff]
        %v688 = vld [vmem:[%s294 + $0x308] sm:$0xff]
        %v689 = vld [vmem:[%s294 + $0x310] sm:$0xff]
        %v690 = vld [vmem:[%s294 + $0x318] sm:$0xff]
        %v691 = vld [vmem:[%s294 + $0x320] sm:$0xff]
        %v692 = vld [vmem:[%s294 + $0x328] sm:$0xff]
        %v693 = vld [vmem:[%s294 + $0x330] sm:$0xff]
        %v694 = vld [vmem:[%s294 + $0x338] sm:$0xff]
        %v695 = vld [vmem:[%s294 + $0x340] sm:$0xff]
        %v696 = vld [vmem:[%s294 + $0x348] sm:$0xff]
        %v697 = vld [vmem:[%s294 + $0x350] sm:$0xff]
        %v698 = vld [vmem:[%s294 + $0x358] sm:$0xff]
        %v699 = vld [vmem:[%s294 + $0x360] sm:$0xff]
        %v700 = vld [vmem:[%s294 + $0x368] sm:$0xff]
        %v701 = vld [vmem:[%s294 + $0x370] sm:$0xff]
        %v702 = vld [vmem:[%s294 + $0x378] sm:$0xff]
        %v703 = vld [vmem:[%s294 + $0x380] sm:$0xff]
        %v704 = vld [vmem:[%s294 + $0x388] sm:$0xff]
        %v705 = vld [vmem:[%s294 + $0x390] sm:$0xff]
        %v706 = vld [vmem:[%s294 + $0x398] sm:$0xff]
        %v707 = vld [vmem:[%s294 + $0x3a0] sm:$0xff]
        %v708 = vld [vmem:[%s294 + $0x3a8] sm:$0xff]
        %v709 = vld [vmem:[%s294 + $0x3b0] sm:$0xff]
        %v710 = vld [vmem:[%s294 + $0x3b8] sm:$0xff]
        %v711 = vld [vmem:[%s294 + $0x3c0] sm:$0xff]
        %v712 = vld [vmem:[%s294 + $0x3c8] sm:$0xff]
        %v713 = vld [vmem:[%s294 + $0x3d0] sm:$0xff]
        %v714 = vld [vmem:[%s294 + $0x3d8] sm:$0xff]
        %v715 = vld [vmem:[%s294 + $0x3e0] sm:$0xff]
        %v716 = vld [vmem:[%s294 + $0x3e8] sm:$0xff]
        %v717 = vld [vmem:[%s294 + $0x3f0] sm:$0xff]
        %v718 = vld [vmem:[%s294 + $0x3f8] sm:$0xff]
        %719 = vmatprep.subr.mxu0 0.0
        %720 = vmatpush1.xpose.msra.mxu0 %v463
        %721 = vmatprep.subr.mxu0 0.0
        %722 = vmatpush1.xpose.msra.mxu0 %v467
        %723 = vmatprep.subr.mxu0 0.0
        %724 = vmatpush1.xpose.msra.mxu0 %v471
        %725 = vmatprep.subr.mxu0 0.0
        %726 = vmatpush1.xpose.msra.mxu0 %v475
        %727 = vmatprep.subr.mxu0 0.0
        %728 = vmatpush1.xpose.msra.mxu0 %v479
        %729 = vmatprep.subr.mxu0 0.0
        %730 = vmatpush1.xpose.msra.mxu0 %v483
        %731 = vmatprep.subr.mxu0 0.0
        %732 = vmatpush1.xpose.msra.mxu0 %v487
        %733 = vmatprep.subr.mxu0 0.0
        %734 = vmatpush1.xpose.msra.mxu0 %v491
        %735 = vmatprep.subr.mxu0 0.0
        %736 = vmatpush1.xpose.msra.mxu0 %v495
        %737 = vmatprep.subr.mxu0 0.0
        %738 = vmatpush1.xpose.msra.mxu0 %v499
        %739 = vmatprep.subr.mxu0 0.0
        %740 = vmatpush1.xpose.msra.mxu0 %v503
        %741 = vmatprep.subr.mxu0 0.0
        %742 = vmatpush1.xpose.msra.mxu0 %v507
        %743 = vmatprep.subr.mxu0 0.0
        %744 = vmatpush1.xpose.msra.mxu0 %v511
        %745 = vmatprep.subr.mxu0 0.0
        %746 = vmatpush1.xpose.msra.mxu0 %v515
        %747 = vmatprep.subr.mxu0 0.0
        %748 = vmatpush1.xpose.msra.mxu0 %v519
        %749 = vmatprep.subr.mxu0 0.0
        %750 = vmatpush1.xpose.msra.mxu0 %v523
        %751 = vmatprep.subr.mxu0 0.0
        %752 = vmatpush1.xpose.msra.mxu0 %v527
        %753 = vmatprep.subr.mxu0 0.0
        %754 = vmatpush1.xpose.msra.mxu0 %v531
        %755 = vmatprep.subr.mxu0 0.0
        %756 = vmatpush1.xpose.msra.mxu0 %v535
        %757 = vmatprep.subr.mxu0 0.0
        %758 = vmatpush1.xpose.msra.mxu0 %v539
        %759 = vmatprep.subr.mxu0 0.0
        %760 = vmatpush1.xpose.msra.mxu0 %v543
        %761 = vmatprep.subr.mxu0 0.0
        %762 = vmatpush1.xpose.msra.mxu0 %v547
        %763 = vmatprep.subr.mxu0 0.0
        %764 = vmatpush1.xpose.msra.mxu0 %v551
        %765 = vmatprep.subr.mxu0 0.0
        %766 = vmatpush1.xpose.msra.mxu0 %v555
        %767 = vmatprep.subr.mxu0 0.0
        %768 = vmatpush1.xpose.msra.mxu0 %v559
        %769 = vmatprep.subr.mxu0 0.0
        %770 = vmatpush1.xpose.msra.mxu0 %v563
        %771 = vmatprep.subr.mxu0 0.0
        %772 = vmatpush1.xpose.msra.mxu0 %v567
        %773 = vmatprep.subr.mxu0 0.0
        %774 = vmatpush1.xpose.msra.mxu0 %v571
        %775 = vmatprep.subr.mxu0 0.0
        %776 = vmatpush1.xpose.msra.mxu0 %v575
        %777 = vmatprep.subr.mxu0 0.0
        %778 = vmatpush1.xpose.msra.mxu0 %v579
        %779 = vmatprep.subr.mxu0 0.0
        %780 = vmatpush1.xpose.msra.mxu0 %v583
        %781 = vmatprep.subr.mxu0 0.0
        %782 = vmatpush1.xpose.msra.mxu0 %v587
        %783 = vmatprep.mubr.f32.mxu0 0.0
        %784 = vmatmul.mubr.f32.gmra.mrb[0].mxu0 %v399
        %v785 = vpop.f32.mrb[0].mxu0
        %v786 = vadd.f32 0.0, %v785
        %v787 = vpop.f32.mrb[0].mxu0
        %v788 = vadd.f32 0.0, %v787
        %789 = vmatprep.mubr.f32.mxu0 0.0
        %790 = vmatmul.mubr.f32.gmra.mrb[0].mxu0 %v403
        %v791 = vpop.f32.mrb[0].mxu0
        %v792 = vadd.f32 0.0, %v791
        %v793 = vpop.f32.mrb[0].mxu0
        %v794 = vadd.f32 0.0, %v793
        %795 = vmatprep.mubr.f32.mxu0 0.0
        %796 = vmatmul.mubr.f32.gmra.mrb[0].mxu0 %v407
        %v797 = vpop.f32.mrb[0].mxu0
        %v798 = vadd.f32 0.0, %v797
        %v799 = vpop.f32.mrb[0].mxu0
        %v800 = vadd.f32 0.0, %v799
        %801 = vmatprep.mubr.f32.mxu0 0.0
        %802 = vmatmul.mubr.f32.gmra.mrb[0].mxu0 %v411
        %v803 = vpop.f32.mrb[0].mxu0
        %v804 = vadd.f32 0.0, %v803
        %v805 = vpop.f32.mrb[0].mxu0
        %v806 = vadd.f32 0.0, %v805
        %807 = vmatprep.mubr.f32.mxu0 0.0
        %808 = vmatmul.mubr.f32.gmra.mrb[0].mxu0 %v415
        %v809 = vpop.f32.mrb[0].mxu0
        %v810 = vadd.f32 0.0, %v809
        %v811 = vpop.f32.mrb[0].mxu0
        %v812 = vadd.f32 0.0, %v811
        %813 = vmatprep.mubr.f32.mxu0 0.0
        %814 = vmatmul.mubr.f32.gmra.mrb[0].mxu0 %v419
        %v815 = vpop.f32.mrb[0].mxu0
        %v816 = vadd.f32 0.0, %v815
        %v817 = vpop.f32.mrb[0].mxu0
        %v818 = vadd.f32 0.0, %v817
        %819 = vmatprep.mubr.f32.mxu0 0.0
        %820 = vmatmul.mubr.f32.gmra.mrb[0].mxu0 %v423
        %v821 = vpop.f32.mrb[0].mxu0
        %v822 = vadd.f32 0.0, %v821
        %v823 = vpop.f32.mrb[0].mxu0
        %v824 = vadd.f32 0.0, %v823
        %825 = vmatprep.mubr.f32.mxu0 0.0
        %826 = vmatmul.mubr.f32.gmra.mrb[0].mxu0 %v427
        %v827 = vpop.f32.mrb[0].mxu0
        %v828 = vadd.f32 0.0, %v827
        %v829 = vpop.f32.mrb[0].mxu0
        %v830 = vadd.f32 0.0, %v829
        %831 = vmatprep.mubr.f32.mxu0 0.0
        %832 = vmatmul.mubr.f32.gmra.mrb[0].mxu0 %v431
        %v833 = vpop.f32.mrb[0].mxu0
        %v834 = vadd.f32 0.0, %v833
        %v835 = vpop.f32.mrb[0].mxu0
        %v836 = vadd.f32 0.0, %v835
        %837 = vmatprep.mubr.f32.mxu0 0.0
        %838 = vmatmul.mubr.f32.gmra.mrb[0].mxu0 %v435
        %v839 = vpop.f32.mrb[0].mxu0
        %v840 = vadd.f32 0.0, %v839
        %v841 = vpop.f32.mrb[0].mxu0
        %v842 = vadd.f32 0.0, %v841
        %843 = vmatprep.mubr.f32.mxu0 0.0
        %844 = vmatmul.mubr.f32.gmra.mrb[0].mxu0 %v439
        %v845 = vpop.f32.mrb[0].mxu0
        %v846 = vadd.f32 0.0, %v845
        %v847 = vpop.f32.mrb[0].mxu0
        %v848 = vadd.f32 0.0, %v847
        %849 = vmatprep.mubr.f32.mxu0 0.0
        %850 = vmatmul.mubr.f32.gmra.mrb[0].mxu0 %v443
        %v851 = vpop.f32.mrb[0].mxu0
        %v852 = vadd.f32 0.0, %v851
        %v853 = vpop.f32.mrb[0].mxu0
        %v854 = vadd.f32 0.0, %v853
        %855 = vmatprep.mubr.f32.mxu0 0.0
        %856 = vmatmul.mubr.f32.gmra.mrb[0].mxu0 %v447
        %v857 = vpop.f32.mrb[0].mxu0
        %v858 = vadd.f32 0.0, %v857
        %v859 = vpop.f32.mrb[0].mxu0
        %v860 = vadd.f32 0.0, %v859
        %861 = vmatprep.mubr.f32.mxu0 0.0
        %862 = vmatmul.mubr.f32.gmra.mrb[0].mxu0 %v451
        %v863 = vpop.f32.mrb[0].mxu0
        %v864 = vadd.f32 0.0, %v863
        %v865 = vpop.f32.mrb[0].mxu0
        %v866 = vadd.f32 0.0, %v865
        %867 = vmatprep.mubr.f32.mxu0 0.0
        %868 = vmatmul.mubr.f32.gmra.mrb[0].mxu0 %v455
        %v869 = vpop.f32.mrb[0].mxu0
        %v870 = vadd.f32 0.0, %v869
        %v871 = vpop.f32.mrb[0].mxu0
        %v872 = vadd.f32 0.0, %v871
        %873 = vmatprep.mubr.f32.mxu0 0.0
        %874 = vmatmul.mubr.f32.gmra.mrb[0].mxu0 %v459
        %v875 = vpop.f32.mrb[0].mxu0
        %v876 = vadd.f32 0.0, %v875
        %v877 = vpop.f32.mrb[0].mxu0
        %v878 = vadd.f32 0.0, %v877
        %879 = vdwg.mxu0
        %v880 = vmax.f32 %v786, %v788
        %881 = vmax.xlane.f32.xlu0 %v880
        %v882 = vpop.xlane.xlu0 %881
        %v883 = vmax.f32 %v792, %v794
        %884 = vmax.xlane.f32.xlu0 %v883
        %v885 = vpop.xlane.xlu0 %884
        %v886 = vmax.f32 %v798, %v800
        %887 = vmax.xlane.f32.xlu0 %v886
        %v888 = vpop.xlane.xlu0 %887
        %v889 = vmax.f32 %v804, %v806
        %890 = vmax.xlane.f32.xlu0 %v889
        %v891 = vpop.xlane.xlu0 %890
        %v892 = vmax.f32 %v810, %v812
        %893 = vmax.xlane.f32.xlu0 %v892
        %v894 = vpop.xlane.xlu0 %893
        %v895 = vmax.f32 %v816, %v818
        %896 = vmax.xlane.f32.xlu0 %v895
        %v897 = vpop.xlane.xlu0 %896
        %v898 = vmax.f32 %v822, %v824
        %899 = vmax.xlane.f32.xlu0 %v898
        %v900 = vpop.xlane.xlu0 %899
        %v901 = vmax.f32 %v828, %v830
        %902 = vmax.xlane.f32.xlu0 %v901
        %v903 = vpop.xlane.xlu0 %902
        %v904 = vmax.f32 %v834, %v836
        %905 = vmax.xlane.f32.xlu0 %v904
        %v906 = vpop.xlane.xlu0 %905
        %v907 = vmax.f32 %v840, %v842
        %908 = vmax.xlane.f32.xlu0 %v907
        %v909 = vpop.xlane.xlu0 %908
        %v910 = vmax.f32 %v846, %v848
        %911 = vmax.xlane.f32.xlu0 %v910
        %v912 = vpop.xlane.xlu0 %911
        %v913 = vmax.f32 %v852, %v854
        %914 = vmax.xlane.f32.xlu0 %v913
        %v915 = vpop.xlane.xlu0 %914
        %v916 = vmax.f32 %v858, %v860
        %917 = vmax.xlane.f32.xlu0 %v916
        %v918 = vpop.xlane.xlu0 %917
        %v919 = vmax.f32 %v864, %v866
        %920 = vmax.xlane.f32.xlu0 %v919
        %v921 = vpop.xlane.xlu0 %920
        %v922 = vmax.f32 %v870, %v872
        %923 = vmax.xlane.f32.xlu0 %v922
        %v924 = vpop.xlane.xlu0 %923
        %v925 = vmax.f32 %v876, %v878
        %926 = vmax.xlane.f32.xlu0 %v925
        %v927 = vpop.xlane.xlu0 %926
        %v928 = vsub.f32 %v786, %v882
        %v929 = vsub.f32 %v788, %v882
        %v930 = vsub.f32 %v792, %v885
        %v931 = vsub.f32 %v794, %v885
        %v932 = vsub.f32 %v798, %v888
        %v933 = vsub.f32 %v800, %v888
        %v934 = vsub.f32 %v804, %v891
        %v935 = vsub.f32 %v806, %v891
        %v936 = vsub.f32 %v810, %v894
        %v937 = vsub.f32 %v812, %v894
        %v938 = vsub.f32 %v816, %v897
        %v939 = vsub.f32 %v818, %v897
        %v940 = vsub.f32 %v822, %v900
        %v941 = vsub.f32 %v824, %v900
        %v942 = vsub.f32 %v828, %v903
        %v943 = vsub.f32 %v830, %v903
        %v944 = vsub.f32 %v834, %v906
        %v945 = vsub.f32 %v836, %v906
        %v946 = vsub.f32 %v840, %v909
        %v947 = vsub.f32 %v842, %v909
        %v948 = vsub.f32 %v846, %v912
        %v949 = vsub.f32 %v848, %v912
        %v950 = vsub.f32 %v852, %v915
        %v951 = vsub.f32 %v854, %v915
        %v952 = vsub.f32 %v858, %v918
        %v953 = vsub.f32 %v860, %v918
        %v954 = vsub.f32 %v864, %v921
        %v955 = vsub.f32 %v866, %v921
        %v956 = vsub.f32 %v870, %v924
        %v957 = vsub.f32 %v872, %v924
        %v958 = vsub.f32 %v876, %v927
        %v959 = vsub.f32 %v878, %v927
        %v960 = vmul.f32 %v928, 1.442695
        %v961 = vpow.pop %v960
        %v962 = vmul.f32 %v929, 1.442695
        %v963 = vpow.pop %v962
        %v964 = vmul.f32 %v930, 1.442695
        %v965 = vpow.pop %v964
        %v966 = vmul.f32 %v931, 1.442695
        %v967 = vpow.pop %v966
        %v968 = vmul.f32 %v932, 1.442695
        %v969 = vpow.pop %v968
        %v970 = vmul.f32 %v933, 1.442695
        %v971 = vpow.pop %v970
        %v972 = vmul.f32 %v934, 1.442695
        %v973 = vpow.pop %v972
        %v974 = vmul.f32 %v935, 1.442695
        %v975 = vpow.pop %v974
        %v976 = vmul.f32 %v936, 1.442695
        %v977 = vpow.pop %v976
        %v978 = vmul.f32 %v937, 1.442695
        %v979 = vpow.pop %v978
        %v980 = vmul.f32 %v938, 1.442695
        %v981 = vpow.pop %v980
        %v982 = vmul.f32 %v939, 1.442695
        %v983 = vpow.pop %v982
        %v984 = vmul.f32 %v940, 1.442695
        %v985 = vpow.pop %v984
        %v986 = vmul.f32 %v941, 1.442695
        %v987 = vpow.pop %v986
        %v988 = vmul.f32 %v942, 1.442695
        %v989 = vpow.pop %v988
        %v990 = vmul.f32 %v943, 1.442695
        %v991 = vpow.pop %v990
        %v992 = vmul.f32 %v944, 1.442695
        %v993 = vpow.pop %v992
        %v994 = vmul.f32 %v945, 1.442695
        %v995 = vpow.pop %v994
        %v996 = vmul.f32 %v946, 1.442695
        %v997 = vpow.pop %v996
        %v998 = vmul.f32 %v947, 1.442695
        %v999 = vpow.pop %v998
        %v1000 = vmul.f32 %v948, 1.442695
        %v1001 = vpow.pop %v1000
        %v1002 = vmul.f32 %v949, 1.442695
        %v1003 = vpow.pop %v1002
        %v1004 = vmul.f32 %v950, 1.442695
        %v1005 = vpow.pop %v1004
        %v1006 = vmul.f32 %v951, 1.442695
        %v1007 = vpow.pop %v1006
        %v1008 = vmul.f32 %v952, 1.442695
        %v1009 = vpow.pop %v1008
        %v1010 = vmul.f32 %v953, 1.442695
        %v1011 = vpow.pop %v1010
        %v1012 = vmul.f32 %v954, 1.442695
        %v1013 = vpow.pop %v1012
        %v1014 = vmul.f32 %v955, 1.442695
        %v1015 = vpow.pop %v1014
        %v1016 = vmul.f32 %v956, 1.442695
        %v1017 = vpow.pop %v1016
        %v1018 = vmul.f32 %v957, 1.442695
        %v1019 = vpow.pop %v1018
        %v1020 = vmul.f32 %v958, 1.442695
        %v1021 = vpow.pop %v1020
        %v1022 = vmul.f32 %v959, 1.442695
        %v1023 = vpow.pop %v1022
        %v1024 = vadd.f32 %v961, %v963
        %1025 = vadd.xlane.f32.xlu0 %v1024
        %v1026 = vpop.xlane.xlu0 %1025
        %v1027 = vadd.f32 %v965, %v967
        %1028 = vadd.xlane.f32.xlu0 %v1027
        %v1029 = vpop.xlane.xlu0 %1028
        %v1030 = vadd.f32 %v969, %v971
        %1031 = vadd.xlane.f32.xlu0 %v1030
        %v1032 = vpop.xlane.xlu0 %1031
        %v1033 = vadd.f32 %v973, %v975
        %1034 = vadd.xlane.f32.xlu0 %v1033
        %v1035 = vpop.xlane.xlu0 %1034
        %v1036 = vadd.f32 %v977, %v979
        %1037 = vadd.xlane.f32.xlu0 %v1036
        %v1038 = vpop.xlane.xlu0 %1037
        %v1039 = vadd.f32 %v981, %v983
        %1040 = vadd.xlane.f32.xlu0 %v1039
        %v1041 = vpop.xlane.xlu0 %1040
        %v1042 = vadd.f32 %v985, %v987
        %1043 = vadd.xlane.f32.xlu0 %v1042
        %v1044 = vpop.xlane.xlu0 %1043
        %v1045 = vadd.f32 %v989, %v991
        %1046 = vadd.xlane.f32.xlu0 %v1045
        %v1047 = vpop.xlane.xlu0 %1046
        %v1048 = vadd.f32 %v993, %v995
        %1049 = vadd.xlane.f32.xlu0 %v1048
        %v1050 = vpop.xlane.xlu0 %1049
        %v1051 = vadd.f32 %v997, %v999
        %1052 = vadd.xlane.f32.xlu0 %v1051
        %v1053 = vpop.xlane.xlu0 %1052
        %v1054 = vadd.f32 %v1001, %v1003
        %1055 = vadd.xlane.f32.xlu0 %v1054
        %v1056 = vpop.xlane.xlu0 %1055
        %v1057 = vadd.f32 %v1005, %v1007
        %1058 = vadd.xlane.f32.xlu0 %v1057
        %v1059 = vpop.xlane.xlu0 %1058
        %v1060 = vadd.f32 %v1009, %v1011
        %1061 = vadd.xlane.f32.xlu0 %v1060
        %v1062 = vpop.xlane.xlu0 %1061
        %v1063 = vadd.f32 %v1013, %v1015
        %1064 = vadd.xlane.f32.xlu0 %v1063
        %v1065 = vpop.xlane.xlu0 %1064
        %v1066 = vadd.f32 %v1017, %v1019
        %1067 = vadd.xlane.f32.xlu0 %v1066
        %v1068 = vpop.xlane.xlu0 %1067
        %v1069 = vadd.f32 %v1021, %v1023
        %1070 = vadd.xlane.f32.xlu0 %v1069
        %v1071 = vpop.xlane.xlu0 %1070
        %v1072 = vrcp.pop %v1026
        %v1073 = vrcp.pop %v1029
        %v1074 = vrcp.pop %v1032
        %v1075 = vrcp.pop %v1035
        %v1076 = vrcp.pop %v1038
        %v1077 = vrcp.pop %v1041
        %v1078 = vrcp.pop %v1044
        %v1079 = vrcp.pop %v1047
        %v1080 = vrcp.pop %v1050
        %v1081 = vrcp.pop %v1053
        %v1082 = vrcp.pop %v1056
        %v1083 = vrcp.pop %v1059
        %v1084 = vrcp.pop %v1062
        %v1085 = vrcp.pop %v1065
        %v1086 = vrcp.pop %v1068
        %v1087 = vrcp.pop %v1071
        %v1088 = vmul.f32 %v961, %v1072
        %v1089 = vmul.f32 %v963, %v1072
        %v1090 = vmul.f32 %v965, %v1073
        %v1091 = vmul.f32 %v967, %v1073
        %v1092 = vmul.f32 %v969, %v1074
        %v1093 = vmul.f32 %v971, %v1074
        %v1094 = vmul.f32 %v973, %v1075
        %v1095 = vmul.f32 %v975, %v1075
        %v1096 = vmul.f32 %v977, %v1076
        %v1097 = vmul.f32 %v979, %v1076
        %v1098 = vmul.f32 %v981, %v1077
        %v1099 = vmul.f32 %v983, %v1077
        %v1100 = vmul.f32 %v985, %v1078
        %v1101 = vmul.f32 %v987, %v1078
        %v1102 = vmul.f32 %v989, %v1079
        %v1103 = vmul.f32 %v991, %v1079
        %v1104 = vmul.f32 %v993, %v1080
        %v1105 = vmul.f32 %v995, %v1080
        %v1106 = vmul.f32 %v997, %v1081
        %v1107 = vmul.f32 %v999, %v1081
        %v1108 = vmul.f32 %v1001, %v1082
        %v1109 = vmul.f32 %v1003, %v1082
        %v1110 = vmul.f32 %v1005, %v1083
        %v1111 = vmul.f32 %v1007, %v1083
        %v1112 = vmul.f32 %v1009, %v1084
        %v1113 = vmul.f32 %v1011, %v1084
        %v1114 = vmul.f32 %v1013, %v1085
        %v1115 = vmul.f32 %v1015, %v1085
        %v1116 = vmul.f32 %v1017, %v1086
        %v1117 = vmul.f32 %v1019, %v1086
        %v1118 = vmul.f32 %v1021, %v1087
        %v1119 = vmul.f32 %v1023, %v1087
        %1120 = vmatprep.subr.mxu0 0.0
        %1121 = vmatpush1.msra.mxu0 %v591
        %1122 = vmatprep.subr.mxu0 0.0
        %1123 = vmatpush1.msra.mxu0 %v595
        %1124 = vmatprep.subr.mxu0 0.0
        %1125 = vmatpush1.msra.mxu0 %v599
        %1126 = vmatprep.subr.mxu0 0.0
        %1127 = vmatpush1.msra.mxu0 %v603
        %1128 = vmatprep.subr.mxu0 0.0
        %1129 = vmatpush1.msra.mxu0 %v607
        %1130 = vmatprep.subr.mxu0 0.0
        %1131 = vmatpush1.msra.mxu0 %v611
        %1132 = vmatprep.subr.mxu0 0.0
        %1133 = vmatpush1.msra.mxu0 %v615
        %1134 = vmatprep.subr.mxu0 0.0
        %1135 = vmatpush1.msra.mxu0 %v619
        %1136 = vmatprep.subr.mxu0 0.0
        %1137 = vmatpush1.msra.mxu0 %v623
        %1138 = vmatprep.subr.mxu0 0.0
        %1139 = vmatpush1.msra.mxu0 %v627
        %1140 = vmatprep.subr.mxu0 0.0
        %1141 = vmatpush1.msra.mxu0 %v631
        %1142 = vmatprep.subr.mxu0 0.0
        %1143 = vmatpush1.msra.mxu0 %v635
        %1144 = vmatprep.subr.mxu0 0.0
        %1145 = vmatpush1.msra.mxu0 %v639
        %1146 = vmatprep.subr.mxu0 0.0
        %1147 = vmatpush1.msra.mxu0 %v643
        %1148 = vmatprep.subr.mxu0 0.0
        %1149 = vmatpush1.msra.mxu0 %v647
        %1150 = vmatprep.subr.mxu0 0.0
        %1151 = vmatpush1.msra.mxu0 %v651
        %1152 = vmatprep.subr.mxu0 0.0
        %1153 = vmatpush1.msra.mxu0 %v655
        %1154 = vmatprep.subr.mxu0 0.0
        %1155 = vmatpush1.msra.mxu0 %v659
        %1156 = vmatprep.subr.mxu0 0.0
        %1157 = vmatpush1.msra.mxu0 %v663
        %1158 = vmatprep.subr.mxu0 0.0
        %1159 = vmatpush1.msra.mxu0 %v667
        %1160 = vmatprep.subr.mxu0 0.0
        %1161 = vmatpush1.msra.mxu0 %v671
        %1162 = vmatprep.subr.mxu0 0.0
        %1163 = vmatpush1.msra.mxu0 %v675
        %1164 = vmatprep.subr.mxu0 0.0
        %1165 = vmatpush1.msra.mxu0 %v679
        %1166 = vmatprep.subr.mxu0 0.0
        %1167 = vmatpush1.msra.mxu0 %v683
        %1168 = vmatprep.subr.mxu0 0.0
        %1169 = vmatpush1.msra.mxu0 %v687
        %1170 = vmatprep.subr.mxu0 0.0
        %1171 = vmatpush1.msra.mxu0 %v691
        %1172 = vmatprep.subr.mxu0 0.0
        %1173 = vmatpush1.msra.mxu0 %v695
        %1174 = vmatprep.subr.mxu0 0.0
        %1175 = vmatpush1.msra.mxu0 %v699
        %1176 = vmatprep.subr.mxu0 0.0
        %1177 = vmatpush1.msra.mxu0 %v703
        %1178 = vmatprep.subr.mxu0 0.0
        %1179 = vmatpush1.msra.mxu0 %v707
        %1180 = vmatprep.subr.mxu0 0.0
        %1181 = vmatpush1.msra.mxu0 %v711
        %1182 = vmatprep.subr.mxu0 0.0
        %1183 = vmatpush1.msra.mxu0 %v715
        %1184 = vmatprep.mubr.f32.mxu0 %v1089
        %1185 = vmatmul.mubr.f32.gmra.mrb[0].mxu0 %v1088
        %v1186 = vpop.f32.mrb[0].mxu0
        %v1187 = vadd.f32 0.0, %v1186
        %v1188 = vpop.f32.mrb[0].mxu0
        %1189 = vmatprep.mubr.f32.mxu0 %v1091
        %1190 = vmatmul.mubr.f32.gmra.mrb[0].mxu0 %v1090
        %v1191 = vpop.f32.mrb[0].mxu0
        %v1192 = vadd.f32 0.0, %v1191
        %v1193 = vpop.f32.mrb[0].mxu0
        %1194 = vmatprep.mubr.f32.mxu0 %v1093
        %1195 = vmatmul.mubr.f32.gmra.mrb[0].mxu0 %v1092
        %v1196 = vpop.f32.mrb[0].mxu0
        %v1197 = vadd.f32 0.0, %v1196
        %v1198 = vpop.f32.mrb[0].mxu0
        %1199 = vmatprep.mubr.f32.mxu0 %v1095
        %1200 = vmatmul.mubr.f32.gmra.mrb[0].mxu0 %v1094
        %v1201 = vpop.f32.mrb[0].mxu0
        %v1202 = vadd.f32 0.0, %v1201
        %v1203 = vpop.f32.mrb[0].mxu0
        %1204 = vmatprep.mubr.f32.mxu0 %v1097
        %1205 = vmatmul.mubr.f32.gmra.mrb[0].mxu0 %v1096
        %v1206 = vpop.f32.mrb[0].mxu0
        %v1207 = vadd.f32 0.0, %v1206
        %v1208 = vpop.f32.mrb[0].mxu0
        %1209 = vmatprep.mubr.f32.mxu0 %v1099
        %1210 = vmatmul.mubr.f32.gmra.mrb[0].mxu0 %v1098
        %v1211 = vpop.f32.mrb[0].mxu0
        %v1212 = vadd.f32 0.0, %v1211
        %v1213 = vpop.f32.mrb[0].mxu0
        %1214 = vmatprep.mubr.f32.mxu0 %v1101
        %1215 = vmatmul.mubr.f32.gmra.mrb[0].mxu0 %v1100
        %v1216 = vpop.f32.mrb[0].mxu0
        %v1217 = vadd.f32 0.0, %v1216
        %v1218 = vpop.f32.mrb[0].mxu0
        %1219 = vmatprep.mubr.f32.mxu0 %v1103
        %1220 = vmatmul.mubr.f32.gmra.mrb[0].mxu0 %v1102
        %v1221 = vpop.f32.mrb[0].mxu0
        %v1222 = vadd.f32 0.0, %v1221
        %v1223 = vpop.f32.mrb[0].mxu0
        %1224 = vmatprep.mubr.f32.mxu0 %v1105
        %1225 = vmatmul.mubr.f32.gmra.mrb[0].mxu0 %v1104
        %v1226 = vpop.f32.mrb[0].mxu0
        %v1227 = vadd.f32 0.0, %v1226
        %v1228 = vpop.f32.mrb[0].mxu0
        %1229 = vmatprep.mubr.f32.mxu0 %v1107
        %1230 = vmatmul.mubr.f32.gmra.mrb[0].mxu0 %v1106
        %v1231 = vpop.f32.mrb[0].mxu0
        %v1232 = vadd.f32 0.0, %v1231
        %v1233 = vpop.f32.mrb[0].mxu0
        %1234 = vmatprep.mubr.f32.mxu0 %v1109
        %1235 = vmatmul.mubr.f32.gmra.mrb[0].mxu0 %v1108
        %v1236 = vpop.f32.mrb[0].mxu0
        %v1237 = vadd.f32 0.0, %v1236
        %v1238 = vpop.f32.mrb[0].mxu0
        %1239 = vmatprep.mubr.f32.mxu0 %v1111
        %1240 = vmatmul.mubr.f32.gmra.mrb[0].mxu0 %v1110
        %v1241 = vpop.f32.mrb[0].mxu0
        %v1242 = vadd.f32 0.0, %v1241
        %v1243 = vpop.f32.mrb[0].mxu0
        %1244 = vmatprep.mubr.f32.mxu0 %v1113
        %1245 = vmatmul.mubr.f32.gmra.mrb[0].mxu0 %v1112
        %v1246 = vpop.f32.mrb[0].mxu0
        %v1247 = vadd.f32 0.0, %v1246
        %v1248 = vpop.f32.mrb[0].mxu0
        %1249 = vmatprep.mubr.f32.mxu0 %v1115
        %1250 = vmatmul.mubr.f32.gmra.mrb[0].mxu0 %v1114
        %v1251 = vpop.f32.mrb[0].mxu0
        %v1252 = vadd.f32 0.0, %v1251
        %v1253 = vpop.f32.mrb[0].mxu0
        %1254 = vmatprep.mubr.f32.mxu0 %v1117
        %1255 = vmatmul.mubr.f32.gmra.mrb[0].mxu0 %v1116
        %v1256 = vpop.f32.mrb[0].mxu0
        %v1257 = vadd.f32 0.0, %v1256
        %v1258 = vpop.f32.mrb[0].mxu0
        %1259 = vmatprep.mubr.f32.mxu0 %v1119
        %1260 = vmatmul.mubr.f32.gmra.mrb[0].mxu0 %v1118
        %v1261 = vpop.f32.mrb[0].mxu0
        %v1262 = vadd.f32 0.0, %v1261
        %v1263 = vpop.f32.mrb[0].mxu0
        %1264 = vdwg.mxu0
        %1265 = vmatprep.subr.mxu0 0.0
        %1266 = vmatpush1.xpose.msra.mxu0 %v464
        %1267 = vmatprep.subr.mxu0 0.0
        %1268 = vmatpush1.xpose.msra.mxu0 %v468
        %1269 = vmatprep.subr.mxu0 0.0
        %1270 = vmatpush1.xpose.msra.mxu0 %v472
        %1271 = vmatprep.subr.mxu0 0.0
        %1272 = vmatpush1.xpose.msra.mxu0 %v476
        %1273 = vmatprep.subr.mxu0 0.0
        %1274 = vmatpush1.xpose.msra.mxu0 %v480
        %1275 = vmatprep.subr.mxu0 0.0
        %1276 = vmatpush1.xpose.msra.mxu0 %v484
        %1277 = vmatprep.subr.mxu0 0.0
        %1278 = vmatpush1.xpose.msra.mxu0 %v488
        %1279 = vmatprep.subr.mxu0 0.0
        %1280 = vmatpush1.xpose.msra.mxu0 %v492
        %1281 = vmatprep.subr.mxu0 0.0
        %1282 = vmatpush1.xpose.msra.mxu0 %v496
        %1283 = vmatprep.subr.mxu0 0.0
        %1284 = vmatpush1.xpose.msra.mxu0 %v500
        %1285 = vmatprep.subr.mxu0 0.0
        %1286 = vmatpush1.xpose.msra.mxu0 %v504
        %1287 = vmatprep.subr.mxu0 0.0
        %1288 = vmatpush1.xpose.msra.mxu0 %v508
        %1289 = vmatprep.subr.mxu0 0.0
        %1290 = vmatpush1.xpose.msra.mxu0 %v512
        %1291 = vmatprep.subr.mxu0 0.0
        %1292 = vmatpush1.xpose.msra.mxu0 %v516
        %1293 = vmatprep.subr.mxu0 0.0
        %1294 = vmatpush1.xpose.msra.mxu0 %v520
        %1295 = vmatprep.subr.mxu0 0.0
        %1296 = vmatpush1.xpose.msra.mxu0 %v524
        %1297 = vmatprep.subr.mxu0 0.0
        %1298 = vmatpush1.xpose.msra.mxu0 %v528
        %1299 = vmatprep.subr.mxu0 0.0
        %1300 = vmatpush1.xpose.msra.mxu0 %v532
        %1301 = vmatprep.subr.mxu0 0.0
        %1302 = vmatpush1.xpose.msra.mxu0 %v536
        %1303 = vmatprep.subr.mxu0 0.0
        %1304 = vmatpush1.xpose.msra.mxu0 %v540
        %1305 = vmatprep.subr.mxu0 0.0
        %1306 = vmatpush1.xpose.msra.mxu0 %v544
        %1307 = vmatprep.subr.mxu0 0.0
        %1308 = vmatpush1.xpose.msra.mxu0 %v548
        %1309 = vmatprep.subr.mxu0 0.0
        %1310 = vmatpush1.xpose.msra.mxu0 %v552
        %1311 = vmatprep.subr.mxu0 0.0
        %1312 = vmatpush1.xpose.msra.mxu0 %v556
        %1313 = vmatprep.subr.mxu0 0.0
        %1314 = vmatpush1.xpose.msra.mxu0 %v560
        %1315 = vmatprep.subr.mxu0 0.0
        %1316 = vmatpush1.xpose.msra.mxu0 %v564
        %1317 = vmatprep.subr.mxu0 0.0
        %1318 = vmatpush1.xpose.msra.mxu0 %v568
        %1319 = vmatprep.subr.mxu0 0.0
        %1320 = vmatpush1.xpose.msra.mxu0 %v572
        %1321 = vmatprep.subr.mxu0 0.0
        %1322 = vmatpush1.xpose.msra.mxu0 %v576
        %1323 = vmatprep.subr.mxu0 0.0
        %1324 = vmatpush1.xpose.msra.mxu0 %v580
        %1325 = vmatprep.subr.mxu0 0.0
        %1326 = vmatpush1.xpose.msra.mxu0 %v584
        %1327 = vmatprep.subr.mxu0 0.0
        %1328 = vmatpush1.xpose.msra.mxu0 %v588
        %1329 = vmatprep.mubr.f32.mxu0 0.0
        %1330 = vmatmul.mubr.f32.gmra.mrb[0].mxu0 %v400
        %v1331 = vpop.f32.mrb[0].mxu0
        %v1332 = vadd.f32 0.0, %v1331
        %v1333 = vpop.f32.mrb[0].mxu0
        %v1334 = vadd.f32 0.0, %v1333
        %1335 = vmatprep.mubr.f32.mxu0 0.0
        %1336 = vmatmul.mubr.f32.gmra.mrb[0].mxu0 %v404
        %v1337 = vpop.f32.mrb[0].mxu0
        %v1338 = vadd.f32 0.0, %v1337
        %v1339 = vpop.f32.mrb[0].mxu0
        %v1340 = vadd.f32 0.0, %v1339
        %1341 = vmatprep.mubr.f32.mxu0 0.0
        %1342 = vmatmul.mubr.f32.gmra.mrb[0].mxu0 %v408
        %v1343 = vpop.f32.mrb[0].mxu0
        %v1344 = vadd.f32 0.0, %v1343
        %v1345 = vpop.f32.mrb[0].mxu0
        %v1346 = vadd.f32 0.0, %v1345
        %1347 = vmatprep.mubr.f32.mxu0 0.0
        %1348 = vmatmul.mubr.f32.gmra.mrb[0].mxu0 %v412
        %v1349 = vpop.f32.mrb[0].mxu0
        %v1350 = vadd.f32 0.0, %v1349
        %v1351 = vpop.f32.mrb[0].mxu0
        %v1352 = vadd.f32 0.0, %v1351
        %1353 = vmatprep.mubr.f32.mxu0 0.0
        %1354 = vmatmul.mubr.f32.gmra.mrb[0].mxu0 %v416
        %v1355 = vpop.f32.mrb[0].mxu0
        %v1356 = vadd.f32 0.0, %v1355
        %v1357 = vpop.f32.mrb[0].mxu0
        %v1358 = vadd.f32 0.0, %v1357
        %1359 = vmatprep.mubr.f32.mxu0 0.0
        %1360 = vmatmul.mubr.f32.gmra.mrb[0].mxu0 %v420
        %v1361 = vpop.f32.mrb[0].mxu0
        %v1362 = vadd.f32 0.0, %v1361
        %v1363 = vpop.f32.mrb[0].mxu0
        %v1364 = vadd.f32 0.0, %v1363
        %1365 = vmatprep.mubr.f32.mxu0 0.0
        %1366 = vmatmul.mubr.f32.gmra.mrb[0].mxu0 %v424
        %v1367 = vpop.f32.mrb[0].mxu0
        %v1368 = vadd.f32 0.0, %v1367
        %v1369 = vpop.f32.mrb[0].mxu0
        %v1370 = vadd.f32 0.0, %v1369
        %1371 = vmatprep.mubr.f32.mxu0 0.0
        %1372 = vmatmul.mubr.f32.gmra.mrb[0].mxu0 %v428
        %v1373 = vpop.f32.mrb[0].mxu0
        %v1374 = vadd.f32 0.0, %v1373
        %v1375 = vpop.f32.mrb[0].mxu0
        %v1376 = vadd.f32 0.0, %v1375
        %1377 = vmatprep.mubr.f32.mxu0 0.0
        %1378 = vmatmul.mubr.f32.gmra.mrb[0].mxu0 %v432
        %v1379 = vpop.f32.mrb[0].mxu0
        %v1380 = vadd.f32 0.0, %v1379
        %v1381 = vpop.f32.mrb[0].mxu0
        %v1382 = vadd.f32 0.0, %v1381
        %1383 = vmatprep.mubr.f32.mxu0 0.0
        %1384 = vmatmul.mubr.f32.gmra.mrb[0].mxu0 %v436
        %v1385 = vpop.f32.mrb[0].mxu0
        %v1386 = vadd.f32 0.0, %v1385
        %v1387 = vpop.f32.mrb[0].mxu0
        %v1388 = vadd.f32 0.0, %v1387
        %1389 = vmatprep.mubr.f32.mxu0 0.0
        %1390 = vmatmul.mubr.f32.gmra.mrb[0].mxu0 %v440
        %v1391 = vpop.f32.mrb[0].mxu0
        %v1392 = vadd.f32 0.0, %v1391
        %v1393 = vpop.f32.mrb[0].mxu0
        %v1394 = vadd.f32 0.0, %v1393
        %1395 = vmatprep.mubr.f32.mxu0 0.0
        %1396 = vmatmul.mubr.f32.gmra.mrb[0].mxu0 %v444
        %v1397 = vpop.f32.mrb[0].mxu0
        %v1398 = vadd.f32 0.0, %v1397
        %v1399 = vpop.f32.mrb[0].mxu0
        %v1400 = vadd.f32 0.0, %v1399
        %1401 = vmatprep.mubr.f32.mxu0 0.0
        %1402 = vmatmul.mubr.f32.gmra.mrb[0].mxu0 %v448
        %v1403 = vpop.f32.mrb[0].mxu0
        %v1404 = vadd.f32 0.0, %v1403
        %v1405 = vpop.f32.mrb[0].mxu0
        %v1406 = vadd.f32 0.0, %v1405
        %1407 = vmatprep.mubr.f32.mxu0 0.0
        %1408 = vmatmul.mubr.f32.gmra.mrb[0].mxu0 %v452
        %v1409 = vpop.f32.mrb[0].mxu0
        %v1410 = vadd.f32 0.0, %v1409
        %v1411 = vpop.f32.mrb[0].mxu0
        %v1412 = vadd.f32 0.0, %v1411
        %1413 = vmatprep.mubr.f32.mxu0 0.0
        %1414 = vmatmul.mubr.f32.gmra.mrb[0].mxu0 %v456
        %v1415 = vpop.f32.mrb[0].mxu0
        %v1416 = vadd.f32 0.0, %v1415
        %v1417 = vpop.f32.mrb[0].mxu0
        %v1418 = vadd.f32 0.0, %v1417
        %1419 = vmatprep.mubr.f32.mxu0 0.0
        %1420 = vmatmul.mubr.f32.gmra.mrb[0].mxu0 %v460
        %v1421 = vpop.f32.mrb[0].mxu0
        %v1422 = vadd.f32 0.0, %v1421
        %v1423 = vpop.f32.mrb[0].mxu0
        %v1424 = vadd.f32 0.0, %v1423
        %1425 = vdwg.mxu0
        %v1426 = vmax.f32 %v1332, %v1334
        %1427 = vmax.xlane.f32.xlu0 %v1426
        %v1428 = vpop.xlane.xlu0 %1427
        %v1429 = vmax.f32 %v1338, %v1340
        %1430 = vmax.xlane.f32.xlu0 %v1429
        %v1431 = vpop.xlane.xlu0 %1430
        %v1432 = vmax.f32 %v1344, %v1346
        %1433 = vmax.xlane.f32.xlu0 %v1432
        %v1434 = vpop.xlane.xlu0 %1433
        %v1435 = vmax.f32 %v1350, %v1352
        %1436 = vmax.xlane.f32.xlu0 %v1435
        %v1437 = vpop.xlane.xlu0 %1436
        %v1438 = vmax.f32 %v1356, %v1358
        %1439 = vmax.xlane.f32.xlu0 %v1438
        %v1440 = vpop.xlane.xlu0 %1439
        %v1441 = vmax.f32 %v1362, %v1364
        %1442 = vmax.xlane.f32.xlu0 %v1441
        %v1443 = vpop.xlane.xlu0 %1442
        %v1444 = vmax.f32 %v1368, %v1370
        %1445 = vmax.xlane.f32.xlu0 %v1444
        %v1446 = vpop.xlane.xlu0 %1445
        %v1447 = vmax.f32 %v1374, %v1376
        %1448 = vmax.xlane.f32.xlu0 %v1447
        %v1449 = vpop.xlane.xlu0 %1448
        %v1450 = vmax.f32 %v1380, %v1382
        %1451 = vmax.xlane.f32.xlu0 %v1450
        %v1452 = vpop.xlane.xlu0 %1451
        %v1453 = vmax.f32 %v1386, %v1388
        %1454 = vmax.xlane.f32.xlu0 %v1453
        %v1455 = vpop.xlane.xlu0 %1454
        %v1456 = vmax.f32 %v1392, %v1394
        %1457 = vmax.xlane.f32.xlu0 %v1456
        %v1458 = vpop.xlane.xlu0 %1457
        %v1459 = vmax.f32 %v1398, %v1400
        %1460 = vmax.xlane.f32.xlu0 %v1459
        %v1461 = vpop.xlane.xlu0 %1460
        %v1462 = vmax.f32 %v1404, %v1406
        %1463 = vmax.xlane.f32.xlu0 %v1462
        %v1464 = vpop.xlane.xlu0 %1463
        %v1465 = vmax.f32 %v1410, %v1412
        %1466 = vmax.xlane.f32.xlu0 %v1465
        %v1467 = vpop.xlane.xlu0 %1466
        %v1468 = vmax.f32 %v1416, %v1418
        %1469 = vmax.xlane.f32.xlu0 %v1468
        %v1470 = vpop.xlane.xlu0 %1469
        %v1471 = vmax.f32 %v1422, %v1424
        %1472 = vmax.xlane.f32.xlu0 %v1471
        %v1473 = vpop.xlane.xlu0 %1472
        %v1474 = vsub.f32 %v1332, %v1428
        %v1475 = vsub.f32 %v1334, %v1428
        %v1476 = vsub.f32 %v1338, %v1431
        %v1477 = vsub.f32 %v1340, %v1431
        %v1478 = vsub.f32 %v1344, %v1434
        %v1479 = vsub.f32 %v1346, %v1434
        %v1480 = vsub.f32 %v1350, %v1437
        %v1481 = vsub.f32 %v1352, %v1437
        %v1482 = vsub.f32 %v1356, %v1440
        %v1483 = vsub.f32 %v1358, %v1440
        %v1484 = vsub.f32 %v1362, %v1443
        %v1485 = vsub.f32 %v1364, %v1443
        %v1486 = vsub.f32 %v1368, %v1446
        %v1487 = vsub.f32 %v1370, %v1446
        %v1488 = vsub.f32 %v1374, %v1449
        %v1489 = vsub.f32 %v1376, %v1449
        %v1490 = vsub.f32 %v1380, %v1452
        %v1491 = vsub.f32 %v1382, %v1452
        %v1492 = vsub.f32 %v1386, %v1455
        %v1493 = vsub.f32 %v1388, %v1455
        %v1494 = vsub.f32 %v1392, %v1458
        %v1495 = vsub.f32 %v1394, %v1458
        %v1496 = vsub.f32 %v1398, %v1461
        %v1497 = vsub.f32 %v1400, %v1461
        %v1498 = vsub.f32 %v1404, %v1464
        %v1499 = vsub.f32 %v1406, %v1464
        %v1500 = vsub.f32 %v1410, %v1467
        %v1501 = vsub.f32 %v1412, %v1467
        %v1502 = vsub.f32 %v1416, %v1470
        %v1503 = vsub.f32 %v1418, %v1470
        %v1504 = vsub.f32 %v1422, %v1473
        %v1505 = vsub.f32 %v1424, %v1473
        %v1506 = vmul.f32 %v1474, 1.442695
        %v1507 = vpow.pop %v1506
        %v1508 = vmul.f32 %v1475, 1.442695
        %v1509 = vpow.pop %v1508
        %v1510 = vmul.f32 %v1476, 1.442695
        %v1511 = vpow.pop %v1510
        %v1512 = vmul.f32 %v1477, 1.442695
        %v1513 = vpow.pop %v1512
        %v1514 = vmul.f32 %v1478, 1.442695
        %v1515 = vpow.pop %v1514
        %v1516 = vmul.f32 %v1479, 1.442695
        %v1517 = vpow.pop %v1516
        %v1518 = vmul.f32 %v1480, 1.442695
        %v1519 = vpow.pop %v1518
        %v1520 = vmul.f32 %v1481, 1.442695
        %v1521 = vpow.pop %v1520
        %v1522 = vmul.f32 %v1482, 1.442695
        %v1523 = vpow.pop %v1522
        %v1524 = vmul.f32 %v1483, 1.442695
        %v1525 = vpow.pop %v1524
        %v1526 = vmul.f32 %v1484, 1.442695
        %v1527 = vpow.pop %v1526
        %v1528 = vmul.f32 %v1485, 1.442695
        %v1529 = vpow.pop %v1528
        %v1530 = vmul.f32 %v1486, 1.442695
        %v1531 = vpow.pop %v1530
        %v1532 = vmul.f32 %v1487, 1.442695
        %v1533 = vpow.pop %v1532
        %v1534 = vmul.f32 %v1488, 1.442695
        %v1535 = vpow.pop %v1534
        %v1536 = vmul.f32 %v1489, 1.442695
        %v1537 = vpow.pop %v1536
        %v1538 = vmul.f32 %v1490, 1.442695
        %v1539 = vpow.pop %v1538
        %v1540 = vmul.f32 %v1491, 1.442695
        %v1541 = vpow.pop %v1540
        %v1542 = vmul.f32 %v1492, 1.442695
        %v1543 = vpow.pop %v1542
        %v1544 = vmul.f32 %v1493, 1.442695
        %v1545 = vpow.pop %v1544
        %v1546 = vmul.f32 %v1494, 1.442695
        %v1547 = vpow.pop %v1546
        %v1548 = vmul.f32 %v1495, 1.442695
        %v1549 = vpow.pop %v1548
        %v1550 = vmul.f32 %v1496, 1.442695
        %v1551 = vpow.pop %v1550
        %v1552 = vmul.f32 %v1497, 1.442695
        %v1553 = vpow.pop %v1552
        %v1554 = vmul.f32 %v1498, 1.442695
        %v1555 = vpow.pop %v1554
        %v1556 = vmul.f32 %v1499, 1.442695
        %v1557 = vpow.pop %v1556
        %v1558 = vmul.f32 %v1500, 1.442695
        %v1559 = vpow.pop %v1558
        %v1560 = vmul.f32 %v1501, 1.442695
        %v1561 = vpow.pop %v1560
        %v1562 = vmul.f32 %v1502, 1.442695
        %v1563 = vpow.pop %v1562
        %v1564 = vmul.f32 %v1503, 1.442695
        %v1565 = vpow.pop %v1564
        %v1566 = vmul.f32 %v1504, 1.442695
        %v1567 = vpow.pop %v1566
        %v1568 = vmul.f32 %v1505, 1.442695
        %v1569 = vpow.pop %v1568
        %v1570 = vadd.f32 %v1507, %v1509
        %1571 = vadd.xlane.f32.xlu0 %v1570
        %v1572 = vpop.xlane.xlu0 %1571
        %v1573 = vadd.f32 %v1511, %v1513
        %1574 = vadd.xlane.f32.xlu0 %v1573
        %v1575 = vpop.xlane.xlu0 %1574
        %v1576 = vadd.f32 %v1515, %v1517
        %1577 = vadd.xlane.f32.xlu0 %v1576
        %v1578 = vpop.xlane.xlu0 %1577
        %v1579 = vadd.f32 %v1519, %v1521
        %1580 = vadd.xlane.f32.xlu0 %v1579
        %v1581 = vpop.xlane.xlu0 %1580
        %v1582 = vadd.f32 %v1523, %v1525
        %1583 = vadd.xlane.f32.xlu0 %v1582
        %v1584 = vpop.xlane.xlu0 %1583
        %v1585 = vadd.f32 %v1527, %v1529
        %1586 = vadd.xlane.f32.xlu0 %v1585
        %v1587 = vpop.xlane.xlu0 %1586
        %v1588 = vadd.f32 %v1531, %v1533
        %1589 = vadd.xlane.f32.xlu0 %v1588
        %v1590 = vpop.xlane.xlu0 %1589
        %v1591 = vadd.f32 %v1535, %v1537
        %1592 = vadd.xlane.f32.xlu0 %v1591
        %v1593 = vpop.xlane.xlu0 %1592
        %v1594 = vadd.f32 %v1539, %v1541
        %1595 = vadd.xlane.f32.xlu0 %v1594
        %v1596 = vpop.xlane.xlu0 %1595
        %v1597 = vadd.f32 %v1543, %v1545
        %1598 = vadd.xlane.f32.xlu0 %v1597
        %v1599 = vpop.xlane.xlu0 %1598
        %v1600 = vadd.f32 %v1547, %v1549
        %1601 = vadd.xlane.f32.xlu0 %v1600
        %v1602 = vpop.xlane.xlu0 %1601
        %v1603 = vadd.f32 %v1551, %v1553
        %1604 = vadd.xlane.f32.xlu0 %v1603
        %v1605 = vpop.xlane.xlu0 %1604
        %v1606 = vadd.f32 %v1555, %v1557
        %1607 = vadd.xlane.f32.xlu0 %v1606
        %v1608 = vpop.xlane.xlu0 %1607
        %v1609 = vadd.f32 %v1559, %v1561
        %1610 = vadd.xlane.f32.xlu0 %v1609
        %v1611 = vpop.xlane.xlu0 %1610
        %v1612 = vadd.f32 %v1563, %v1565
        %1613 = vadd.xlane.f32.xlu0 %v1612
        %v1614 = vpop.xlane.xlu0 %1613
        %v1615 = vadd.f32 %v1567, %v1569
        %1616 = vadd.xlane.f32.xlu0 %v1615
        %v1617 = vpop.xlane.xlu0 %1616
        %v1618 = vrcp.pop %v1572
        %v1619 = vrcp.pop %v1575
        %v1620 = vrcp.pop %v1578
        %v1621 = vrcp.pop %v1581
        %v1622 = vrcp.pop %v1584
        %v1623 = vrcp.pop %v1587
        %v1624 = vrcp.pop %v1590
        %v1625 = vrcp.pop %v1593
        %v1626 = vrcp.pop %v1596
        %v1627 = vrcp.pop %v1599
        %v1628 = vrcp.pop %v1602
        %v1629 = vrcp.pop %v1605
        %v1630 = vrcp.pop %v1608
        %v1631 = vrcp.pop %v1611
        %v1632 = vrcp.pop %v1614
        %v1633 = vrcp.pop %v1617
        %v1634 = vmul.f32 %v1507, %v1618
        %v1635 = vmul.f32 %v1509, %v1618
        %v1636 = vmul.f32 %v1511, %v1619
        %v1637 = vmul.f32 %v1513, %v1619
        %v1638 = vmul.f32 %v1515, %v1620
        %v1639 = vmul.f32 %v1517, %v1620
        %v1640 = vmul.f32 %v1519, %v1621
        %v1641 = vmul.f32 %v1521, %v1621
        %v1642 = vmul.f32 %v1523, %v1622
        %v1643 = vmul.f32 %v1525, %v1622
        %v1644 = vmul.f32 %v1527, %v1623
        %v1645 = vmul.f32 %v1529, %v1623
        %v1646 = vmul.f32 %v1531, %v1624
        %v1647 = vmul.f32 %v1533, %v1624
        %v1648 = vmul.f32 %v1535, %v1625
        %v1649 = vmul.f32 %v1537, %v1625
        %v1650 = vmul.f32 %v1539, %v1626
        %v1651 = vmul.f32 %v1541, %v1626
        %v1652 = vmul.f32 %v1543, %v1627
        %v1653 = vmul.f32 %v1545, %v1627
        %v1654 = vmul.f32 %v1547, %v1628
        %v1655 = vmul.f32 %v1549, %v1628
        %v1656 = vmul.f32 %v1551, %v1629
        %v1657 = vmul.f32 %v1553, %v1629
        %v1658 = vmul.f32 %v1555, %v1630
        %v1659 = vmul.f32 %v1557, %v1630
        %v1660 = vmul.f32 %v1559, %v1631
        %v1661 = vmul.f32 %v1561, %v1631
        %v1662 = vmul.f32 %v1563, %v1632
        %v1663 = vmul.f32 %v1565, %v1632
        %v1664 = vmul.f32 %v1567, %v1633
        %v1665 = vmul.f32 %v1569, %v1633
        %1666 = vmatprep.subr.mxu0 0.0
        %1667 = vmatpush1.msra.mxu0 %v592
        %1668 = vmatprep.subr.mxu0 0.0
        %1669 = vmatpush1.msra.mxu0 %v596
        %1670 = vmatprep.subr.mxu0 0.0
        %1671 = vmatpush1.msra.mxu0 %v600
        %1672 = vmatprep.subr.mxu0 0.0
        %1673 = vmatpush1.msra.mxu0 %v604
        %1674 = vmatprep.subr.mxu0 0.0
        %1675 = vmatpush1.msra.mxu0 %v608
        %1676 = vmatprep.subr.mxu0 0.0
        %1677 = vmatpush1.msra.mxu0 %v612
        %1678 = vmatprep.subr.mxu0 0.0
        %1679 = vmatpush1.msra.mxu0 %v616
        %1680 = vmatprep.subr.mxu0 0.0
        %1681 = vmatpush1.msra.mxu0 %v620
        %1682 = vmatprep.subr.mxu0 0.0
        %1683 = vmatpush1.msra.mxu0 %v624
        %1684 = vmatprep.subr.mxu0 0.0
        %1685 = vmatpush1.msra.mxu0 %v628
        %1686 = vmatprep.subr.mxu0 0.0
        %1687 = vmatpush1.msra.mxu0 %v632
        %1688 = vmatprep.subr.mxu0 0.0
        %1689 = vmatpush1.msra.mxu0 %v636
        %1690 = vmatprep.subr.mxu0 0.0
        %1691 = vmatpush1.msra.mxu0 %v640
        %1692 = vmatprep.subr.mxu0 0.0
        %1693 = vmatpush1.msra.mxu0 %v644
        %1694 = vmatprep.subr.mxu0 0.0
        %1695 = vmatpush1.msra.mxu0 %v648
        %1696 = vmatprep.subr.mxu0 0.0
        %1697 = vmatpush1.msra.mxu0 %v652
        %1698 = vmatprep.subr.mxu0 0.0
        %1699 = vmatpush1.msra.mxu0 %v656
        %1700 = vmatprep.subr.mxu0 0.0
        %1701 = vmatpush1.msra.mxu0 %v660
        %1702 = vmatprep.subr.mxu0 0.0
        %1703 = vmatpush1.msra.mxu0 %v664
        %1704 = vmatprep.subr.mxu0 0.0
        %1705 = vmatpush1.msra.mxu0 %v668
        %1706 = vmatprep.subr.mxu0 0.0
        %1707 = vmatpush1.msra.mxu0 %v672
        %1708 = vmatprep.subr.mxu0 0.0
        %1709 = vmatpush1.msra.mxu0 %v676
        %1710 = vmatprep.subr.mxu0 0.0
        %1711 = vmatpush1.msra.mxu0 %v680
        %1712 = vmatprep.subr.mxu0 0.0
        %1713 = vmatpush1.msra.mxu0 %v684
        %1714 = vmatprep.subr.mxu0 0.0
        %1715 = vmatpush1.msra.mxu0 %v688
        %1716 = vmatprep.subr.mxu0 0.0
        %1717 = vmatpush1.msra.mxu0 %v692
        %1718 = vmatprep.subr.mxu0 0.0
        %1719 = vmatpush1.msra.mxu0 %v696
        %1720 = vmatprep.subr.mxu0 0.0
        %1721 = vmatpush1.msra.mxu0 %v700
        %1722 = vmatprep.subr.mxu0 0.0
        %1723 = vmatpush1.msra.mxu0 %v704
        %1724 = vmatprep.subr.mxu0 0.0
        %1725 = vmatpush1.msra.mxu0 %v708
        %1726 = vmatprep.subr.mxu0 0.0
        %1727 = vmatpush1.msra.mxu0 %v712
        %1728 = vmatprep.subr.mxu0 0.0
        %1729 = vmatpush1.msra.mxu0 %v716
        %1730 = vmatprep.mubr.f32.mxu0 %v1635
        %1731 = vmatmul.mubr.f32.gmra.mrb[0].mxu0 %v1634
        %v1732 = vpop.f32.mrb[0].mxu0
        %v1733 = vadd.f32 0.0, %v1732
        %v1734 = vpop.f32.mrb[0].mxu0
        %1735 = vmatprep.mubr.f32.mxu0 %v1637
        %1736 = vmatmul.mubr.f32.gmra.mrb[0].mxu0 %v1636
        %v1737 = vpop.f32.mrb[0].mxu0
        %v1738 = vadd.f32 0.0, %v1737
        %v1739 = vpop.f32.mrb[0].mxu0
        %1740 = vmatprep.mubr.f32.mxu0 %v1639
        %1741 = vmatmul.mubr.f32.gmra.mrb[0].mxu0 %v1638
        %v1742 = vpop.f32.mrb[0].mxu0
        %v1743 = vadd.f32 0.0, %v1742
        %v1744 = vpop.f32.mrb[0].mxu0
        %1745 = vmatprep.mubr.f32.mxu0 %v1641
        %1746 = vmatmul.mubr.f32.gmra.mrb[0].mxu0 %v1640
        %v1747 = vpop.f32.mrb[0].mxu0
        %v1748 = vadd.f32 0.0, %v1747
        %v1749 = vpop.f32.mrb[0].mxu0
        %1750 = vmatprep.mubr.f32.mxu0 %v1643
        %1751 = vmatmul.mubr.f32.gmra.mrb[0].mxu0 %v1642
        %v1752 = vpop.f32.mrb[0].mxu0
        %v1753 = vadd.f32 0.0, %v1752
        %v1754 = vpop.f32.mrb[0].mxu0
        %1755 = vmatprep.mubr.f32.mxu0 %v1645
        %1756 = vmatmul.mubr.f32.gmra.mrb[0].mxu0 %v1644
        %v1757 = vpop.f32.mrb[0].mxu0
        %v1758 = vadd.f32 0.0, %v1757
        %v1759 = vpop.f32.mrb[0].mxu0
        %1760 = vmatprep.mubr.f32.mxu0 %v1647
        %1761 = vmatmul.mubr.f32.gmra.mrb[0].mxu0 %v1646
        %v1762 = vpop.f32.mrb[0].mxu0
        %v1763 = vadd.f32 0.0, %v1762
        %v1764 = vpop.f32.mrb[0].mxu0
        %1765 = vmatprep.mubr.f32.mxu0 %v1649
        %1766 = vmatmul.mubr.f32.gmra.mrb[0].mxu0 %v1648
        %v1767 = vpop.f32.mrb[0].mxu0
        %v1768 = vadd.f32 0.0, %v1767
        %v1769 = vpop.f32.mrb[0].mxu0
        %1770 = vmatprep.mubr.f32.mxu0 %v1651
        %1771 = vmatmul.mubr.f32.gmra.mrb[0].mxu0 %v1650
        %v1772 = vpop.f32.mrb[0].mxu0
        %v1773 = vadd.f32 0.0, %v1772
        %v1774 = vpop.f32.mrb[0].mxu0
        %1775 = vmatprep.mubr.f32.mxu0 %v1653
        %1776 = vmatmul.mubr.f32.gmra.mrb[0].mxu0 %v1652
        %v1777 = vpop.f32.mrb[0].mxu0
        %v1778 = vadd.f32 0.0, %v1777
        %v1779 = vpop.f32.mrb[0].mxu0
        %1780 = vmatprep.mubr.f32.mxu0 %v1655
        %1781 = vmatmul.mubr.f32.gmra.mrb[0].mxu0 %v1654
        %v1782 = vpop.f32.mrb[0].mxu0
        %v1783 = vadd.f32 0.0, %v1782
        %v1784 = vpop.f32.mrb[0].mxu0
        %1785 = vmatprep.mubr.f32.mxu0 %v1657
        %1786 = vmatmul.mubr.f32.gmra.mrb[0].mxu0 %v1656
        %v1787 = vpop.f32.mrb[0].mxu0
        %v1788 = vadd.f32 0.0, %v1787
        %v1789 = vpop.f32.mrb[0].mxu0
        %1790 = vmatprep.mubr.f32.mxu0 %v1659
        %1791 = vmatmul.mubr.f32.gmra.mrb[0].mxu0 %v1658
        %v1792 = vpop.f32.mrb[0].mxu0
        %v1793 = vadd.f32 0.0, %v1792
        %v1794 = vpop.f32.mrb[0].mxu0
        %1795 = vmatprep.mubr.f32.mxu0 %v1661
        %1796 = vmatmul.mubr.f32.gmra.mrb[0].mxu0 %v1660
        %v1797 = vpop.f32.mrb[0].mxu0
        %v1798 = vadd.f32 0.0, %v1797
        %v1799 = vpop.f32.mrb[0].mxu0
        %1800 = vmatprep.mubr.f32.mxu0 %v1663
        %1801 = vmatmul.mubr.f32.gmra.mrb[0].mxu0 %v1662
        %v1802 = vpop.f32.mrb[0].mxu0
        %v1803 = vadd.f32 0.0, %v1802
        %v1804 = vpop.f32.mrb[0].mxu0
        %1805 = vmatprep.mubr.f32.mxu0 %v1665
        %1806 = vmatmul.mubr.f32.gmra.mrb[0].mxu0 %v1664
        %v1807 = vpop.f32.mrb[0].mxu0
        %v1808 = vadd.f32 0.0, %v1807
        %v1809 = vpop.f32.mrb[0].mxu0
        %1810 = vdwg.mxu0
        %1811 = vmatprep.subr.mxu0 0.0
        %1812 = vmatpush1.xpose.msra.mxu0 %v465
        %1813 = vmatprep.subr.mxu0 0.0
        %1814 = vmatpush1.xpose.msra.mxu0 %v469
        %1815 = vmatprep.subr.mxu0 0.0
        %1816 = vmatpush1.xpose.msra.mxu0 %v473
        %1817 = vmatprep.subr.mxu0 0.0
        %1818 = vmatpush1.xpose.msra.mxu0 %v477
        %1819 = vmatprep.subr.mxu0 0.0
        %1820 = vmatpush1.xpose.msra.mxu0 %v481
        %1821 = vmatprep.subr.mxu0 0.0
        %1822 = vmatpush1.xpose.msra.mxu0 %v485
        %1823 = vmatprep.subr.mxu0 0.0
        %1824 = vmatpush1.xpose.msra.mxu0 %v489
        %1825 = vmatprep.subr.mxu0 0.0
        %1826 = vmatpush1.xpose.msra.mxu0 %v493
        %1827 = vmatprep.subr.mxu0 0.0
        %1828 = vmatpush1.xpose.msra.mxu0 %v497
        %1829 = vmatprep.subr.mxu0 0.0
        %1830 = vmatpush1.xpose.msra.mxu0 %v501
        %1831 = vmatprep.subr.mxu0 0.0
        %1832 = vmatpush1.xpose.msra.mxu0 %v505
        %1833 = vmatprep.subr.mxu0 0.0
        %1834 = vmatpush1.xpose.msra.mxu0 %v509
        %1835 = vmatprep.subr.mxu0 0.0
        %1836 = vmatpush1.xpose.msra.mxu0 %v513
        %1837 = vmatprep.subr.mxu0 0.0
        %1838 = vmatpush1.xpose.msra.mxu0 %v517
        %1839 = vmatprep.subr.mxu0 0.0
        %1840 = vmatpush1.xpose.msra.mxu0 %v521
        %1841 = vmatprep.subr.mxu0 0.0
        %1842 = vmatpush1.xpose.msra.mxu0 %v525
        %1843 = vmatprep.subr.mxu0 0.0
        %1844 = vmatpush1.xpose.msra.mxu0 %v529
        %1845 = vmatprep.subr.mxu0 0.0
        %1846 = vmatpush1.xpose.msra.mxu0 %v533
        %1847 = vmatprep.subr.mxu0 0.0
        %1848 = vmatpush1.xpose.msra.mxu0 %v537
        %1849 = vmatprep.subr.mxu0 0.0
        %1850 = vmatpush1.xpose.msra.mxu0 %v541
        %1851 = vmatprep.subr.mxu0 0.0
        %1852 = vmatpush1.xpose.msra.mxu0 %v545
        %1853 = vmatprep.subr.mxu0 0.0
        %1854 = vmatpush1.xpose.msra.mxu0 %v549
        %1855 = vmatprep.subr.mxu0 0.0
        %1856 = vmatpush1.xpose.msra.mxu0 %v553
        %1857 = vmatprep.subr.mxu0 0.0
        %1858 = vmatpush1.xpose.msra.mxu0 %v557
        %1859 = vmatprep.subr.mxu0 0.0
        %1860 = vmatpush1.xpose.msra.mxu0 %v561
        %1861 = vmatprep.subr.mxu0 0.0
        %1862 = vmatpush1.xpose.msra.mxu0 %v565
        %1863 = vmatprep.subr.mxu0 0.0
        %1864 = vmatpush1.xpose.msra.mxu0 %v569
        %1865 = vmatprep.subr.mxu0 0.0
        %1866 = vmatpush1.xpose.msra.mxu0 %v573
        %1867 = vmatprep.subr.mxu0 0.0
        %1868 = vmatpush1.xpose.msra.mxu0 %v577
        %1869 = vmatprep.subr.mxu0 0.0
        %1870 = vmatpush1.xpose.msra.mxu0 %v581
        %1871 = vmatprep.subr.mxu0 0.0
        %1872 = vmatpush1.xpose.msra.mxu0 %v585
        %1873 = vmatprep.subr.mxu0 0.0
        %1874 = vmatpush1.xpose.msra.mxu0 %v589
        %1875 = vmatprep.mubr.f32.mxu0 0.0
        %1876 = vmatmul.mubr.f32.gmra.mrb[0].mxu0 %v401
        %v1877 = vpop.f32.mrb[0].mxu0
        %v1878 = vadd.f32 0.0, %v1877
        %v1879 = vpop.f32.mrb[0].mxu0
        %v1880 = vadd.f32 0.0, %v1879
        %1881 = vmatprep.mubr.f32.mxu0 0.0
        %1882 = vmatmul.mubr.f32.gmra.mrb[0].mxu0 %v405
        %v1883 = vpop.f32.mrb[0].mxu0
        %v1884 = vadd.f32 0.0, %v1883
        %v1885 = vpop.f32.mrb[0].mxu0
        %v1886 = vadd.f32 0.0, %v1885
        %1887 = vmatprep.mubr.f32.mxu0 0.0
        %1888 = vmatmul.mubr.f32.gmra.mrb[0].mxu0 %v409
        %v1889 = vpop.f32.mrb[0].mxu0
        %v1890 = vadd.f32 0.0, %v1889
        %v1891 = vpop.f32.mrb[0].mxu0
        %v1892 = vadd.f32 0.0, %v1891
        %1893 = vmatprep.mubr.f32.mxu0 0.0
        %1894 = vmatmul.mubr.f32.gmra.mrb[0].mxu0 %v413
        %v1895 = vpop.f32.mrb[0].mxu0
        %v1896 = vadd.f32 0.0, %v1895
        %v1897 = vpop.f32.mrb[0].mxu0
        %v1898 = vadd.f32 0.0, %v1897
        %1899 = vmatprep.mubr.f32.mxu0 0.0
        %1900 = vmatmul.mubr.f32.gmra.mrb[0].mxu0 %v417
        %v1901 = vpop.f32.mrb[0].mxu0
        %v1902 = vadd.f32 0.0, %v1901
        %v1903 = vpop.f32.mrb[0].mxu0
        %v1904 = vadd.f32 0.0, %v1903
        %1905 = vmatprep.mubr.f32.mxu0 0.0
        %1906 = vmatmul.mubr.f32.gmra.mrb[0].mxu0 %v421
        %v1907 = vpop.f32.mrb[0].mxu0
        %v1908 = vadd.f32 0.0, %v1907
        %v1909 = vpop.f32.mrb[0].mxu0
        %v1910 = vadd.f32 0.0, %v1909
        %1911 = vmatprep.mubr.f32.mxu0 0.0
        %1912 = vmatmul.mubr.f32.gmra.mrb[0].mxu0 %v425
        %v1913 = vpop.f32.mrb[0].mxu0
        %v1914 = vadd.f32 0.0, %v1913
        %v1915 = vpop.f32.mrb[0].mxu0
        %v1916 = vadd.f32 0.0, %v1915
        %1917 = vmatprep.mubr.f32.mxu0 0.0
        %1918 = vmatmul.mubr.f32.gmra.mrb[0].mxu0 %v429
        %v1919 = vpop.f32.mrb[0].mxu0
        %v1920 = vadd.f32 0.0, %v1919
        %v1921 = vpop.f32.mrb[0].mxu0
        %v1922 = vadd.f32 0.0, %v1921
        %1923 = vmatprep.mubr.f32.mxu0 0.0
        %1924 = vmatmul.mubr.f32.gmra.mrb[0].mxu0 %v433
        %v1925 = vpop.f32.mrb[0].mxu0
        %v1926 = vadd.f32 0.0, %v1925
        %v1927 = vpop.f32.mrb[0].mxu0
        %v1928 = vadd.f32 0.0, %v1927
        %1929 = vmatprep.mubr.f32.mxu0 0.0
        %1930 = vmatmul.mubr.f32.gmra.mrb[0].mxu0 %v437
        %v1931 = vpop.f32.mrb[0].mxu0
        %v1932 = vadd.f32 0.0, %v1931
        %v1933 = vpop.f32.mrb[0].mxu0
        %v1934 = vadd.f32 0.0, %v1933
        %1935 = vmatprep.mubr.f32.mxu0 0.0
        %1936 = vmatmul.mubr.f32.gmra.mrb[0].mxu0 %v441
        %v1937 = vpop.f32.mrb[0].mxu0
        %v1938 = vadd.f32 0.0, %v1937
        %v1939 = vpop.f32.mrb[0].mxu0
        %v1940 = vadd.f32 0.0, %v1939
        %1941 = vmatprep.mubr.f32.mxu0 0.0
        %1942 = vmatmul.mubr.f32.gmra.mrb[0].mxu0 %v445
        %v1943 = vpop.f32.mrb[0].mxu0
        %v1944 = vadd.f32 0.0, %v1943
        %v1945 = vpop.f32.mrb[0].mxu0
        %v1946 = vadd.f32 0.0, %v1945
        %1947 = vmatprep.mubr.f32.mxu0 0.0
        %1948 = vmatmul.mubr.f32.gmra.mrb[0].mxu0 %v449
        %v1949 = vpop.f32.mrb[0].mxu0
        %v1950 = vadd.f32 0.0, %v1949
        %v1951 = vpop.f32.mrb[0].mxu0
        %v1952 = vadd.f32 0.0, %v1951
        %1953 = vmatprep.mubr.f32.mxu0 0.0
        %1954 = vmatmul.mubr.f32.gmra.mrb[0].mxu0 %v453
        %v1955 = vpop.f32.mrb[0].mxu0
        %v1956 = vadd.f32 0.0, %v1955
        %v1957 = vpop.f32.mrb[0].mxu0
        %v1958 = vadd.f32 0.0, %v1957
        %1959 = vmatprep.mubr.f32.mxu0 0.0
        %1960 = vmatmul.mubr.f32.gmra.mrb[0].mxu0 %v457
        %v1961 = vpop.f32.mrb[0].mxu0
        %v1962 = vadd.f32 0.0, %v1961
        %v1963 = vpop.f32.mrb[0].mxu0
        %v1964 = vadd.f32 0.0, %v1963
        %1965 = vmatprep.mubr.f32.mxu0 0.0
        %1966 = vmatmul.mubr.f32.gmra.mrb[0].mxu0 %v461
        %v1967 = vpop.f32.mrb[0].mxu0
        %v1968 = vadd.f32 0.0, %v1967
        %v1969 = vpop.f32.mrb[0].mxu0
        %v1970 = vadd.f32 0.0, %v1969
        %1971 = vdwg.mxu0
        %v1972 = vmax.f32 %v1878, %v1880
        %1973 = vmax.xlane.f32.xlu0 %v1972
        %v1974 = vpop.xlane.xlu0 %1973
        %v1975 = vmax.f32 %v1884, %v1886
        %1976 = vmax.xlane.f32.xlu0 %v1975
        %v1977 = vpop.xlane.xlu0 %1976
        %v1978 = vmax.f32 %v1890, %v1892
        %1979 = vmax.xlane.f32.xlu0 %v1978
        %v1980 = vpop.xlane.xlu0 %1979
        %v1981 = vmax.f32 %v1896, %v1898
        %1982 = vmax.xlane.f32.xlu0 %v1981
        %v1983 = vpop.xlane.xlu0 %1982
        %v1984 = vmax.f32 %v1902, %v1904
        %1985 = vmax.xlane.f32.xlu0 %v1984
        %v1986 = vpop.xlane.xlu0 %1985
        %v1987 = vmax.f32 %v1908, %v1910
        %1988 = vmax.xlane.f32.xlu0 %v1987
        %v1989 = vpop.xlane.xlu0 %1988
        %v1990 = vmax.f32 %v1914, %v1916
        %1991 = vmax.xlane.f32.xlu0 %v1990
        %v1992 = vpop.xlane.xlu0 %1991
        %v1993 = vmax.f32 %v1920, %v1922
        %1994 = vmax.xlane.f32.xlu0 %v1993
        %v1995 = vpop.xlane.xlu0 %1994
        %v1996 = vmax.f32 %v1926, %v1928
        %1997 = vmax.xlane.f32.xlu0 %v1996
        %v1998 = vpop.xlane.xlu0 %1997
        %v1999 = vmax.f32 %v1932, %v1934
        %2000 = vmax.xlane.f32.xlu0 %v1999
        %v2001 = vpop.xlane.xlu0 %2000
        %v2002 = vmax.f32 %v1938, %v1940
        %2003 = vmax.xlane.f32.xlu0 %v2002
        %v2004 = vpop.xlane.xlu0 %2003
        %v2005 = vmax.f32 %v1944, %v1946
        %2006 = vmax.xlane.f32.xlu0 %v2005
        %v2007 = vpop.xlane.xlu0 %2006
        %v2008 = vmax.f32 %v1950, %v1952
        %2009 = vmax.xlane.f32.xlu0 %v2008
        %v2010 = vpop.xlane.xlu0 %2009
        %v2011 = vmax.f32 %v1956, %v1958
        %2012 = vmax.xlane.f32.xlu0 %v2011
        %v2013 = vpop.xlane.xlu0 %2012
        %v2014 = vmax.f32 %v1962, %v1964
        %2015 = vmax.xlane.f32.xlu0 %v2014
        %v2016 = vpop.xlane.xlu0 %2015
        %v2017 = vmax.f32 %v1968, %v1970
        %2018 = vmax.xlane.f32.xlu0 %v2017
        %v2019 = vpop.xlane.xlu0 %2018
        %v2020 = vsub.f32 %v1878, %v1974
        %v2021 = vsub.f32 %v1880, %v1974
        %v2022 = vsub.f32 %v1884, %v1977
        %v2023 = vsub.f32 %v1886, %v1977
        %v2024 = vsub.f32 %v1890, %v1980
        %v2025 = vsub.f32 %v1892, %v1980
        %v2026 = vsub.f32 %v1896, %v1983
        %v2027 = vsub.f32 %v1898, %v1983
        %v2028 = vsub.f32 %v1902, %v1986
        %v2029 = vsub.f32 %v1904, %v1986
        %v2030 = vsub.f32 %v1908, %v1989
        %v2031 = vsub.f32 %v1910, %v1989
        %v2032 = vsub.f32 %v1914, %v1992
        %v2033 = vsub.f32 %v1916, %v1992
        %v2034 = vsub.f32 %v1920, %v1995
        %v2035 = vsub.f32 %v1922, %v1995
        %v2036 = vsub.f32 %v1926, %v1998
        %v2037 = vsub.f32 %v1928, %v1998
        %v2038 = vsub.f32 %v1932, %v2001
        %v2039 = vsub.f32 %v1934, %v2001
        %v2040 = vsub.f32 %v1938, %v2004
        %v2041 = vsub.f32 %v1940, %v2004
        %v2042 = vsub.f32 %v1944, %v2007
        %v2043 = vsub.f32 %v1946, %v2007
        %v2044 = vsub.f32 %v1950, %v2010
        %v2045 = vsub.f32 %v1952, %v2010
        %v2046 = vsub.f32 %v1956, %v2013
        %v2047 = vsub.f32 %v1958, %v2013
        %v2048 = vsub.f32 %v1962, %v2016
        %v2049 = vsub.f32 %v1964, %v2016
        %v2050 = vsub.f32 %v1968, %v2019
        %v2051 = vsub.f32 %v1970, %v2019
        %v2052 = vmul.f32 %v2020, 1.442695
        %v2053 = vpow.pop %v2052
        %v2054 = vmul.f32 %v2021, 1.442695
        %v2055 = vpow.pop %v2054
        %v2056 = vmul.f32 %v2022, 1.442695
        %v2057 = vpow.pop %v2056
        %v2058 = vmul.f32 %v2023, 1.442695
        %v2059 = vpow.pop %v2058
        %v2060 = vmul.f32 %v2024, 1.442695
        %v2061 = vpow.pop %v2060
        %v2062 = vmul.f32 %v2025, 1.442695
        %v2063 = vpow.pop %v2062
        %v2064 = vmul.f32 %v2026, 1.442695
        %v2065 = vpow.pop %v2064
        %v2066 = vmul.f32 %v2027, 1.442695
        %v2067 = vpow.pop %v2066
        %v2068 = vmul.f32 %v2028, 1.442695
        %v2069 = vpow.pop %v2068
        %v2070 = vmul.f32 %v2029, 1.442695
        %v2071 = vpow.pop %v2070
        %v2072 = vmul.f32 %v2030, 1.442695
        %v2073 = vpow.pop %v2072
        %v2074 = vmul.f32 %v2031, 1.442695
        %v2075 = vpow.pop %v2074
        %v2076 = vmul.f32 %v2032, 1.442695
        %v2077 = vpow.pop %v2076
        %v2078 = vmul.f32 %v2033, 1.442695
        %v2079 = vpow.pop %v2078
        %v2080 = vmul.f32 %v2034, 1.442695
        %v2081 = vpow.pop %v2080
        %v2082 = vmul.f32 %v2035, 1.442695
        %v2083 = vpow.pop %v2082
        %v2084 = vmul.f32 %v2036, 1.442695
        %v2085 = vpow.pop %v2084
        %v2086 = vmul.f32 %v2037, 1.442695
        %v2087 = vpow.pop %v2086
        %v2088 = vmul.f32 %v2038, 1.442695
        %v2089 = vpow.pop %v2088
        %v2090 = vmul.f32 %v2039, 1.442695
        %v2091 = vpow.pop %v2090
        %v2092 = vmul.f32 %v2040, 1.442695
        %v2093 = vpow.pop %v2092
        %v2094 = vmul.f32 %v2041, 1.442695
        %v2095 = vpow.pop %v2094
        %v2096 = vmul.f32 %v2042, 1.442695
        %v2097 = vpow.pop %v2096
        %v2098 = vmul.f32 %v2043, 1.442695
        %v2099 = vpow.pop %v2098
        %v2100 = vmul.f32 %v2044, 1.442695
        %v2101 = vpow.pop %v2100
        %v2102 = vmul.f32 %v2045, 1.442695
        %v2103 = vpow.pop %v2102
        %v2104 = vmul.f32 %v2046, 1.442695
        %v2105 = vpow.pop %v2104
        %v2106 = vmul.f32 %v2047, 1.442695
        %v2107 = vpow.pop %v2106
        %v2108 = vmul.f32 %v2048, 1.442695
        %v2109 = vpow.pop %v2108
        %v2110 = vmul.f32 %v2049, 1.442695
        %v2111 = vpow.pop %v2110
        %v2112 = vmul.f32 %v2050, 1.442695
        %v2113 = vpow.pop %v2112
        %v2114 = vmul.f32 %v2051, 1.442695
        %v2115 = vpow.pop %v2114
        %v2116 = vadd.f32 %v2053, %v2055
        %2117 = vadd.xlane.f32.xlu0 %v2116
        %v2118 = vpop.xlane.xlu0 %2117
        %v2119 = vadd.f32 %v2057, %v2059
        %2120 = vadd.xlane.f32.xlu0 %v2119
        %v2121 = vpop.xlane.xlu0 %2120
        %v2122 = vadd.f32 %v2061, %v2063
        %2123 = vadd.xlane.f32.xlu0 %v2122
        %v2124 = vpop.xlane.xlu0 %2123
        %v2125 = vadd.f32 %v2065, %v2067
        %2126 = vadd.xlane.f32.xlu0 %v2125
        %v2127 = vpop.xlane.xlu0 %2126
        %v2128 = vadd.f32 %v2069, %v2071
        %2129 = vadd.xlane.f32.xlu0 %v2128
        %v2130 = vpop.xlane.xlu0 %2129
        %v2131 = vadd.f32 %v2073, %v2075
        %2132 = vadd.xlane.f32.xlu0 %v2131
        %v2133 = vpop.xlane.xlu0 %2132
        %v2134 = vadd.f32 %v2077, %v2079
        %2135 = vadd.xlane.f32.xlu0 %v2134
        %v2136 = vpop.xlane.xlu0 %2135
        %v2137 = vadd.f32 %v2081, %v2083
        %2138 = vadd.xlane.f32.xlu0 %v2137
        %v2139 = vpop.xlane.xlu0 %2138
        %v2140 = vadd.f32 %v2085, %v2087
        %2141 = vadd.xlane.f32.xlu0 %v2140
        %v2142 = vpop.xlane.xlu0 %2141
        %v2143 = vadd.f32 %v2089, %v2091
        %2144 = vadd.xlane.f32.xlu0 %v2143
        %v2145 = vpop.xlane.xlu0 %2144
        %v2146 = vadd.f32 %v2093, %v2095
        %2147 = vadd.xlane.f32.xlu0 %v2146
        %v2148 = vpop.xlane.xlu0 %2147
        %v2149 = vadd.f32 %v2097, %v2099
        %2150 = vadd.xlane.f32.xlu0 %v2149
        %v2151 = vpop.xlane.xlu0 %2150
        %v2152 = vadd.f32 %v2101, %v2103
        %2153 = vadd.xlane.f32.xlu0 %v2152
        %v2154 = vpop.xlane.xlu0 %2153
        %v2155 = vadd.f32 %v2105, %v2107
        %2156 = vadd.xlane.f32.xlu0 %v2155
        %v2157 = vpop.xlane.xlu0 %2156
        %v2158 = vadd.f32 %v2109, %v2111
        %2159 = vadd.xlane.f32.xlu0 %v2158
        %v2160 = vpop.xlane.xlu0 %2159
        %v2161 = vadd.f32 %v2113, %v2115
        %2162 = vadd.xlane.f32.xlu0 %v2161
        %v2163 = vpop.xlane.xlu0 %2162
        %v2164 = vrcp.pop %v2118
        %v2165 = vrcp.pop %v2121
        %v2166 = vrcp.pop %v2124
        %v2167 = vrcp.pop %v2127
        %v2168 = vrcp.pop %v2130
        %v2169 = vrcp.pop %v2133
        %v2170 = vrcp.pop %v2136
        %v2171 = vrcp.pop %v2139
        %v2172 = vrcp.pop %v2142
        %v2173 = vrcp.pop %v2145
        %v2174 = vrcp.pop %v2148
        %v2175 = vrcp.pop %v2151
        %v2176 = vrcp.pop %v2154
        %v2177 = vrcp.pop %v2157
        %v2178 = vrcp.pop %v2160
        %v2179 = vrcp.pop %v2163
        %v2180 = vmul.f32 %v2053, %v2164
        %v2181 = vmul.f32 %v2055, %v2164
        %v2182 = vmul.f32 %v2057, %v2165
        %v2183 = vmul.f32 %v2059, %v2165
        %v2184 = vmul.f32 %v2061, %v2166
        %v2185 = vmul.f32 %v2063, %v2166
        %v2186 = vmul.f32 %v2065, %v2167
        %v2187 = vmul.f32 %v2067, %v2167
        %v2188 = vmul.f32 %v2069, %v2168
        %v2189 = vmul.f32 %v2071, %v2168
        %v2190 = vmul.f32 %v2073, %v2169
        %v2191 = vmul.f32 %v2075, %v2169
        %v2192 = vmul.f32 %v2077, %v2170
        %v2193 = vmul.f32 %v2079, %v2170
        %v2194 = vmul.f32 %v2081, %v2171
        %v2195 = vmul.f32 %v2083, %v2171
        %v2196 = vmul.f32 %v2085, %v2172
        %v2197 = vmul.f32 %v2087, %v2172
        %v2198 = vmul.f32 %v2089, %v2173
        %v2199 = vmul.f32 %v2091, %v2173
        %v2200 = vmul.f32 %v2093, %v2174
        %v2201 = vmul.f32 %v2095, %v2174
        %v2202 = vmul.f32 %v2097, %v2175
        %v2203 = vmul.f32 %v2099, %v2175
        %v2204 = vmul.f32 %v2101, %v2176
        %v2205 = vmul.f32 %v2103, %v2176
        %v2206 = vmul.f32 %v2105, %v2177
        %v2207 = vmul.f32 %v2107, %v2177
        %v2208 = vmul.f32 %v2109, %v2178
        %v2209 = vmul.f32 %v2111, %v2178
        %v2210 = vmul.f32 %v2113, %v2179
        %v2211 = vmul.f32 %v2115, %v2179
        %2212 = vmatprep.subr.mxu0 0.0
        %2213 = vmatpush1.msra.mxu0 %v593
        %2214 = vmatprep.subr.mxu0 0.0
        %2215 = vmatpush1.msra.mxu0 %v597
        %2216 = vmatprep.subr.mxu0 0.0
        %2217 = vmatpush1.msra.mxu0 %v601
        %2218 = vmatprep.subr.mxu0 0.0
        %2219 = vmatpush1.msra.mxu0 %v605
        %2220 = vmatprep.subr.mxu0 0.0
        %2221 = vmatpush1.msra.mxu0 %v609
        %2222 = vmatprep.subr.mxu0 0.0
        %2223 = vmatpush1.msra.mxu0 %v613
        %2224 = vmatprep.subr.mxu0 0.0
        %2225 = vmatpush1.msra.mxu0 %v617
        %2226 = vmatprep.subr.mxu0 0.0
        %2227 = vmatpush1.msra.mxu0 %v621
        %2228 = vmatprep.subr.mxu0 0.0
        %2229 = vmatpush1.msra.mxu0 %v625
        %2230 = vmatprep.subr.mxu0 0.0
        %2231 = vmatpush1.msra.mxu0 %v629
        %2232 = vmatprep.subr.mxu0 0.0
        %2233 = vmatpush1.msra.mxu0 %v633
        %2234 = vmatprep.subr.mxu0 0.0
        %2235 = vmatpush1.msra.mxu0 %v637
        %2236 = vmatprep.subr.mxu0 0.0
        %2237 = vmatpush1.msra.mxu0 %v641
        %2238 = vmatprep.subr.mxu0 0.0
        %2239 = vmatpush1.msra.mxu0 %v645
        %2240 = vmatprep.subr.mxu0 0.0
        %2241 = vmatpush1.msra.mxu0 %v649
        %2242 = vmatprep.subr.mxu0 0.0
        %2243 = vmatpush1.msra.mxu0 %v653
        %2244 = vmatprep.subr.mxu0 0.0
        %2245 = vmatpush1.msra.mxu0 %v657
        %2246 = vmatprep.subr.mxu0 0.0
        %2247 = vmatpush1.msra.mxu0 %v661
        %2248 = vmatprep.subr.mxu0 0.0
        %2249 = vmatpush1.msra.mxu0 %v665
        %2250 = vmatprep.subr.mxu0 0.0
        %2251 = vmatpush1.msra.mxu0 %v669
        %2252 = vmatprep.subr.mxu0 0.0
        %2253 = vmatpush1.msra.mxu0 %v673
        %2254 = vmatprep.subr.mxu0 0.0
        %2255 = vmatpush1.msra.mxu0 %v677
        %2256 = vmatprep.subr.mxu0 0.0
        %2257 = vmatpush1.msra.mxu0 %v681
        %2258 = vmatprep.subr.mxu0 0.0
        %2259 = vmatpush1.msra.mxu0 %v685
        %2260 = vmatprep.subr.mxu0 0.0
        %2261 = vmatpush1.msra.mxu0 %v689
        %2262 = vmatprep.subr.mxu0 0.0
        %2263 = vmatpush1.msra.mxu0 %v693
        %2264 = vmatprep.subr.mxu0 0.0
        %2265 = vmatpush1.msra.mxu0 %v697
        %2266 = vmatprep.subr.mxu0 0.0
        %2267 = vmatpush1.msra.mxu0 %v701
        %2268 = vmatprep.subr.mxu0 0.0
        %2269 = vmatpush1.msra.mxu0 %v705
        %2270 = vmatprep.subr.mxu0 0.0
        %2271 = vmatpush1.msra.mxu0 %v709
        %2272 = vmatprep.subr.mxu0 0.0
        %2273 = vmatpush1.msra.mxu0 %v713
        %2274 = vmatprep.subr.mxu0 0.0
        %2275 = vmatpush1.msra.mxu0 %v717
        %2276 = vmatprep.mubr.f32.mxu0 %v2181
        %2277 = vmatmul.mubr.f32.gmra.mrb[0].mxu0 %v2180
        %v2278 = vpop.f32.mrb[0].mxu0
        %v2279 = vadd.f32 0.0, %v2278
        %v2280 = vpop.f32.mrb[0].mxu0
        %2281 = vmatprep.mubr.f32.mxu0 %v2183
        %2282 = vmatmul.mubr.f32.gmra.mrb[0].mxu0 %v2182
        %v2283 = vpop.f32.mrb[0].mxu0
        %v2284 = vadd.f32 0.0, %v2283
        %v2285 = vpop.f32.mrb[0].mxu0
        %2286 = vmatprep.mubr.f32.mxu0 %v2185
        %2287 = vmatmul.mubr.f32.gmra.mrb[0].mxu0 %v2184
        %v2288 = vpop.f32.mrb[0].mxu0
        %v2289 = vadd.f32 0.0, %v2288
        %v2290 = vpop.f32.mrb[0].mxu0
        %2291 = vmatprep.mubr.f32.mxu0 %v2187
        %2292 = vmatmul.mubr.f32.gmra.mrb[0].mxu0 %v2186
        %v2293 = vpop.f32.mrb[0].mxu0
        %v2294 = vadd.f32 0.0, %v2293
        %v2295 = vpop.f32.mrb[0].mxu0
        %2296 = vmatprep.mubr.f32.mxu0 %v2189
        %2297 = vmatmul.mubr.f32.gmra.mrb[0].mxu0 %v2188
        %v2298 = vpop.f32.mrb[0].mxu0
        %v2299 = vadd.f32 0.0, %v2298
        %v2300 = vpop.f32.mrb[0].mxu0
        %2301 = vmatprep.mubr.f32.mxu0 %v2191
        %2302 = vmatmul.mubr.f32.gmra.mrb[0].mxu0 %v2190
        %v2303 = vpop.f32.mrb[0].mxu0
        %v2304 = vadd.f32 0.0, %v2303
        %v2305 = vpop.f32.mrb[0].mxu0
        %2306 = vmatprep.mubr.f32.mxu0 %v2193
        %2307 = vmatmul.mubr.f32.gmra.mrb[0].mxu0 %v2192
        %v2308 = vpop.f32.mrb[0].mxu0
        %v2309 = vadd.f32 0.0, %v2308
        %v2310 = vpop.f32.mrb[0].mxu0
        %2311 = vmatprep.mubr.f32.mxu0 %v2195
        %2312 = vmatmul.mubr.f32.gmra.mrb[0].mxu0 %v2194
        %v2313 = vpop.f32.mrb[0].mxu0
        %v2314 = vadd.f32 0.0, %v2313
        %v2315 = vpop.f32.mrb[0].mxu0
        %2316 = vmatprep.mubr.f32.mxu0 %v2197
        %2317 = vmatmul.mubr.f32.gmra.mrb[0].mxu0 %v2196
        %v2318 = vpop.f32.mrb[0].mxu0
        %v2319 = vadd.f32 0.0, %v2318
        %v2320 = vpop.f32.mrb[0].mxu0
        %2321 = vmatprep.mubr.f32.mxu0 %v2199
        %2322 = vmatmul.mubr.f32.gmra.mrb[0].mxu0 %v2198
        %v2323 = vpop.f32.mrb[0].mxu0
        %v2324 = vadd.f32 0.0, %v2323
        %v2325 = vpop.f32.mrb[0].mxu0
        %2326 = vmatprep.mubr.f32.mxu0 %v2201
        %2327 = vmatmul.mubr.f32.gmra.mrb[0].mxu0 %v2200
        %v2328 = vpop.f32.mrb[0].mxu0
        %v2329 = vadd.f32 0.0, %v2328
        %v2330 = vpop.f32.mrb[0].mxu0
        %2331 = vmatprep.mubr.f32.mxu0 %v2203
        %2332 = vmatmul.mubr.f32.gmra.mrb[0].mxu0 %v2202
        %v2333 = vpop.f32.mrb[0].mxu0
        %v2334 = vadd.f32 0.0, %v2333
        %v2335 = vpop.f32.mrb[0].mxu0
        %2336 = vmatprep.mubr.f32.mxu0 %v2205
        %2337 = vmatmul.mubr.f32.gmra.mrb[0].mxu0 %v2204
        %v2338 = vpop.f32.mrb[0].mxu0
        %v2339 = vadd.f32 0.0, %v2338
        %v2340 = vpop.f32.mrb[0].mxu0
        %2341 = vmatprep.mubr.f32.mxu0 %v2207
        %2342 = vmatmul.mubr.f32.gmra.mrb[0].mxu0 %v2206
        %v2343 = vpop.f32.mrb[0].mxu0
        %v2344 = vadd.f32 0.0, %v2343
        %v2345 = vpop.f32.mrb[0].mxu0
        %2346 = vmatprep.mubr.f32.mxu0 %v2209
        %2347 = vmatmul.mubr.f32.gmra.mrb[0].mxu0 %v2208
        %v2348 = vpop.f32.mrb[0].mxu0
        %v2349 = vadd.f32 0.0, %v2348
        %v2350 = vpop.f32.mrb[0].mxu0
        %2351 = vmatprep.mubr.f32.mxu0 %v2211
        %2352 = vmatmul.mubr.f32.gmra.mrb[0].mxu0 %v2210
        %v2353 = vpop.f32.mrb[0].mxu0
        %v2354 = vadd.f32 0.0, %v2353
        %v2355 = vpop.f32.mrb[0].mxu0
        %2356 = vdwg.mxu0
        %2357 = vmatprep.subr.mxu0 0.0
        %2358 = vmatpush1.xpose.msra.mxu0 %v466
        %2359 = vmatprep.subr.mxu0 0.0
        %2360 = vmatpush1.xpose.msra.mxu0 %v470
        %2361 = vmatprep.subr.mxu0 0.0
        %2362 = vmatpush1.xpose.msra.mxu0 %v474
        %2363 = vmatprep.subr.mxu0 0.0
        %2364 = vmatpush1.xpose.msra.mxu0 %v478
        %2365 = vmatprep.subr.mxu0 0.0
        %2366 = vmatpush1.xpose.msra.mxu0 %v482
        %2367 = vmatprep.subr.mxu0 0.0
        %2368 = vmatpush1.xpose.msra.mxu0 %v486
        %2369 = vmatprep.subr.mxu0 0.0
        %2370 = vmatpush1.xpose.msra.mxu0 %v490
        %2371 = vmatprep.subr.mxu0 0.0
        %2372 = vmatpush1.xpose.msra.mxu0 %v494
        %2373 = vmatprep.subr.mxu0 0.0
        %2374 = vmatpush1.xpose.msra.mxu0 %v498
        %2375 = vmatprep.subr.mxu0 0.0
        %2376 = vmatpush1.xpose.msra.mxu0 %v502
        %2377 = vmatprep.subr.mxu0 0.0
        %2378 = vmatpush1.xpose.msra.mxu0 %v506
        %2379 = vmatprep.subr.mxu0 0.0
        %2380 = vmatpush1.xpose.msra.mxu0 %v510
        %2381 = vmatprep.subr.mxu0 0.0
        %2382 = vmatpush1.xpose.msra.mxu0 %v514
        %2383 = vmatprep.subr.mxu0 0.0
        %2384 = vmatpush1.xpose.msra.mxu0 %v518
        %2385 = vmatprep.subr.mxu0 0.0
        %2386 = vmatpush1.xpose.msra.mxu0 %v522
        %2387 = vmatprep.subr.mxu0 0.0
        %2388 = vmatpush1.xpose.msra.mxu0 %v526
        %2389 = vmatprep.subr.mxu0 0.0
        %2390 = vmatpush1.xpose.msra.mxu0 %v530
        %2391 = vmatprep.subr.mxu0 0.0
        %2392 = vmatpush1.xpose.msra.mxu0 %v534
        %2393 = vmatprep.subr.mxu0 0.0
        %2394 = vmatpush1.xpose.msra.mxu0 %v538
        %2395 = vmatprep.subr.mxu0 0.0
        %2396 = vmatpush1.xpose.msra.mxu0 %v542
        %2397 = vmatprep.subr.mxu0 0.0
        %2398 = vmatpush1.xpose.msra.mxu0 %v546
        %2399 = vmatprep.subr.mxu0 0.0
        %2400 = vmatpush1.xpose.msra.mxu0 %v550
        %2401 = vmatprep.subr.mxu0 0.0
        %2402 = vmatpush1.xpose.msra.mxu0 %v554
        %2403 = vmatprep.subr.mxu0 0.0
        %2404 = vmatpush1.xpose.msra.mxu0 %v558
        %2405 = vmatprep.subr.mxu0 0.0
        %2406 = vmatpush1.xpose.msra.mxu0 %v562
        %2407 = vmatprep.subr.mxu0 0.0
        %2408 = vmatpush1.xpose.msra.mxu0 %v566
        %2409 = vmatprep.subr.mxu0 0.0
        %2410 = vmatpush1.xpose.msra.mxu0 %v570
        %2411 = vmatprep.subr.mxu0 0.0
        %2412 = vmatpush1.xpose.msra.mxu0 %v574
        %2413 = vmatprep.subr.mxu0 0.0
        %2414 = vmatpush1.xpose.msra.mxu0 %v578
        %2415 = vmatprep.subr.mxu0 0.0
        %2416 = vmatpush1.xpose.msra.mxu0 %v582
        %2417 = vmatprep.subr.mxu0 0.0
        %2418 = vmatpush1.xpose.msra.mxu0 %v586
        %2419 = vmatprep.subr.mxu0 0.0
        %2420 = vmatpush1.xpose.msra.mxu0 %v590
        %2421 = vmatprep.mubr.f32.mxu0 0.0
        %2422 = vmatmul.mubr.f32.gmra.mrb[0].mxu0 %v402
        %v2423 = vpop.f32.mrb[0].mxu0
        %v2424 = vadd.f32 0.0, %v2423
        %v2425 = vpop.f32.mrb[0].mxu0
        %v2426 = vadd.f32 0.0, %v2425
        %2427 = vmatprep.mubr.f32.mxu0 0.0
        %2428 = vmatmul.mubr.f32.gmra.mrb[0].mxu0 %v406
        %v2429 = vpop.f32.mrb[0].mxu0
        %v2430 = vadd.f32 0.0, %v2429
        %v2431 = vpop.f32.mrb[0].mxu0
        %v2432 = vadd.f32 0.0, %v2431
        %2433 = vmatprep.mubr.f32.mxu0 0.0
        %2434 = vmatmul.mubr.f32.gmra.mrb[0].mxu0 %v410
        %v2435 = vpop.f32.mrb[0].mxu0
        %v2436 = vadd.f32 0.0, %v2435
        %v2437 = vpop.f32.mrb[0].mxu0
        %v2438 = vadd.f32 0.0, %v2437
        %2439 = vmatprep.mubr.f32.mxu0 0.0
        %2440 = vmatmul.mubr.f32.gmra.mrb[0].mxu0 %v414
        %v2441 = vpop.f32.mrb[0].mxu0
        %v2442 = vadd.f32 0.0, %v2441
        %v2443 = vpop.f32.mrb[0].mxu0
        %v2444 = vadd.f32 0.0, %v2443
        %2445 = vmatprep.mubr.f32.mxu0 0.0
        %2446 = vmatmul.mubr.f32.gmra.mrb[0].mxu0 %v418
        %v2447 = vpop.f32.mrb[0].mxu0
        %v2448 = vadd.f32 0.0, %v2447
        %v2449 = vpop.f32.mrb[0].mxu0
        %v2450 = vadd.f32 0.0, %v2449
        %2451 = vmatprep.mubr.f32.mxu0 0.0
        %2452 = vmatmul.mubr.f32.gmra.mrb[0].mxu0 %v422
        %v2453 = vpop.f32.mrb[0].mxu0
        %v2454 = vadd.f32 0.0, %v2453
        %v2455 = vpop.f32.mrb[0].mxu0
        %v2456 = vadd.f32 0.0, %v2455
        %2457 = vmatprep.mubr.f32.mxu0 0.0
        %2458 = vmatmul.mubr.f32.gmra.mrb[0].mxu0 %v426
        %v2459 = vpop.f32.mrb[0].mxu0
        %v2460 = vadd.f32 0.0, %v2459
        %v2461 = vpop.f32.mrb[0].mxu0
        %v2462 = vadd.f32 0.0, %v2461
        %2463 = vmatprep.mubr.f32.mxu0 0.0
        %2464 = vmatmul.mubr.f32.gmra.mrb[0].mxu0 %v430
        %v2465 = vpop.f32.mrb[0].mxu0
        %v2466 = vadd.f32 0.0, %v2465
        %v2467 = vpop.f32.mrb[0].mxu0
        %v2468 = vadd.f32 0.0, %v2467
        %2469 = vmatprep.mubr.f32.mxu0 0.0
        %2470 = vmatmul.mubr.f32.gmra.mrb[0].mxu0 %v434
        %v2471 = vpop.f32.mrb[0].mxu0
        %v2472 = vadd.f32 0.0, %v2471
        %v2473 = vpop.f32.mrb[0].mxu0
        %v2474 = vadd.f32 0.0, %v2473
        %2475 = vmatprep.mubr.f32.mxu0 0.0
        %2476 = vmatmul.mubr.f32.gmra.mrb[0].mxu0 %v438
        %v2477 = vpop.f32.mrb[0].mxu0
        %v2478 = vadd.f32 0.0, %v2477
        %v2479 = vpop.f32.mrb[0].mxu0
        %v2480 = vadd.f32 0.0, %v2479
        %2481 = vmatprep.mubr.f32.mxu0 0.0
        %2482 = vmatmul.mubr.f32.gmra.mrb[0].mxu0 %v442
        %v2483 = vpop.f32.mrb[0].mxu0
        %v2484 = vadd.f32 0.0, %v2483
        %v2485 = vpop.f32.mrb[0].mxu0
        %v2486 = vadd.f32 0.0, %v2485
        %2487 = vmatprep.mubr.f32.mxu0 0.0
        %2488 = vmatmul.mubr.f32.gmra.mrb[0].mxu0 %v446
        %v2489 = vpop.f32.mrb[0].mxu0
        %v2490 = vadd.f32 0.0, %v2489
        %v2491 = vpop.f32.mrb[0].mxu0
        %v2492 = vadd.f32 0.0, %v2491
        %2493 = vmatprep.mubr.f32.mxu0 0.0
        %2494 = vmatmul.mubr.f32.gmra.mrb[0].mxu0 %v450
        %v2495 = vpop.f32.mrb[0].mxu0
        %v2496 = vadd.f32 0.0, %v2495
        %v2497 = vpop.f32.mrb[0].mxu0
        %v2498 = vadd.f32 0.0, %v2497
        %2499 = vmatprep.mubr.f32.mxu0 0.0
        %2500 = vmatmul.mubr.f32.gmra.mrb[0].mxu0 %v454
        %v2501 = vpop.f32.mrb[0].mxu0
        %v2502 = vadd.f32 0.0, %v2501
        %v2503 = vpop.f32.mrb[0].mxu0
        %v2504 = vadd.f32 0.0, %v2503
        %2505 = vmatprep.mubr.f32.mxu0 0.0
        %2506 = vmatmul.mubr.f32.gmra.mrb[0].mxu0 %v458
        %v2507 = vpop.f32.mrb[0].mxu0
        %v2508 = vadd.f32 0.0, %v2507
        %v2509 = vpop.f32.mrb[0].mxu0
        %v2510 = vadd.f32 0.0, %v2509
        %2511 = vmatprep.mubr.f32.mxu0 0.0
        %2512 = vmatmul.mubr.f32.gmra.mrb[0].mxu0 %v462
        %v2513 = vpop.f32.mrb[0].mxu0
        %v2514 = vadd.f32 0.0, %v2513
        %v2515 = vpop.f32.mrb[0].mxu0
        %v2516 = vadd.f32 0.0, %v2515
        %2517 = vdwg.mxu0
        %v2518 = vmax.f32 %v2424, %v2426
        %2519 = vmax.xlane.f32.xlu0 %v2518
        %v2520 = vpop.xlane.xlu0 %2519
        %v2521 = vmax.f32 %v2430, %v2432
        %2522 = vmax.xlane.f32.xlu0 %v2521
        %v2523 = vpop.xlane.xlu0 %2522
        %v2524 = vmax.f32 %v2436, %v2438
        %2525 = vmax.xlane.f32.xlu0 %v2524
        %v2526 = vpop.xlane.xlu0 %2525
        %v2527 = vmax.f32 %v2442, %v2444
        %2528 = vmax.xlane.f32.xlu0 %v2527
        %v2529 = vpop.xlane.xlu0 %2528
        %v2530 = vmax.f32 %v2448, %v2450
        %2531 = vmax.xlane.f32.xlu0 %v2530
        %v2532 = vpop.xlane.xlu0 %2531
        %v2533 = vmax.f32 %v2454, %v2456
        %2534 = vmax.xlane.f32.xlu0 %v2533
        %v2535 = vpop.xlane.xlu0 %2534
        %v2536 = vmax.f32 %v2460, %v2462
        %2537 = vmax.xlane.f32.xlu0 %v2536
        %v2538 = vpop.xlane.xlu0 %2537
        %v2539 = vmax.f32 %v2466, %v2468
        %2540 = vmax.xlane.f32.xlu0 %v2539
        %v2541 = vpop.xlane.xlu0 %2540
        %v2542 = vmax.f32 %v2472, %v2474
        %2543 = vmax.xlane.f32.xlu0 %v2542
        %v2544 = vpop.xlane.xlu0 %2543
        %v2545 = vmax.f32 %v2478, %v2480
        %2546 = vmax.xlane.f32.xlu0 %v2545
        %v2547 = vpop.xlane.xlu0 %2546
        %v2548 = vmax.f32 %v2484, %v2486
        %2549 = vmax.xlane.f32.xlu0 %v2548
        %v2550 = vpop.xlane.xlu0 %2549
        %v2551 = vmax.f32 %v2490, %v2492
        %2552 = vmax.xlane.f32.xlu0 %v2551
        %v2553 = vpop.xlane.xlu0 %2552
        %v2554 = vmax.f32 %v2496, %v2498
        %2555 = vmax.xlane.f32.xlu0 %v2554
        %v2556 = vpop.xlane.xlu0 %2555
        %v2557 = vmax.f32 %v2502, %v2504
        %2558 = vmax.xlane.f32.xlu0 %v2557
        %v2559 = vpop.xlane.xlu0 %2558
        %v2560 = vmax.f32 %v2508, %v2510
        %2561 = vmax.xlane.f32.xlu0 %v2560
        %v2562 = vpop.xlane.xlu0 %2561
        %v2563 = vmax.f32 %v2514, %v2516
        %2564 = vmax.xlane.f32.xlu0 %v2563
        %v2565 = vpop.xlane.xlu0 %2564
        %v2566 = vsub.f32 %v2424, %v2520
        %v2567 = vsub.f32 %v2426, %v2520
        %v2568 = vsub.f32 %v2430, %v2523
        %v2569 = vsub.f32 %v2432, %v2523
        %v2570 = vsub.f32 %v2436, %v2526
        %v2571 = vsub.f32 %v2438, %v2526
        %v2572 = vsub.f32 %v2442, %v2529
        %v2573 = vsub.f32 %v2444, %v2529
        %v2574 = vsub.f32 %v2448, %v2532
        %v2575 = vsub.f32 %v2450, %v2532
        %v2576 = vsub.f32 %v2454, %v2535
        %v2577 = vsub.f32 %v2456, %v2535
        %v2578 = vsub.f32 %v2460, %v2538
        %v2579 = vsub.f32 %v2462, %v2538
        %v2580 = vsub.f32 %v2466, %v2541
        %v2581 = vsub.f32 %v2468, %v2541
        %v2582 = vsub.f32 %v2472, %v2544
        %v2583 = vsub.f32 %v2474, %v2544
        %v2584 = vsub.f32 %v2478, %v2547
        %v2585 = vsub.f32 %v2480, %v2547
        %v2586 = vsub.f32 %v2484, %v2550
        %v2587 = vsub.f32 %v2486, %v2550
        %v2588 = vsub.f32 %v2490, %v2553
        %v2589 = vsub.f32 %v2492, %v2553
        %v2590 = vsub.f32 %v2496, %v2556
        %v2591 = vsub.f32 %v2498, %v2556
        %v2592 = vsub.f32 %v2502, %v2559
        %v2593 = vsub.f32 %v2504, %v2559
        %v2594 = vsub.f32 %v2508, %v2562
        %v2595 = vsub.f32 %v2510, %v2562
        %v2596 = vsub.f32 %v2514, %v2565
        %v2597 = vsub.f32 %v2516, %v2565
        %v2598 = vmul.f32 %v2566, 1.442695
        %v2599 = vpow.pop %v2598
        %v2600 = vmul.f32 %v2567, 1.442695
        %v2601 = vpow.pop %v2600
        %v2602 = vmul.f32 %v2568, 1.442695
        %v2603 = vpow.pop %v2602
        %v2604 = vmul.f32 %v2569, 1.442695
        %v2605 = vpow.pop %v2604
        %v2606 = vmul.f32 %v2570, 1.442695
        %v2607 = vpow.pop %v2606
        %v2608 = vmul.f32 %v2571, 1.442695
        %v2609 = vpow.pop %v2608
        %v2610 = vmul.f32 %v2572, 1.442695
        %v2611 = vpow.pop %v2610
        %v2612 = vmul.f32 %v2573, 1.442695
        %v2613 = vpow.pop %v2612
        %v2614 = vmul.f32 %v2574, 1.442695
        %v2615 = vpow.pop %v2614
        %v2616 = vmul.f32 %v2575, 1.442695
        %v2617 = vpow.pop %v2616
        %v2618 = vmul.f32 %v2576, 1.442695
        %v2619 = vpow.pop %v2618
        %v2620 = vmul.f32 %v2577, 1.442695
        %v2621 = vpow.pop %v2620
        %v2622 = vmul.f32 %v2578, 1.442695
        %v2623 = vpow.pop %v2622
        %v2624 = vmul.f32 %v2579, 1.442695
        %v2625 = vpow.pop %v2624
        %v2626 = vmul.f32 %v2580, 1.442695
        %v2627 = vpow.pop %v2626
        %v2628 = vmul.f32 %v2581, 1.442695
        %v2629 = vpow.pop %v2628
        %v2630 = vmul.f32 %v2582, 1.442695
        %v2631 = vpow.pop %v2630
        %v2632 = vmul.f32 %v2583, 1.442695
        %v2633 = vpow.pop %v2632
        %v2634 = vmul.f32 %v2584, 1.442695
        %v2635 = vpow.pop %v2634
        %v2636 = vmul.f32 %v2585, 1.442695
        %v2637 = vpow.pop %v2636
        %v2638 = vmul.f32 %v2586, 1.442695
        %v2639 = vpow.pop %v2638
        %v2640 = vmul.f32 %v2587, 1.442695
        %v2641 = vpow.pop %v2640
        %v2642 = vmul.f32 %v2588, 1.442695
        %v2643 = vpow.pop %v2642
        %v2644 = vmul.f32 %v2589, 1.442695
        %v2645 = vpow.pop %v2644
        %v2646 = vmul.f32 %v2590, 1.442695
        %v2647 = vpow.pop %v2646
        %v2648 = vmul.f32 %v2591, 1.442695
        %v2649 = vpow.pop %v2648
        %v2650 = vmul.f32 %v2592, 1.442695
        %v2651 = vpow.pop %v2650
        %v2652 = vmul.f32 %v2593, 1.442695
        %v2653 = vpow.pop %v2652
        %v2654 = vmul.f32 %v2594, 1.442695
        %v2655 = vpow.pop %v2654
        %v2656 = vmul.f32 %v2595, 1.442695
        %v2657 = vpow.pop %v2656
        %v2658 = vmul.f32 %v2596, 1.442695
        %v2659 = vpow.pop %v2658
        %v2660 = vmul.f32 %v2597, 1.442695
        %v2661 = vpow.pop %v2660
        %v2662 = vadd.f32 %v2599, %v2601
        %2663 = vadd.xlane.f32.xlu0 %v2662
        %v2664 = vpop.xlane.xlu0 %2663
        %v2665 = vadd.f32 %v2603, %v2605
        %2666 = vadd.xlane.f32.xlu0 %v2665
        %v2667 = vpop.xlane.xlu0 %2666
        %v2668 = vadd.f32 %v2607, %v2609
        %2669 = vadd.xlane.f32.xlu0 %v2668
        %v2670 = vpop.xlane.xlu0 %2669
        %v2671 = vadd.f32 %v2611, %v2613
        %2672 = vadd.xlane.f32.xlu0 %v2671
        %v2673 = vpop.xlane.xlu0 %2672
        %v2674 = vadd.f32 %v2615, %v2617
        %2675 = vadd.xlane.f32.xlu0 %v2674
        %v2676 = vpop.xlane.xlu0 %2675
        %v2677 = vadd.f32 %v2619, %v2621
        %2678 = vadd.xlane.f32.xlu0 %v2677
        %v2679 = vpop.xlane.xlu0 %2678
        %v2680 = vadd.f32 %v2623, %v2625
        %2681 = vadd.xlane.f32.xlu0 %v2680
        %v2682 = vpop.xlane.xlu0 %2681
        %v2683 = vadd.f32 %v2627, %v2629
        %2684 = vadd.xlane.f32.xlu0 %v2683
        %v2685 = vpop.xlane.xlu0 %2684
        %v2686 = vadd.f32 %v2631, %v2633
        %2687 = vadd.xlane.f32.xlu0 %v2686
        %v2688 = vpop.xlane.xlu0 %2687
        %v2689 = vadd.f32 %v2635, %v2637
        %2690 = vadd.xlane.f32.xlu0 %v2689
        %v2691 = vpop.xlane.xlu0 %2690
        %v2692 = vadd.f32 %v2639, %v2641
        %2693 = vadd.xlane.f32.xlu0 %v2692
        %v2694 = vpop.xlane.xlu0 %2693
        %v2695 = vadd.f32 %v2643, %v2645
        %2696 = vadd.xlane.f32.xlu0 %v2695
        %v2697 = vpop.xlane.xlu0 %2696
        %v2698 = vadd.f32 %v2647, %v2649
        %2699 = vadd.xlane.f32.xlu0 %v2698
        %v2700 = vpop.xlane.xlu0 %2699
        %v2701 = vadd.f32 %v2651, %v2653
        %2702 = vadd.xlane.f32.xlu0 %v2701
        %v2703 = vpop.xlane.xlu0 %2702
        %v2704 = vadd.f32 %v2655, %v2657
        %2705 = vadd.xlane.f32.xlu0 %v2704
        %v2706 = vpop.xlane.xlu0 %2705
        %v2707 = vadd.f32 %v2659, %v2661
        %2708 = vadd.xlane.f32.xlu0 %v2707
        %v2709 = vpop.xlane.xlu0 %2708
        %v2710 = vrcp.pop %v2664
        %v2711 = vrcp.pop %v2667
        %v2712 = vrcp.pop %v2670
        %v2713 = vrcp.pop %v2673
        %v2714 = vrcp.pop %v2676
        %v2715 = vrcp.pop %v2679
        %v2716 = vrcp.pop %v2682
        %v2717 = vrcp.pop %v2685
        %v2718 = vrcp.pop %v2688
        %v2719 = vrcp.pop %v2691
        %v2720 = vrcp.pop %v2694
        %v2721 = vrcp.pop %v2697
        %v2722 = vrcp.pop %v2700
        %v2723 = vrcp.pop %v2703
        %v2724 = vrcp.pop %v2706
        %v2725 = vrcp.pop %v2709
        %v2726 = vmul.f32 %v2599, %v2710
        %v2727 = vmul.f32 %v2601, %v2710
        %v2728 = vmul.f32 %v2603, %v2711
        %v2729 = vmul.f32 %v2605, %v2711
        %v2730 = vmul.f32 %v2607, %v2712
        %v2731 = vmul.f32 %v2609, %v2712
        %v2732 = vmul.f32 %v2611, %v2713
        %v2733 = vmul.f32 %v2613, %v2713
        %v2734 = vmul.f32 %v2615, %v2714
        %v2735 = vmul.f32 %v2617, %v2714
        %v2736 = vmul.f32 %v2619, %v2715
        %v2737 = vmul.f32 %v2621, %v2715
        %v2738 = vmul.f32 %v2623, %v2716
        %v2739 = vmul.f32 %v2625, %v2716
        %v2740 = vmul.f32 %v2627, %v2717
        %v2741 = vmul.f32 %v2629, %v2717
        %v2742 = vmul.f32 %v2631, %v2718
        %v2743 = vmul.f32 %v2633, %v2718
        %v2744 = vmul.f32 %v2635, %v2719
        %v2745 = vmul.f32 %v2637, %v2719
        %v2746 = vmul.f32 %v2639, %v2720
        %v2747 = vmul.f32 %v2641, %v2720
        %v2748 = vmul.f32 %v2643, %v2721
        %v2749 = vmul.f32 %v2645, %v2721
        %v2750 = vmul.f32 %v2647, %v2722
        %v2751 = vmul.f32 %v2649, %v2722
        %v2752 = vmul.f32 %v2651, %v2723
        %v2753 = vmul.f32 %v2653, %v2723
        %v2754 = vmul.f32 %v2655, %v2724
        %v2755 = vmul.f32 %v2657, %v2724
        %v2756 = vmul.f32 %v2659, %v2725
        %v2757 = vmul.f32 %v2661, %v2725
        %2758 = vmatprep.subr.mxu0 0.0
        %2759 = vmatpush1.msra.mxu0 %v594
        %2760 = vmatprep.subr.mxu0 0.0
        %2761 = vmatpush1.msra.mxu0 %v598
        %2762 = vmatprep.subr.mxu0 0.0
        %2763 = vmatpush1.msra.mxu0 %v602
        %2764 = vmatprep.subr.mxu0 0.0
        %2765 = vmatpush1.msra.mxu0 %v606
        %2766 = vmatprep.subr.mxu0 0.0
        %2767 = vmatpush1.msra.mxu0 %v610
        %2768 = vmatprep.subr.mxu0 0.0
        %2769 = vmatpush1.msra.mxu0 %v614
        %2770 = vmatprep.subr.mxu0 0.0
        %2771 = vmatpush1.msra.mxu0 %v618
        %2772 = vmatprep.subr.mxu0 0.0
        %2773 = vmatpush1.msra.mxu0 %v622
        %2774 = vmatprep.subr.mxu0 0.0
        %2775 = vmatpush1.msra.mxu0 %v626
        %2776 = vmatprep.subr.mxu0 0.0
        %2777 = vmatpush1.msra.mxu0 %v630
        %2778 = vmatprep.subr.mxu0 0.0
        %2779 = vmatpush1.msra.mxu0 %v634
        %2780 = vmatprep.subr.mxu0 0.0
        %2781 = vmatpush1.msra.mxu0 %v638
        %2782 = vmatprep.subr.mxu0 0.0
        %2783 = vmatpush1.msra.mxu0 %v642
        %2784 = vmatprep.subr.mxu0 0.0
        %2785 = vmatpush1.msra.mxu0 %v646
        %2786 = vmatprep.subr.mxu0 0.0
        %2787 = vmatpush1.msra.mxu0 %v650
        %2788 = vmatprep.subr.mxu0 0.0
        %2789 = vmatpush1.msra.mxu0 %v654
        %2790 = vmatprep.subr.mxu0 0.0
        %2791 = vmatpush1.msra.mxu0 %v658
        %2792 = vmatprep.subr.mxu0 0.0
        %2793 = vmatpush1.msra.mxu0 %v662
        %2794 = vmatprep.subr.mxu0 0.0
        %2795 = vmatpush1.msra.mxu0 %v666
        %2796 = vmatprep.subr.mxu0 0.0
        %2797 = vmatpush1.msra.mxu0 %v670
        %2798 = vmatprep.subr.mxu0 0.0
        %2799 = vmatpush1.msra.mxu0 %v674
        %2800 = vmatprep.subr.mxu0 0.0
        %2801 = vmatpush1.msra.mxu0 %v678
        %2802 = vmatprep.subr.mxu0 0.0
        %2803 = vmatpush1.msra.mxu0 %v682
        %2804 = vmatprep.subr.mxu0 0.0
        %2805 = vmatpush1.msra.mxu0 %v686
        %2806 = vmatprep.subr.mxu0 0.0
        %2807 = vmatpush1.msra.mxu0 %v690
        %2808 = vmatprep.subr.mxu0 0.0
        %2809 = vmatpush1.msra.mxu0 %v694
        %2810 = vmatprep.subr.mxu0 0.0
        %2811 = vmatpush1.msra.mxu0 %v698
        %2812 = vmatprep.subr.mxu0 0.0
        %2813 = vmatpush1.msra.mxu0 %v702
        %2814 = vmatprep.subr.mxu0 0.0
        %2815 = vmatpush1.msra.mxu0 %v706
        %2816 = vmatprep.subr.mxu0 0.0
        %2817 = vmatpush1.msra.mxu0 %v710
        %2818 = vmatprep.subr.mxu0 0.0
        %2819 = vmatpush1.msra.mxu0 %v714
        %2820 = vmatprep.subr.mxu0 0.0
        %2821 = vmatpush1.msra.mxu0 %v718
        %2822 = vmatprep.mubr.f32.mxu0 %v2727
        %2823 = vmatmul.mubr.f32.gmra.mrb[0].mxu0 %v2726
        %v2824 = vpop.f32.mrb[0].mxu0
        %v2825 = vadd.f32 0.0, %v2824
        %v2826 = vpop.f32.mrb[0].mxu0
        %2827 = vmatprep.mubr.f32.mxu0 %v2729
        %2828 = vmatmul.mubr.f32.gmra.mrb[0].mxu0 %v2728
        %v2829 = vpop.f32.mrb[0].mxu0
        %v2830 = vadd.f32 0.0, %v2829
        %v2831 = vpop.f32.mrb[0].mxu0
        %2832 = vmatprep.mubr.f32.mxu0 %v2731
        %2833 = vmatmul.mubr.f32.gmra.mrb[0].mxu0 %v2730
        %v2834 = vpop.f32.mrb[0].mxu0
        %v2835 = vadd.f32 0.0, %v2834
        %v2836 = vpop.f32.mrb[0].mxu0
        %2837 = vmatprep.mubr.f32.mxu0 %v2733
        %2838 = vmatmul.mubr.f32.gmra.mrb[0].mxu0 %v2732
        %v2839 = vpop.f32.mrb[0].mxu0
        %v2840 = vadd.f32 0.0, %v2839
        %v2841 = vpop.f32.mrb[0].mxu0
        %2842 = vmatprep.mubr.f32.mxu0 %v2735
        %2843 = vmatmul.mubr.f32.gmra.mrb[0].mxu0 %v2734
        %v2844 = vpop.f32.mrb[0].mxu0
        %v2845 = vadd.f32 0.0, %v2844
        %v2846 = vpop.f32.mrb[0].mxu0
        %2847 = vmatprep.mubr.f32.mxu0 %v2737
        %2848 = vmatmul.mubr.f32.gmra.mrb[0].mxu0 %v2736
        %v2849 = vpop.f32.mrb[0].mxu0
        %v2850 = vadd.f32 0.0, %v2849
        %v2851 = vpop.f32.mrb[0].mxu0
        %2852 = vmatprep.mubr.f32.mxu0 %v2739
        %2853 = vmatmul.mubr.f32.gmra.mrb[0].mxu0 %v2738
        %v2854 = vpop.f32.mrb[0].mxu0
        %v2855 = vadd.f32 0.0, %v2854
        %v2856 = vpop.f32.mrb[0].mxu0
        %2857 = vmatprep.mubr.f32.mxu0 %v2741
        %2858 = vmatmul.mubr.f32.gmra.mrb[0].mxu0 %v2740
        %v2859 = vpop.f32.mrb[0].mxu0
        %v2860 = vadd.f32 0.0, %v2859
        %v2861 = vpop.f32.mrb[0].mxu0
        %2862 = vmatprep.mubr.f32.mxu0 %v2743
        %2863 = vmatmul.mubr.f32.gmra.mrb[0].mxu0 %v2742
        %v2864 = vpop.f32.mrb[0].mxu0
        %v2865 = vadd.f32 0.0, %v2864
        %v2866 = vpop.f32.mrb[0].mxu0
        %2867 = vmatprep.mubr.f32.mxu0 %v2745
        %2868 = vmatmul.mubr.f32.gmra.mrb[0].mxu0 %v2744
        %v2869 = vpop.f32.mrb[0].mxu0
        %v2870 = vadd.f32 0.0, %v2869
        %v2871 = vpop.f32.mrb[0].mxu0
        %2872 = vmatprep.mubr.f32.mxu0 %v2747
        %2873 = vmatmul.mubr.f32.gmra.mrb[0].mxu0 %v2746
        %v2874 = vpop.f32.mrb[0].mxu0
        %v2875 = vadd.f32 0.0, %v2874
        %v2876 = vpop.f32.mrb[0].mxu0
        %2877 = vmatprep.mubr.f32.mxu0 %v2749
        %2878 = vmatmul.mubr.f32.gmra.mrb[0].mxu0 %v2748
        %v2879 = vpop.f32.mrb[0].mxu0
        %v2880 = vadd.f32 0.0, %v2879
        %v2881 = vpop.f32.mrb[0].mxu0
        %2882 = vmatprep.mubr.f32.mxu0 %v2751
        %2883 = vmatmul.mubr.f32.gmra.mrb[0].mxu0 %v2750
        %v2884 = vpop.f32.mrb[0].mxu0
        %v2885 = vadd.f32 0.0, %v2884
        %v2886 = vpop.f32.mrb[0].mxu0
        %2887 = vmatprep.mubr.f32.mxu0 %v2753
        %2888 = vmatmul.mubr.f32.gmra.mrb[0].mxu0 %v2752
        %v2889 = vpop.f32.mrb[0].mxu0
        %v2890 = vadd.f32 0.0, %v2889
        %v2891 = vpop.f32.mrb[0].mxu0
        %2892 = vmatprep.mubr.f32.mxu0 %v2755
        %2893 = vmatmul.mubr.f32.gmra.mrb[0].mxu0 %v2754
        %v2894 = vpop.f32.mrb[0].mxu0
        %v2895 = vadd.f32 0.0, %v2894
        %v2896 = vpop.f32.mrb[0].mxu0
        %2897 = vmatprep.mubr.f32.mxu0 %v2757
        %2898 = vmatmul.mubr.f32.gmra.mrb[0].mxu0 %v2756
        %v2899 = vpop.f32.mrb[0].mxu0
        %v2900 = vadd.f32 0.0, %v2899
        %v2901 = vpop.f32.mrb[0].mxu0
        %2902 = vdwg.mxu0
        %v2903 = vld [vmem:[#allocation8] sm:$0xff]
        %v2904 = vld [vmem:[#allocation8 + $0x8] sm:$0xff]
        %v2905 = vld [vmem:[#allocation8 + $0x10] sm:$0xff]
        %v2906 = vld [vmem:[#allocation8 + $0x18] sm:$0xff]
        %v2907 = vld [vmem:[#allocation8 + $0x20] sm:$0xff]
        %v2908 = vld [vmem:[#allocation8 + $0x28] sm:$0xff]
        %v2909 = vld [vmem:[#allocation8 + $0x30] sm:$0xff]
        %v2910 = vld [vmem:[#allocation8 + $0x38] sm:$0xff]
        %v2911 = vld [vmem:[#allocation8 + $0x40] sm:$0xff]
        %v2912 = vld [vmem:[#allocation8 + $0x48] sm:$0xff]
        %v2913 = vld [vmem:[#allocation8 + $0x50] sm:$0xff]
        %v2914 = vld [vmem:[#allocation8 + $0x58] sm:$0xff]
        %v2915 = vld [vmem:[#allocation8 + $0x60] sm:$0xff]
        %v2916 = vld [vmem:[#allocation8 + $0x68] sm:$0xff]
        %v2917 = vld [vmem:[#allocation8 + $0x70] sm:$0xff]
        %v2918 = vld [vmem:[#allocation8 + $0x78] sm:$0xff]
        %v2919 = vld [vmem:[#allocation8 + $0x80] sm:$0xff]
        %v2920 = vld [vmem:[#allocation8 + $0x88] sm:$0xff]
        %v2921 = vld [vmem:[#allocation8 + $0x90] sm:$0xff]
        %v2922 = vld [vmem:[#allocation8 + $0x98] sm:$0xff]
        %v2923 = vld [vmem:[#allocation8 + $0xa0] sm:$0xff]
        %v2924 = vld [vmem:[#allocation8 + $0xa8] sm:$0xff]
        %v2925 = vld [vmem:[#allocation8 + $0xb0] sm:$0xff]
        %v2926 = vld [vmem:[#allocation8 + $0xb8] sm:$0xff]
        %v2927 = vld [vmem:[#allocation8 + $0xc0] sm:$0xff]
        %v2928 = vld [vmem:[#allocation8 + $0xc8] sm:$0xff]
        %v2929 = vld [vmem:[#allocation8 + $0xd0] sm:$0xff]
        %v2930 = vld [vmem:[#allocation8 + $0xd8] sm:$0xff]
        %v2931 = vld [vmem:[#allocation8 + $0xe0] sm:$0xff]
        %v2932 = vld [vmem:[#allocation8 + $0xe8] sm:$0xff]
        %v2933 = vld [vmem:[#allocation8 + $0xf0] sm:$0xff]
        %v2934 = vld [vmem:[#allocation8 + $0xf8] sm:$0xff]
        %v2935 = vld [vmem:[#allocation8 + $0x100] sm:$0xff]
        %v2936 = vld [vmem:[#allocation8 + $0x108] sm:$0xff]
        %v2937 = vld [vmem:[#allocation8 + $0x110] sm:$0xff]
        %v2938 = vld [vmem:[#allocation8 + $0x118] sm:$0xff]
        %v2939 = vld [vmem:[#allocation8 + $0x120] sm:$0xff]
        %v2940 = vld [vmem:[#allocation8 + $0x128] sm:$0xff]
        %v2941 = vld [vmem:[#allocation8 + $0x130] sm:$0xff]
        %v2942 = vld [vmem:[#allocation8 + $0x138] sm:$0xff]
        %v2943 = vld [vmem:[#allocation8 + $0x140] sm:$0xff]
        %v2944 = vld [vmem:[#allocation8 + $0x148] sm:$0xff]
        %v2945 = vld [vmem:[#allocation8 + $0x150] sm:$0xff]
        %v2946 = vld [vmem:[#allocation8 + $0x158] sm:$0xff]
        %v2947 = vld [vmem:[#allocation8 + $0x160] sm:$0xff]
        %v2948 = vld [vmem:[#allocation8 + $0x168] sm:$0xff]
        %v2949 = vld [vmem:[#allocation8 + $0x170] sm:$0xff]
        %v2950 = vld [vmem:[#allocation8 + $0x178] sm:$0xff]
        %v2951 = vld [vmem:[#allocation8 + $0x180] sm:$0xff]
        %v2952 = vld [vmem:[#allocation8 + $0x188] sm:$0xff]
        %v2953 = vld [vmem:[#allocation8 + $0x190] sm:$0xff]
        %v2954 = vld [vmem:[#allocation8 + $0x198] sm:$0xff]
        %v2955 = vld [vmem:[#allocation8 + $0x1a0] sm:$0xff]
        %v2956 = vld [vmem:[#allocation8 + $0x1a8] sm:$0xff]
        %v2957 = vld [vmem:[#allocation8 + $0x1b0] sm:$0xff]
        %v2958 = vld [vmem:[#allocation8 + $0x1b8] sm:$0xff]
        %v2959 = vld [vmem:[#allocation8 + $0x1c0] sm:$0xff]
        %v2960 = vld [vmem:[#allocation8 + $0x1c8] sm:$0xff]
        %v2961 = vld [vmem:[#allocation8 + $0x1d0] sm:$0xff]
        %v2962 = vld [vmem:[#allocation8 + $0x1d8] sm:$0xff]
        %v2963 = vld [vmem:[#allocation8 + $0x1e0] sm:$0xff]
        %v2964 = vld [vmem:[#allocation8 + $0x1e8] sm:$0xff]
        %v2965 = vld [vmem:[#allocation8 + $0x1f0] sm:$0xff]
        %v2966 = vld [vmem:[#allocation8 + $0x1f8] sm:$0xff]
        %v2967 = vld [vmem:[#allocation8 + $0x200] sm:$0xff]
        %v2968 = vld [vmem:[#allocation8 + $0x208] sm:$0xff]
        %v2969 = vld [vmem:[#allocation8 + $0x210] sm:$0xff]
        %v2970 = vld [vmem:[#allocation8 + $0x218] sm:$0xff]
        %v2971 = vld [vmem:[#allocation8 + $0x220] sm:$0xff]
        %v2972 = vld [vmem:[#allocation8 + $0x228] sm:$0xff]
        %v2973 = vld [vmem:[#allocation8 + $0x230] sm:$0xff]
        %v2974 = vld [vmem:[#allocation8 + $0x238] sm:$0xff]
        %v2975 = vld [vmem:[#allocation8 + $0x240] sm:$0xff]
        %v2976 = vld [vmem:[#allocation8 + $0x248] sm:$0xff]
        %v2977 = vld [vmem:[#allocation8 + $0x250] sm:$0xff]
        %v2978 = vld [vmem:[#allocation8 + $0x258] sm:$0xff]
        %v2979 = vld [vmem:[#allocation8 + $0x260] sm:$0xff]
        %v2980 = vld [vmem:[#allocation8 + $0x268] sm:$0xff]
        %v2981 = vld [vmem:[#allocation8 + $0x270] sm:$0xff]
        %v2982 = vld [vmem:[#allocation8 + $0x278] sm:$0xff]
        %v2983 = vld [vmem:[#allocation8 + $0x280] sm:$0xff]
        %v2984 = vld [vmem:[#allocation8 + $0x288] sm:$0xff]
        %v2985 = vld [vmem:[#allocation8 + $0x290] sm:$0xff]
        %v2986 = vld [vmem:[#allocation8 + $0x298] sm:$0xff]
        %v2987 = vld [vmem:[#allocation8 + $0x2a0] sm:$0xff]
        %v2988 = vld [vmem:[#allocation8 + $0x2a8] sm:$0xff]
        %v2989 = vld [vmem:[#allocation8 + $0x2b0] sm:$0xff]
        %v2990 = vld [vmem:[#allocation8 + $0x2b8] sm:$0xff]
        %v2991 = vld [vmem:[#allocation8 + $0x2c0] sm:$0xff]
        %v2992 = vld [vmem:[#allocation8 + $0x2c8] sm:$0xff]
        %v2993 = vld [vmem:[#allocation8 + $0x2d0] sm:$0xff]
        %v2994 = vld [vmem:[#allocation8 + $0x2d8] sm:$0xff]
        %v2995 = vld [vmem:[#allocation8 + $0x2e0] sm:$0xff]
        %v2996 = vld [vmem:[#allocation8 + $0x2e8] sm:$0xff]
        %v2997 = vld [vmem:[#allocation8 + $0x2f0] sm:$0xff]
        %v2998 = vld [vmem:[#allocation8 + $0x2f8] sm:$0xff]
        %v2999 = vld [vmem:[#allocation8 + $0x300] sm:$0xff]
        %v3000 = vld [vmem:[#allocation8 + $0x308] sm:$0xff]
        %v3001 = vld [vmem:[#allocation8 + $0x310] sm:$0xff]
        %v3002 = vld [vmem:[#allocation8 + $0x318] sm:$0xff]
        %v3003 = vld [vmem:[#allocation8 + $0x320] sm:$0xff]
        %v3004 = vld [vmem:[#allocation8 + $0x328] sm:$0xff]
        %v3005 = vld [vmem:[#allocation8 + $0x330] sm:$0xff]
        %v3006 = vld [vmem:[#allocation8 + $0x338] sm:$0xff]
        %v3007 = vld [vmem:[#allocation8 + $0x340] sm:$0xff]
        %v3008 = vld [vmem:[#allocation8 + $0x348] sm:$0xff]
        %v3009 = vld [vmem:[#allocation8 + $0x350] sm:$0xff]
        %v3010 = vld [vmem:[#allocation8 + $0x358] sm:$0xff]
        %v3011 = vld [vmem:[#allocation8 + $0x360] sm:$0xff]
        %v3012 = vld [vmem:[#allocation8 + $0x368] sm:$0xff]
        %v3013 = vld [vmem:[#allocation8 + $0x370] sm:$0xff]
        %v3014 = vld [vmem:[#allocation8 + $0x378] sm:$0xff]
        %v3015 = vld [vmem:[#allocation8 + $0x380] sm:$0xff]
        %v3016 = vld [vmem:[#allocation8 + $0x388] sm:$0xff]
        %v3017 = vld [vmem:[#allocation8 + $0x390] sm:$0xff]
        %v3018 = vld [vmem:[#allocation8 + $0x398] sm:$0xff]
        %v3019 = vld [vmem:[#allocation8 + $0x3a0] sm:$0xff]
        %v3020 = vld [vmem:[#allocation8 + $0x3a8] sm:$0xff]
        %v3021 = vld [vmem:[#allocation8 + $0x3b0] sm:$0xff]
        %v3022 = vld [vmem:[#allocation8 + $0x3b8] sm:$0xff]
        %v3023 = vld [vmem:[#allocation8 + $0x3c0] sm:$0xff]
        %v3024 = vld [vmem:[#allocation8 + $0x3c8] sm:$0xff]
        %v3025 = vld [vmem:[#allocation8 + $0x3d0] sm:$0xff]
        %v3026 = vld [vmem:[#allocation8 + $0x3d8] sm:$0xff]
        %v3027 = vld [vmem:[#allocation8 + $0x3e0] sm:$0xff]
        %v3028 = vld [vmem:[#allocation8 + $0x3e8] sm:$0xff]
        %v3029 = vld [vmem:[#allocation8 + $0x3f0] sm:$0xff]
        %v3030 = vld [vmem:[#allocation8 + $0x3f8] sm:$0xff]
        %v3031 = vld [vmem:[%s4] sm:$0x3]
        %v3033 = vlaneseq
        %v3034 = vshrl.u32 %v3033, 7
        %v3035 = vsub.s32 0, %v3034
        %v3036 = vrot.slane %v3031, %v3035
        %v3037 = vlaneseq
        %v3038 = vshrl.u32 %v3037, 7
        %v3039 = vsub.s32 1, %v3038
        %v3040 = vrot.slane %v3031, %v3039
        %3043 = vmatprep.subr.mxu0 %v2904
        %3044 = vmatpush1.msra.mxu0 %v2903
        %3045 = vmatprep.subr.mxu0 %v2906
        %3046 = vmatpush1.msra.mxu0 %v2905
        %3047 = vmatprep.subr.mxu0 %v2908
        %3048 = vmatpush1.msra.mxu0 %v2907
        %3049 = vmatprep.subr.mxu0 %v2910
        %3050 = vmatpush1.msra.mxu0 %v2909
        %3051 = vmatprep.subr.mxu0 %v2912
        %3052 = vmatpush1.msra.mxu0 %v2911
        %3053 = vmatprep.subr.mxu0 %v2914
        %3054 = vmatpush1.msra.mxu0 %v2913
        %3055 = vmatprep.subr.mxu0 %v2916
        %3056 = vmatpush1.msra.mxu0 %v2915
        %3057 = vmatprep.subr.mxu0 %v2918
        %3058 = vmatpush1.msra.mxu0 %v2917
        %3059 = vmatprep.subr.mxu0 %v2920
        %3060 = vmatpush1.msra.mxu0 %v2919
        %3061 = vmatprep.subr.mxu0 %v2922
        %3062 = vmatpush1.msra.mxu0 %v2921
        %3063 = vmatprep.subr.mxu0 %v2924
        %3064 = vmatpush1.msra.mxu0 %v2923
        %3065 = vmatprep.subr.mxu0 %v2926
        %3066 = vmatpush1.msra.mxu0 %v2925
        %3067 = vmatprep.subr.mxu0 %v2928
        %3068 = vmatpush1.msra.mxu0 %v2927
        %3069 = vmatprep.subr.mxu0 %v2930
        %3070 = vmatpush1.msra.mxu0 %v2929
        %3071 = vmatprep.subr.mxu0 %v2932
        %3072 = vmatpush1.msra.mxu0 %v2931
        %3073 = vmatprep.subr.mxu0 %v2934
        %3074 = vmatpush1.msra.mxu0 %v2933
        %3075 = vmatprep.subr.mxu0 %v2936
        %3076 = vmatpush1.msra.mxu0 %v2935
        %3077 = vmatprep.subr.mxu0 %v2938
        %3078 = vmatpush1.msra.mxu0 %v2937
        %3079 = vmatprep.subr.mxu0 %v2940
        %3080 = vmatpush1.msra.mxu0 %v2939
        %3081 = vmatprep.subr.mxu0 %v2942
        %3082 = vmatpush1.msra.mxu0 %v2941
        %3083 = vmatprep.subr.mxu0 %v2944
        %3084 = vmatpush1.msra.mxu0 %v2943
        %3085 = vmatprep.subr.mxu0 %v2946
        %3086 = vmatpush1.msra.mxu0 %v2945
        %3087 = vmatprep.subr.mxu0 %v2948
        %3088 = vmatpush1.msra.mxu0 %v2947
        %3089 = vmatprep.subr.mxu0 %v2950
        %3090 = vmatpush1.msra.mxu0 %v2949
        %3091 = vmatprep.subr.mxu0 %v2952
        %3092 = vmatpush1.msra.mxu0 %v2951
        %3093 = vmatprep.subr.mxu0 %v2954
        %3094 = vmatpush1.msra.mxu0 %v2953
        %3095 = vmatprep.subr.mxu0 %v2956
        %3096 = vmatpush1.msra.mxu0 %v2955
        %3097 = vmatprep.subr.mxu0 %v2958
        %3098 = vmatpush1.msra.mxu0 %v2957
        %3099 = vmatprep.subr.mxu0 %v2960
        %3100 = vmatpush1.msra.mxu0 %v2959
        %3101 = vmatprep.subr.mxu0 %v2962
        %3102 = vmatpush1.msra.mxu0 %v2961
        %3103 = vmatprep.subr.mxu0 %v2964
        %3104 = vmatpush1.msra.mxu0 %v2963
        %3105 = vmatprep.subr.mxu0 %v2966
        %3106 = vmatpush1.msra.mxu0 %v2965
        %3107 = vmatprep.mubr.f32.mxu0 %v1733
        %3108 = vmatmul.mubr.f32.gmra.mrb[0].mxu0 %v1187
        %v3109 = vpop.f32.mrb[0].mxu0
        %v3110 = vadd.f32 %v3036, %v3109
        %v3111 = vpop.f32.mrb[0].mxu0
        %v3112 = vadd.f32 %v3040, %v3111
        %3113 = vmatprep.mubr.f32.mxu0 %v1738
        %3114 = vmatmul.mubr.f32.gmra.mrb[0].mxu0 %v1192
        %v3115 = vpop.f32.mrb[0].mxu0
        %v3116 = vadd.f32 %v3036, %v3115
        %v3117 = vpop.f32.mrb[0].mxu0
        %v3118 = vadd.f32 %v3040, %v3117
        %3119 = vmatprep.mubr.f32.mxu0 %v1743
        %3120 = vmatmul.mubr.f32.gmra.mrb[0].mxu0 %v1197
        %v3121 = vpop.f32.mrb[0].mxu0
        %v3122 = vadd.f32 %v3036, %v3121
        %v3123 = vpop.f32.mrb[0].mxu0
        %v3124 = vadd.f32 %v3040, %v3123
        %3125 = vmatprep.mubr.f32.mxu0 %v1748
        %3126 = vmatmul.mubr.f32.gmra.mrb[0].mxu0 %v1202
        %v3127 = vpop.f32.mrb[0].mxu0
        %v3128 = vadd.f32 %v3036, %v3127
        %v3129 = vpop.f32.mrb[0].mxu0
        %v3130 = vadd.f32 %v3040, %v3129
        %3131 = vmatprep.mubr.f32.mxu0 %v1753
        %3132 = vmatmul.mubr.f32.gmra.mrb[0].mxu0 %v1207
        %v3133 = vpop.f32.mrb[0].mxu0
        %v3134 = vadd.f32 %v3036, %v3133
        %v3135 = vpop.f32.mrb[0].mxu0
        %v3136 = vadd.f32 %v3040, %v3135
        %3137 = vmatprep.mubr.f32.mxu0 %v1758
        %3138 = vmatmul.mubr.f32.gmra.mrb[0].mxu0 %v1212
        %v3139 = vpop.f32.mrb[0].mxu0
        %v3140 = vadd.f32 %v3036, %v3139
        %v3141 = vpop.f32.mrb[0].mxu0
        %v3142 = vadd.f32 %v3040, %v3141
        %3143 = vmatprep.mubr.f32.mxu0 %v1763
        %3144 = vmatmul.mubr.f32.gmra.mrb[0].mxu0 %v1217
        %v3145 = vpop.f32.mrb[0].mxu0
        %v3146 = vadd.f32 %v3036, %v3145
        %v3147 = vpop.f32.mrb[0].mxu0
        %v3148 = vadd.f32 %v3040, %v3147
        %3149 = vmatprep.mubr.f32.mxu0 %v1768
        %3150 = vmatmul.mubr.f32.gmra.mrb[0].mxu0 %v1222
        %v3151 = vpop.f32.mrb[0].mxu0
        %v3152 = vadd.f32 %v3036, %v3151
        %v3153 = vpop.f32.mrb[0].mxu0
        %v3154 = vadd.f32 %v3040, %v3153
        %3155 = vmatprep.mubr.f32.mxu0 %v1773
        %3156 = vmatmul.mubr.f32.gmra.mrb[0].mxu0 %v1227
        %v3157 = vpop.f32.mrb[0].mxu0
        %v3158 = vadd.f32 %v3036, %v3157
        %v3159 = vpop.f32.mrb[0].mxu0
        %v3160 = vadd.f32 %v3040, %v3159
        %3161 = vmatprep.mubr.f32.mxu0 %v1778
        %3162 = vmatmul.mubr.f32.gmra.mrb[0].mxu0 %v1232
        %v3163 = vpop.f32.mrb[0].mxu0
        %v3164 = vadd.f32 %v3036, %v3163
        %v3165 = vpop.f32.mrb[0].mxu0
        %v3166 = vadd.f32 %v3040, %v3165
        %3167 = vmatprep.mubr.f32.mxu0 %v1783
        %3168 = vmatmul.mubr.f32.gmra.mrb[0].mxu0 %v1237
        %v3169 = vpop.f32.mrb[0].mxu0
        %v3170 = vadd.f32 %v3036, %v3169
        %v3171 = vpop.f32.mrb[0].mxu0
        %v3172 = vadd.f32 %v3040, %v3171
        %3173 = vmatprep.mubr.f32.mxu0 %v1788
        %3174 = vmatmul.mubr.f32.gmra.mrb[0].mxu0 %v1242
        %v3175 = vpop.f32.mrb[0].mxu0
        %v3176 = vadd.f32 %v3036, %v3175
        %v3177 = vpop.f32.mrb[0].mxu0
        %v3178 = vadd.f32 %v3040, %v3177
        %3179 = vmatprep.mubr.f32.mxu0 %v1793
        %3180 = vmatmul.mubr.f32.gmra.mrb[0].mxu0 %v1247
        %v3181 = vpop.f32.mrb[0].mxu0
        %v3182 = vadd.f32 %v3036, %v3181
        %v3183 = vpop.f32.mrb[0].mxu0
        %v3184 = vadd.f32 %v3040, %v3183
        %3185 = vmatprep.mubr.f32.mxu0 %v1798
        %3186 = vmatmul.mubr.f32.gmra.mrb[0].mxu0 %v1252
        %v3187 = vpop.f32.mrb[0].mxu0
        %v3188 = vadd.f32 %v3036, %v3187
        %v3189 = vpop.f32.mrb[0].mxu0
        %v3190 = vadd.f32 %v3040, %v3189
        %3191 = vmatprep.mubr.f32.mxu0 %v1803
        %3192 = vmatmul.mubr.f32.gmra.mrb[0].mxu0 %v1257
        %v3193 = vpop.f32.mrb[0].mxu0
        %v3194 = vadd.f32 %v3036, %v3193
        %v3195 = vpop.f32.mrb[0].mxu0
        %v3196 = vadd.f32 %v3040, %v3195
        %3197 = vmatprep.mubr.f32.mxu0 %v1808
        %3198 = vmatmul.mubr.f32.gmra.mrb[0].mxu0 %v1262
        %v3199 = vpop.f32.mrb[0].mxu0
        %v3200 = vadd.f32 %v3036, %v3199
        %v3201 = vpop.f32.mrb[0].mxu0
        %v3202 = vadd.f32 %v3040, %v3201
        %3203 = vdwg.mxu0
        %3204 = vmatprep.subr.mxu0 %v2968
        %3205 = vmatpush1.msra.mxu0 %v2967
        %3206 = vmatprep.subr.mxu0 %v2970
        %3207 = vmatpush1.msra.mxu0 %v2969
        %3208 = vmatprep.subr.mxu0 %v2972
        %3209 = vmatpush1.msra.mxu0 %v2971
        %3210 = vmatprep.subr.mxu0 %v2974
        %3211 = vmatpush1.msra.mxu0 %v2973
        %3212 = vmatprep.subr.mxu0 %v2976
        %3213 = vmatpush1.msra.mxu0 %v2975
        %3214 = vmatprep.subr.mxu0 %v2978
        %3215 = vmatpush1.msra.mxu0 %v2977
        %3216 = vmatprep.subr.mxu0 %v2980
        %3217 = vmatpush1.msra.mxu0 %v2979
        %3218 = vmatprep.subr.mxu0 %v2982
        %3219 = vmatpush1.msra.mxu0 %v2981
        %3220 = vmatprep.subr.mxu0 %v2984
        %3221 = vmatpush1.msra.mxu0 %v2983
        %3222 = vmatprep.subr.mxu0 %v2986
        %3223 = vmatpush1.msra.mxu0 %v2985
        %3224 = vmatprep.subr.mxu0 %v2988
        %3225 = vmatpush1.msra.mxu0 %v2987
        %3226 = vmatprep.subr.mxu0 %v2990
        %3227 = vmatpush1.msra.mxu0 %v2989
        %3228 = vmatprep.subr.mxu0 %v2992
        %3229 = vmatpush1.msra.mxu0 %v2991
        %3230 = vmatprep.subr.mxu0 %v2994
        %3231 = vmatpush1.msra.mxu0 %v2993
        %3232 = vmatprep.subr.mxu0 %v2996
        %3233 = vmatpush1.msra.mxu0 %v2995
        %3234 = vmatprep.subr.mxu0 %v2998
        %3235 = vmatpush1.msra.mxu0 %v2997
        %3236 = vmatprep.subr.mxu0 %v3000
        %3237 = vmatpush1.msra.mxu0 %v2999
        %3238 = vmatprep.subr.mxu0 %v3002
        %3239 = vmatpush1.msra.mxu0 %v3001
        %3240 = vmatprep.subr.mxu0 %v3004
        %3241 = vmatpush1.msra.mxu0 %v3003
        %3242 = vmatprep.subr.mxu0 %v3006
        %3243 = vmatpush1.msra.mxu0 %v3005
        %3244 = vmatprep.subr.mxu0 %v3008
        %3245 = vmatpush1.msra.mxu0 %v3007
        %3246 = vmatprep.subr.mxu0 %v3010
        %3247 = vmatpush1.msra.mxu0 %v3009
        %3248 = vmatprep.subr.mxu0 %v3012
        %3249 = vmatpush1.msra.mxu0 %v3011
        %3250 = vmatprep.subr.mxu0 %v3014
        %3251 = vmatpush1.msra.mxu0 %v3013
        %3252 = vmatprep.subr.mxu0 %v3016
        %3253 = vmatpush1.msra.mxu0 %v3015
        %3254 = vmatprep.subr.mxu0 %v3018
        %3255 = vmatpush1.msra.mxu0 %v3017
        %3256 = vmatprep.subr.mxu0 %v3020
        %3257 = vmatpush1.msra.mxu0 %v3019
        %3258 = vmatprep.subr.mxu0 %v3022
        %3259 = vmatpush1.msra.mxu0 %v3021
        %3260 = vmatprep.subr.mxu0 %v3024
        %3261 = vmatpush1.msra.mxu0 %v3023
        %3262 = vmatprep.subr.mxu0 %v3026
        %3263 = vmatpush1.msra.mxu0 %v3025
        %3264 = vmatprep.subr.mxu0 %v3028
        %3265 = vmatpush1.msra.mxu0 %v3027
        %3266 = vmatprep.subr.mxu0 %v3030
        %3267 = vmatpush1.msra.mxu0 %v3029
        %3268 = vmatprep.mubr.f32.mxu0 %v2825
        %3269 = vmatmul.mubr.f32.gmra.mrb[0].mxu0 %v2279
        %v3270 = vpop.f32.mrb[0].mxu0
        %v3271 = vadd.f32 %v3110, %v3270
        %v3272 = vpop.f32.mrb[0].mxu0
        %v3273 = vadd.f32 %v3112, %v3272
        %3274 = vmatprep.mubr.f32.mxu0 %v2830
        %3275 = vmatmul.mubr.f32.gmra.mrb[0].mxu0 %v2284
        %v3276 = vpop.f32.mrb[0].mxu0
        %v3277 = vadd.f32 %v3116, %v3276
        %v3278 = vpop.f32.mrb[0].mxu0
        %v3279 = vadd.f32 %v3118, %v3278
        %3280 = vmatprep.mubr.f32.mxu0 %v2835
        %3281 = vmatmul.mubr.f32.gmra.mrb[0].mxu0 %v2289
        %v3282 = vpop.f32.mrb[0].mxu0
        %v3283 = vadd.f32 %v3122, %v3282
        %v3284 = vpop.f32.mrb[0].mxu0
        %v3285 = vadd.f32 %v3124, %v3284
        %3286 = vmatprep.mubr.f32.mxu0 %v2840
        %3287 = vmatmul.mubr.f32.gmra.mrb[0].mxu0 %v2294
        %v3288 = vpop.f32.mrb[0].mxu0
        %v3289 = vadd.f32 %v3128, %v3288
        %v3290 = vpop.f32.mrb[0].mxu0
        %v3291 = vadd.f32 %v3130, %v3290
        %3292 = vmatprep.mubr.f32.mxu0 %v2845
        %3293 = vmatmul.mubr.f32.gmra.mrb[0].mxu0 %v2299
        %v3294 = vpop.f32.mrb[0].mxu0
        %v3295 = vadd.f32 %v3134, %v3294
        %v3296 = vpop.f32.mrb[0].mxu0
        %v3297 = vadd.f32 %v3136, %v3296
        %3298 = vmatprep.mubr.f32.mxu0 %v2850
        %3299 = vmatmul.mubr.f32.gmra.mrb[0].mxu0 %v2304
        %v3300 = vpop.f32.mrb[0].mxu0
        %v3301 = vadd.f32 %v3140, %v3300
        %v3302 = vpop.f32.mrb[0].mxu0
        %v3303 = vadd.f32 %v3142, %v3302
        %3304 = vmatprep.mubr.f32.mxu0 %v2855
        %3305 = vmatmul.mubr.f32.gmra.mrb[0].mxu0 %v2309
        %v3306 = vpop.f32.mrb[0].mxu0
        %v3307 = vadd.f32 %v3146, %v3306
        %v3308 = vpop.f32.mrb[0].mxu0
        %v3309 = vadd.f32 %v3148, %v3308
        %3310 = vmatprep.mubr.f32.mxu0 %v2860
        %3311 = vmatmul.mubr.f32.gmra.mrb[0].mxu0 %v2314
        %v3312 = vpop.f32.mrb[0].mxu0
        %v3313 = vadd.f32 %v3152, %v3312
        %v3314 = vpop.f32.mrb[0].mxu0
        %v3315 = vadd.f32 %v3154, %v3314
        %3316 = vmatprep.mubr.f32.mxu0 %v2865
        %3317 = vmatmul.mubr.f32.gmra.mrb[0].mxu0 %v2319
        %v3318 = vpop.f32.mrb[0].mxu0
        %v3319 = vadd.f32 %v3158, %v3318
        %v3320 = vpop.f32.mrb[0].mxu0
        %v3321 = vadd.f32 %v3160, %v3320
        %3322 = vmatprep.mubr.f32.mxu0 %v2870
        %3323 = vmatmul.mubr.f32.gmra.mrb[0].mxu0 %v2324
        %v3324 = vpop.f32.mrb[0].mxu0
        %v3325 = vadd.f32 %v3164, %v3324
        %v3326 = vpop.f32.mrb[0].mxu0
        %v3327 = vadd.f32 %v3166, %v3326
        %3328 = vmatprep.mubr.f32.mxu0 %v2875
        %3329 = vmatmul.mubr.f32.gmra.mrb[0].mxu0 %v2329
        %v3330 = vpop.f32.mrb[0].mxu0
        %v3331 = vadd.f32 %v3170, %v3330
        %v3332 = vpop.f32.mrb[0].mxu0
        %v3333 = vadd.f32 %v3172, %v3332
        %3334 = vmatprep.mubr.f32.mxu0 %v2880
        %3335 = vmatmul.mubr.f32.gmra.mrb[0].mxu0 %v2334
        %v3336 = vpop.f32.mrb[0].mxu0
        %v3337 = vadd.f32 %v3176, %v3336
        %v3338 = vpop.f32.mrb[0].mxu0
        %v3339 = vadd.f32 %v3178, %v3338
        %3340 = vmatprep.mubr.f32.mxu0 %v2885
        %3341 = vmatmul.mubr.f32.gmra.mrb[0].mxu0 %v2339
        %v3342 = vpop.f32.mrb[0].mxu0
        %v3343 = vadd.f32 %v3182, %v3342
        %v3344 = vpop.f32.mrb[0].mxu0
        %v3345 = vadd.f32 %v3184, %v3344
        %3346 = vmatprep.mubr.f32.mxu0 %v2890
        %3347 = vmatmul.mubr.f32.gmra.mrb[0].mxu0 %v2344
        %v3348 = vpop.f32.mrb[0].mxu0
        %v3349 = vadd.f32 %v3188, %v3348
        %v3350 = vpop.f32.mrb[0].mxu0
        %v3351 = vadd.f32 %v3190, %v3350
        %3352 = vmatprep.mubr.f32.mxu0 %v2895
        %3353 = vmatmul.mubr.f32.gmra.mrb[0].mxu0 %v2349
        %v3354 = vpop.f32.mrb[0].mxu0
        %v3355 = vadd.f32 %v3194, %v3354
        %v3356 = vpop.f32.mrb[0].mxu0
        %v3357 = vadd.f32 %v3196, %v3356
        %3358 = vmatprep.mubr.f32.mxu0 %v2900
        %3359 = vmatmul.mubr.f32.gmra.mrb[0].mxu0 %v2354
        %v3360 = vpop.f32.mrb[0].mxu0
        %v3361 = vadd.f32 %v3200, %v3360
        %v3362 = vpop.f32.mrb[0].mxu0
        %v3363 = vadd.f32 %v3202, %v3362
        %3364 = vdwg.mxu0
        %3365 = vst [vmem:[%s334] sm:$0xff] %v3271
        %3366 = vst [vmem:[%s334 + $0x8] sm:$0xff] %v3273
        %3367 = vst [vmem:[%s334 + $0x10] sm:$0xff] %v3277
        %3368 = vst [vmem:[%s334 + $0x18] sm:$0xff] %v3279
        %3369 = vst [vmem:[%s334 + $0x20] sm:$0xff] %v3283
        %3370 = vst [vmem:[%s334 + $0x28] sm:$0xff] %v3285
        %3371 = vst [vmem:[%s334 + $0x30] sm:$0xff] %v3289
        %3372 = vst [vmem:[%s334 + $0x38] sm:$0xff] %v3291
        %3373 = vst [vmem:[%s334 + $0x40] sm:$0xff] %v3295
        %3374 = vst [vmem:[%s334 + $0x48] sm:$0xff] %v3297
        %3375 = vst [vmem:[%s334 + $0x50] sm:$0xff] %v3301
        %3376 = vst [vmem:[%s334 + $0x58] sm:$0xff] %v3303
        %3377 = vst [vmem:[%s334 + $0x60] sm:$0xff] %v3307
        %3378 = vst [vmem:[%s334 + $0x68] sm:$0xff] %v3309
        %3379 = vst [vmem:[%s334 + $0x70] sm:$0xff] %v3313
        %3380 = vst [vmem:[%s334 + $0x78] sm:$0xff] %v3315
        %3381 = vst [vmem:[%s334 + $0x80] sm:$0xff] %v3319
        %3382 = vst [vmem:[%s334 + $0x88] sm:$0xff] %v3321
        %3383 = vst [vmem:[%s334 + $0x90] sm:$0xff] %v3325
        %3384 = vst [vmem:[%s334 + $0x98] sm:$0xff] %v3327
        %3385 = vst [vmem:[%s334 + $0xa0] sm:$0xff] %v3331
        %3386 = vst [vmem:[%s334 + $0xa8] sm:$0xff] %v3333
        %3387 = vst [vmem:[%s334 + $0xb0] sm:$0xff] %v3337
        %3388 = vst [vmem:[%s334 + $0xb8] sm:$0xff] %v3339
        %3389 = vst [vmem:[%s334 + $0xc0] sm:$0xff] %v3343
        %3390 = vst [vmem:[%s334 + $0xc8] sm:$0xff] %v3345
        %3391 = vst [vmem:[%s334 + $0xd0] sm:$0xff] %v3349
        %3392 = vst [vmem:[%s334 + $0xd8] sm:$0xff] %v3351
        %3393 = vst [vmem:[%s334 + $0xe0] sm:$0xff] %v3355
        %3394 = vst [vmem:[%s334 + $0xe8] sm:$0xff] %v3357
        %3395 = vst [vmem:[%s334 + $0xf0] sm:$0xff] %v3361
        %3396 = vst [vmem:[%s334 + $0xf8] sm:$0xff] %v3363
        %s3397 = sand.u32 %s154, 1
        %s3398 = scalar_lea.sflag [#allocation4], %s3397
        %s3399 = sand.u32 %s154, 1
        %s3400 = smul.addr %s3399, 256
        %s3401 = scalar_lea.vmem [#allocation10], %s3400
        // Predicated region
        $region57: #{tpu_custom_call.1} parent=39 // pred_check
          %p3402 = pneg %p164
        $region58: #{tpu_custom_call.1} parent=39 // pred_check_branch
          %3404 = sbr.rel (%p3402) target = $region60
        $region59: #{tpu_custom_call.1} parent=39 // pred_region
          %s3406 = ssub.s32 4096, 4096
          %3407 = vsyncadd %s3398, %s3406
          %s3408 = smul.addr %s26, 32
          %s3409 = smul.addr %s3408, 128
          %s3410 = scalar_lea.hbm %s5, %s3409
          %s3411 = sshll.u32 %s3401, 4
          %s3412 = int_to_ptr.vmem [resolvable:$true] %s3411
          %3417 = dma.vmem_to_hbm [thread:$0]  %s3412, 4096, %s3410, %s3398, 256, 256, 16
        $region60: #{tpu_custom_call.1} parent=39 // pred_fallthru
          _
      $region40: #{tpu_custom_call.1} parent=5 // pred_fallthru
        _
      %p3418 = scmp.le.s32.totalorder 2, %s21
      // Predicated region
      $region61: #{tpu_custom_call.1} parent=5 // pred_check
        %p3419 = pneg %p3418
      $region62: #{tpu_custom_call.1} parent=5 // pred_check_branch
        %3421 = sbr.rel (%p3419) target = $region64
      $region63: #{tpu_custom_call.1} parent=5 // pred_region
        %s3422 = ssub.s32 %s21, 2
        // Predicated region
        $region65: #{tpu_custom_call.1} parent=63 // pred_check
          %p3423 = pneg %p170
        $region66: #{tpu_custom_call.1} parent=63 // pred_check_branch
          %3425 = sbr.rel (%p3423) target = $region68
        $region67: #{tpu_custom_call.1} parent=63 // pred_region
          %s3426 = sand.u32 %s155, 1
          %s3427 = scalar_lea.sflag [#allocation4], %s3426
          %s3428 = sand.u32 %s155, 1
          %s3429 = smul.addr %s3428, 256
          %s3430 = scalar_lea.vmem [#allocation10], %s3429
          %3431 = dma.done %s3427, 4096
        $region68: #{tpu_custom_call.1} parent=63 // pred_fallthru
          _
      $region64: #{tpu_custom_call.1} parent=5 // pred_fallthru
        _
    $region6: #{tpu_custom_call.1} parent=1 // loop_footer
      %s25 = sadd.s32 1, %s21
    $region7: #{tpu_custom_call.1} parent=1 // loop_footer_branch
      %20 = sbr.rel target = $region3
    $region8: #{tpu_custom_call.1} parent=1 // loop_exit
      _
    %3432 = vsyncpa [#allocation3], 1
    %s3433 = scalar_lea.sflag [#allocation3], 1
    %3434 = vsyncpa %s3433, 1
    %3435 = vsyncpa [#allocation6], 1
    %s3436 = scalar_lea.sflag [#allocation6], 1
    %3437 = vsyncpa %s3436, 1
    %3438 = vsyncpa [#allocation9], 1
    %3439 = vsyncpa [#allocation4], 1
    %s3440 = scalar_lea.sflag [#allocation4], 1
    %3441 = vsyncpa %s3440, 1

</llo_original>
